<compile_context>
chip_gen: v7x
topology: tpu7x:2x2x1
jax: 0.10.0
libtpu: 0.0.40
codegen_flags: <defaults>
</compile_context>

<pallas_src>
import functools
import math

import jax
import jax.numpy as jnp
from jax.experimental import pallas as pl
from jax.experimental.pallas import tpu as pltpu

_LOG2E = 1.4426950408889634
_MASK_VALUE = -1e30  # large finite negative for padded key positions


def _flash_mhsdp_kernel(q_ref, k_ref, v_ref, o_ref, m_sc, l_sc, acc_sc, *,
                        scale_log2e, seq_len, block_k, mask_kv):
    """One (batch, head-chunk, q-tile, kv-tile) grid step.

    Refs:
      q_ref  : (1, HB, TQ, D)  input dtype
      k_ref  : (1, HB, TK, D)  input dtype
      v_ref  : (1, HB, TK, D)  input dtype
      o_ref  : (1, HB, TQ, D)  output (written on the last KV step only)
      m_sc   : (HB, TQ, 1) f32 running row max (base-2 log domain)
      l_sc   : (HB, TQ, 1) f32 running softmax denominator
      acc_sc : (HB, TQ, D) f32 running unnormalized output accumulator
    """
    kv = pl.program_id(3)

    @pl.when(kv == 0)
    def _init():
        m_sc[...] = jnp.full(m_sc.shape, -jnp.inf, dtype=jnp.float32)
        l_sc[...] = jnp.zeros(l_sc.shape, dtype=jnp.float32)
        acc_sc[...] = jnp.zeros(acc_sc.shape, dtype=jnp.float32)

    q = q_ref[0]  # (HB, TQ, D) -- keep input dtype; MXU accumulates in f32.
    k = k_ref[0]  # (HB, TK, D)
    v = v_ref[0]  # (HB, TK, D)

    # Fold 1/sqrt(D)*log2(e) into Q: one multiply over HB*TQ*D elements per step
    # instead of a full (HB, TQ, TK) post-matmul scale; softmax then uses exp2.
    q = q * jnp.asarray(scale_log2e, dtype=q.dtype)

    # Per-head Q @ K^T, contracting the last dims -- no K transpose expressed.
    s = jax.lax.dot_general(
        q, k,
        dimension_numbers=(((2,), (2,)), ((0,), (0,))),
        preferred_element_type=jnp.float32,
    )  # (HB, TQ, TK) f32, base-2 log domain

    if mask_kv:
        kpos = kv * block_k + jax.lax.broadcasted_iota(jnp.int32, (1, 1, block_k), 2)
        s = jnp.where(kpos < seq_len, s, _MASK_VALUE)

    m_prev = m_sc[...]                                        # (HB, TQ, 1)
    m_new = jnp.maximum(m_prev, jnp.max(s, axis=-1, keepdims=True))
    alpha = jnp.exp2(m_prev - m_new)                          # (HB, TQ, 1)
    p = jnp.exp2(s - m_new)                                   # (HB, TQ, TK) f32

    l_sc[...] = alpha * l_sc[...] + jnp.sum(p, axis=-1, keepdims=True)

    # Per-head P @ V; feed P in V's dtype (bf16 stays bf16), f32 accumulation.
    pv = jax.lax.dot_general(
        p.astype(v.dtype), v,
        dimension_numbers=(((2,), (1,)), ((0,), (0,))),
        preferred_element_type=jnp.float32,
    )                                                         # (HB, TQ, D)
    acc_sc[...] = alpha * acc_sc[...] + pv
    m_sc[...] = m_new

    @pl.when(kv == pl.num_programs(3) - 1)
    def _finalize():
        # Deferred normalization: O(S*D) multiply instead of an O(S^2) divide.
        l = l_sc[...]
        inv_l = pl.reciprocal(l, approx=True)   # EUP seed (free slot)
        inv_l = inv_l * (2.0 - l * inv_l)       # one Newton step -> f32 exact
        o_ref[0] = (acc_sc[...] * inv_l).astype(o_ref.dtype)


def _round_up(x, m):
    return (x + m - 1) // m * m


def _seq_tile_candidates(s_pad):
    return [t for t in range(128, s_pad + 1, 128) if s_pad % t == 0]


def _head_chunk_candidates(heads):
    return [d for d in range(heads, 0, -1) if heads % d == 0]


def _vmem_footprint(hb, tq, tk, d, itemsize):
    blocks = 4 * hb * (tq + tk) * d * itemsize     # double-buffered Q,O + K,V
    acc = hb * tq * d * 4                          # f32 output accumulator
    ml = 2 * hb * tq * 128 * 4                     # lane-padded (HB,TQ,1) m/l
    scores = 3 * hb * tq * tk * 4                  # s, p and exp/cast temporaries
    return blocks + acc + ml + scores


def _select_tiling(batch, heads, s_pad, d, itemsize, vmem_budget):
    """Pick (tq, tk, head_chunk) under score-tile and VMEM budgets."""
    score_cap = 4 << 20                            # live (HB,TQ,TK) f32 target
    seq_tiles = _seq_tile_candidates(s_pad)
    head_chunks = _head_chunk_candidates(heads)

    tq = max(t for t in seq_tiles if t <= 512)
    q_tiles = s_pad // tq

    # v7x megacore: guarantee >= 2 independent parallel grid slices if possible.
    max_hb = heads
    if batch * q_tiles < 2 and heads >= 2:
        max_hb = max(1, heads // 2)

    # 1) K/V-resident: tk == s_pad -> kv block index constant across q tiles,
    #    so K/V are read from HBM exactly once per (batch, head-chunk).
    if q_tiles > 1:
        for hb in head_chunks:
            if hb > max_hb:
                continue
            if (hb * tq * s_pad * 4 <= score_cap
                    and _vmem_footprint(hb, tq, s_pad, d, itemsize) <= vmem_budget):
                return tq, s_pad, hb

    # 2) Streamed K/V: moderate kv tile, largest head chunk that fits.
    for tk in [t for t in reversed(seq_tiles) if t <= 512]:
        for hb in head_chunks:
            if hb > max_hb:
                continue
            if (hb * tq * tk * 4 <= score_cap
                    and _vmem_footprint(hb, tq, tk, d, itemsize) <= vmem_budget):
                return tq, tk, hb

    # 3) Last resort: shrink everything until the footprint fits.
    for tq2 in seq_tiles:
        for tk in seq_tiles:
            if _vmem_footprint(1, tq2, tk, d, itemsize) <= vmem_budget:
                return tq2, tk, 1
    return seq_tiles[0], seq_tiles[0], 1


def multi_head_scaled_dot_product(query, key, value):
    """query/key/value: [batch, num_heads, seq_len, head_dim] -> same shape."""
    batch, heads, seq_len, head_dim = query.shape
    itemsize = jnp.dtype(query.dtype).itemsize

    # Generation-aware VMEM budget (~70% of physical: v5e/v6e 128 MiB, v7x 64 MiB).
    try:
        vmem_phys = int(getattr(pltpu.get_tpu_info(), "vmem_capacity_bytes", 0) or 0)
    except Exception:
        vmem_phys = 0
    if vmem_phys < (32 << 20):
        vmem_phys = 64 << 20                      # conservative (v7x-sized) fallback
    vmem_budget = min((vmem_phys * 7) // 10, 100 << 20)

    s_pad = max(_round_up(seq_len, 128), 128)
    tq, tk, hb = _select_tiling(batch, heads, s_pad, head_dim, itemsize, vmem_budget)

    mask_kv = s_pad != seq_len
    if mask_kv:
        pad = ((0, 0), (0, 0), (0, s_pad - seq_len), (0, 0))
        query_p = jnp.pad(query, pad)
        key_p = jnp.pad(key, pad)
        value_p = jnp.pad(value, pad)
    else:
        query_p, key_p, value_p = query, key, value

    grid = (batch, heads // hb, s_pad // tq, s_pad // tk)

    q_spec = pl.BlockSpec((1, hb, tq, head_dim), lambda b, hc, qi, ki: (b, hc, qi, 0))
    kv_spec = pl.BlockSpec((1, hb, tk, head_dim), lambda b, hc, qi, ki: (b, hc, ki, 0))
    o_spec = pl.BlockSpec((1, hb, tq, head_dim), lambda b, hc, qi, ki: (b, hc, qi, 0))

    # HBM traffic: Q read + O written once; K/V re-streamed once per q tile
    # unless VMEM-resident (tk == s_pad -> single pass).
    kv_rereads = 1 if tk == s_pad else s_pad // tq
    cost = pl.CostEstimate(
        flops=4 * batch * heads * seq_len * seq_len * head_dim,     # QK^T + PV
        transcendentals=batch * heads * seq_len * seq_len,          # softmax exp
        bytes_accessed=batch * heads * s_pad * head_dim * itemsize * (2 + 2 * kv_rereads),
    )

    kernel = functools.partial(
        _flash_mhsdp_kernel,
        scale_log2e=_LOG2E / math.sqrt(head_dim),
        seq_len=seq_len,
        block_k=tk,
        mask_kv=mask_kv,
    )

    out = pl.pallas_call(
        kernel,
        out_shape=jax.ShapeDtypeStruct(query_p.shape, query.dtype),
        grid_spec=pltpu.PrefetchScalarGridSpec(
            num_scalar_prefetch=0,
            grid=grid,
            in_specs=[q_spec, kv_spec, kv_spec],
            out_specs=o_spec,
            scratch_shapes=[
                pltpu.VMEM((hb, tq, 1), jnp.float32),         # running max
                pltpu.VMEM((hb, tq, 1), jnp.float32),         # running denominator
                pltpu.VMEM((hb, tq, head_dim), jnp.float32),  # unnormalized output
            ],
        ),
        compiler_params=pltpu.CompilerParams(
            dimension_semantics=("parallel", "parallel", "parallel", "arbitrary"),
            vmem_limit_bytes=int(vmem_budget),
        ),
        cost_estimate=cost,
    )(query_p, key_p, value_p)

    if mask_kv:
        out = out[:, :, :seq_len, :]
    return out


def _reference(query, key, value):
    head_dim = query.shape[-1]
    scores = jnp.einsum("bhqd,bhkd->bhqk", query, key) / math.sqrt(head_dim)
    attn = jax.nn.softmax(scores, axis=-1)
    return jnp.einsum("bhqk,bhkd->bhqd", attn, value)


if __name__ == "__main__":
    # 1) Small shape matching the module's [batch, num_heads, seq, head_dim];
    #    exercises sequence padding + key masking.
    B, H, S, D = 2, 4, 8, 32
    kq, kk, kv = jax.random.split(jax.random.PRNGKey(0), 3)
    q = jax.random.normal(kq, (B, H, S, D), jnp.float32)
    k = jax.random.normal(kk, (B, H, S, D), jnp.float32)
    v = jax.random.normal(kv, (B, H, S, D), jnp.float32)

    out = jax.block_until_ready(multi_head_scaled_dot_product(q, k, v))
    ref = _reference(q, k, v)
    assert out.shape == (B, H, S, D)
    assert jnp.allclose(out, ref, atol=2e-5, rtol=2e-5)

    # 2) Multiple q tiles with VMEM-resident K/V (single HBM pass).
    B2, H2, S2, D2 = 1, 2, 1024, 64
    kq2, kk2, kv2 = jax.random.split(jax.random.PRNGKey(1), 3)
    q2 = jax.random.normal(kq2, (B2, H2, S2, D2), jnp.float32)
    k2 = jax.random.normal(kk2, (B2, H2, S2, D2), jnp.float32)
    v2 = jax.random.normal(kv2, (B2, H2, S2, D2), jnp.float32)

    out2 = jax.block_until_ready(multi_head_scaled_dot_product(q2, k2, v2))
    ref2 = _reference(q2, k2, v2)
    assert jnp.allclose(out2, ref2, atol=1e-4, rtol=1e-4)

    # 3) Head chunking (> 1 head chunks on the parallel grid axis), no masking.
    B3, H3, S3, D3 = 1, 8, 512, 64
    kq3, kk3, kv3 = jax.random.split(jax.random.PRNGKey(2), 3)
    q3 = jax.random.normal(kq3, (B3, H3, S3, D3), jnp.float32)
    k3 = jax.random.normal(kk3, (B3, H3, S3, D3), jnp.float32)
    v3 = jax.random.normal(kv3, (B3, H3, S3, D3), jnp.float32)

    out3 = jax.block_until_ready(multi_head_scaled_dot_product(q3, k3, v3))
    ref3 = _reference(q3, k3, v3)
    assert jnp.allclose(out3, ref3, atol=1e-4, rtol=1e-4)

    print("KERNEL_OK")
</pallas_src>

<mosaic_0001>
module attributes {stable_mosaic.version = 11 : i64} {
  func.func @_flash_mhsdp_kernel(%arg0: i32, %arg1: i32, %arg2: i32, %arg3: i32, %arg4: memref<1x4x128x32xf32, #tpu.memory_space<vmem>>, %arg5: memref<1x4x128x32xf32, #tpu.memory_space<vmem>>, %arg6: memref<1x4x128x32xf32, #tpu.memory_space<vmem>>, %arg7: memref<1x4x128x32xf32, #tpu.memory_space<vmem>>, %arg8: memref<4x128x1xf32, #tpu.memory_space<vmem>>, %arg9: memref<4x128x1xf32, #tpu.memory_space<vmem>>, %arg10: memref<4x128x32xf32, #tpu.memory_space<vmem>>) attributes {dimension_semantics = [#tpu.dimension_semantics<parallel>, #tpu.dimension_semantics<parallel>, #tpu.dimension_semantics<parallel>, #tpu.dimension_semantics<arbitrary>], iteration_bounds = array<i64: 2, 1, 1, 1>, scalar_prefetch = 0 : i64, scratch_operands = 3 : i64, tpu.core_type = #tpu.core_type<tc>, window_params = [{transform_indices = @transform_0, window_bounds = array<i64: 1, 4, 128, 32>}, {transform_indices = @transform_1, window_bounds = array<i64: 1, 4, 128, 32>}, {transform_indices = @transform_2, window_bounds = array<i64: 1, 4, 128, 32>}, {transform_indices = @transform_3, window_bounds = array<i64: 1, 4, 128, 32>}]} {
    %c0_i32 = arith.constant 0 : i32
    %0 = arith.cmpi eq, %arg3, %c0_i32 : i32
    %1 = arith.extui %0 : i1 to i32
    %c0_i32_0 = arith.constant 0 : i32
    %2 = arith.cmpi ne, %1, %c0_i32_0 : i32
    scf.if %2 {
      %cst_37 = arith.constant 0xFF800000 : f32
      %47 = vector.broadcast %cst_37 : f32 to vector<4x128x1xf32>
      %c0_38 = arith.constant 0 : index
      %c0_39 = arith.constant 0 : index
      %c0_40 = arith.constant 0 : index
      %48 = vector.load %arg8[%c0_38, %c0_39, %c0_40] : memref<4x128x1xf32, #tpu.memory_space<vmem>>, vector<4x128x1xf32>
      tpu.vector_store %arg8[%c0_38, %c0_39, %c0_40], %47 {strides = array<i32>} : memref<4x128x1xf32, #tpu.memory_space<vmem>>, vector<4x128x1xf32>,
      %cst_41 = arith.constant 0.000000e+00 : f32
      %49 = vector.broadcast %cst_41 : f32 to vector<4x128x1xf32>
      %c0_42 = arith.constant 0 : index
      %c0_43 = arith.constant 0 : index
      %c0_44 = arith.constant 0 : index
      %50 = vector.load %arg9[%c0_42, %c0_43, %c0_44] : memref<4x128x1xf32, #tpu.memory_space<vmem>>, vector<4x128x1xf32>
      tpu.vector_store %arg9[%c0_42, %c0_43, %c0_44], %49 {strides = array<i32>} : memref<4x128x1xf32, #tpu.memory_space<vmem>>, vector<4x128x1xf32>,
      %cst_45 = arith.constant 0.000000e+00 : f32
      %51 = vector.broadcast %cst_45 : f32 to vector<4x128x32xf32>
      %c0_46 = arith.constant 0 : index
      %c0_47 = arith.constant 0 : index
      %c0_48 = arith.constant 0 : index
      %52 = vector.load %arg10[%c0_46, %c0_47, %c0_48] : memref<4x128x32xf32, #tpu.memory_space<vmem>>, vector<4x128x32xf32>
      tpu.vector_store %arg10[%c0_46, %c0_47, %c0_48], %51 {strides = array<i32>} : memref<4x128x32xf32, #tpu.memory_space<vmem>>, vector<4x128x32xf32>,
    } else {
    }
    %c0 = arith.constant 0 : index
    %c0_1 = arith.constant 0 : index
    %c0_2 = arith.constant 0 : index
    %c0_3 = arith.constant 0 : index
    %3 = vector.load %arg4[%c0, %c0_1, %c0_2, %c0_3] : memref<1x4x128x32xf32, #tpu.memory_space<vmem>>, vector<1x4x128x32xf32>
    %4 = vector.shape_cast %3 : vector<1x4x128x32xf32> to vector<4x128x32xf32>
    %c0_4 = arith.constant 0 : index
    %c0_5 = arith.constant 0 : index
    %c0_6 = arith.constant 0 : index
    %c0_7 = arith.constant 0 : index
    %5 = vector.load %arg5[%c0_4, %c0_5, %c0_6, %c0_7] : memref<1x4x128x32xf32, #tpu.memory_space<vmem>>, vector<1x4x128x32xf32>
    %6 = vector.shape_cast %5 : vector<1x4x128x32xf32> to vector<4x128x32xf32>
    %c0_8 = arith.constant 0 : index
    %c0_9 = arith.constant 0 : index
    %c0_10 = arith.constant 0 : index
    %c0_11 = arith.constant 0 : index
    %7 = vector.load %arg6[%c0_8, %c0_9, %c0_10, %c0_11] : memref<1x4x128x32xf32, #tpu.memory_space<vmem>>, vector<1x4x128x32xf32>
    %8 = vector.shape_cast %7 : vector<1x4x128x32xf32> to vector<4x128x32xf32>
    %cst = arith.constant 0.255034864 : f32
    %9 = vector.broadcast %cst : f32 to vector<4x128x32xf32>
    %10 = arith.mulf %4, %9 : vector<4x128x32xf32>
    %cst_12 = arith.constant dense<0.000000e+00> : vector<4x128x128xf32>
    %11 = tpu.matmul %10, %6, %cst_12 {dimension_numbers = #tpu.dot_dimension_numbers<[2], [2], [1], [1], [0, 0, 0, 1, 1, 1], [0], [0]>} : vector<4x128x32xf32>, vector<4x128x32xf32>, vector<4x128x128xf32> -> vector<4x128x128xf32>
    %c128_i32 = arith.constant 128 : i32
    %12 = arith.muli %arg3, %c128_i32 : i32
    %13 = tpu.iota {dimensions = array<i32: 2>} : vector<1x1x128xi32>
    %14 = vector.broadcast %12 : i32 to vector<1x1x128xi32>
    %15 = arith.addi %14, %13 : vector<1x1x128xi32>
    %c8_i32 = arith.constant 8 : i32
    %16 = vector.broadcast %c8_i32 : i32 to vector<1x1x128xi32>
    %17 = arith.cmpi slt, %15, %16 : vector<1x1x128xi32>
    %cst_13 = arith.constant -1.000000e+30 : f32
    %18 = vector.shape_cast %17 : vector<1x1x128xi1> to vector<1x1x128xi1>
    %19 = vector.broadcast %18 : vector<1x1x128xi1> to vector<4x128x128xi1>
    %20 = vector.broadcast %cst_13 : f32 to vector<4x128x128xf32>
    %21 = arith.select %19, %11, %20 : vector<4x128x128xi1>, vector<4x128x128xf32>
    %c0_14 = arith.constant 0 : index
    %c0_15 = arith.constant 0 : index
    %c0_16 = arith.constant 0 : index
    %22 = vector.load %arg8[%c0_14, %c0_15, %c0_16] : memref<4x128x1xf32, #tpu.memory_space<vmem>>, vector<4x128x1xf32>
    %cst_17 = arith.constant dense<0xFF800000> : vector<4x128xf32>
    %23 = vector.multi_reduction <maximumf>, %21, %cst_17 [2] : vector<4x128x128xf32> to vector<4x128xf32>
    %24 = vector.shape_cast %23 : vector<4x128xf32> to vector<4x128x1xf32>
    %25 = arith.maximumf %22, %24 : vector<4x128x1xf32>
    %26 = arith.subf %22, %25 : vector<4x128x1xf32>
    %27 = math.exp2 %26 : vector<4x128x1xf32>
    %28 = vector.broadcast %25 : vector<4x128x1xf32> to vector<4x128x128xf32>
    %29 = arith.subf %21, %28 : vector<4x128x128xf32>
    %30 = math.exp2 %29 : vector<4x128x128xf32>
    %c0_18 = arith.constant 0 : index
    %c0_19 = arith.constant 0 : index
    %c0_20 = arith.constant 0 : index
    %31 = vector.load %arg9[%c0_18, %c0_19, %c0_20] : memref<4x128x1xf32, #tpu.memory_space<vmem>>, vector<4x128x1xf32>
    %32 = arith.mulf %27, %31 : vector<4x128x1xf32>
    %cst_21 = arith.constant dense<0.000000e+00> : vector<4x128xf32>
    %33 = vector.multi_reduction <add>, %30, %cst_21 [2] : vector<4x128x128xf32> to vector<4x128xf32>
    %34 = vector.shape_cast %33 : vector<4x128xf32> to vector<4x128x1xf32>
    %35 = arith.addf %32, %34 : vector<4x128x1xf32>
    %c0_22 = arith.constant 0 : index
    %c0_23 = arith.constant 0 : index
    %c0_24 = arith.constant 0 : index
    %36 = vector.load %arg9[%c0_22, %c0_23, %c0_24] : memref<4x128x1xf32, #tpu.memory_space<vmem>>, vector<4x128x1xf32>
    tpu.vector_store %arg9[%c0_22, %c0_23, %c0_24], %35 {strides = array<i32>} : memref<4x128x1xf32, #tpu.memory_space<vmem>>, vector<4x128x1xf32>,
    %cst_25 = arith.constant dense<0.000000e+00> : vector<4x128x32xf32>
    %37 = tpu.matmul %30, %8, %cst_25 {dimension_numbers = #tpu.dot_dimension_numbers<[2], [1], [1], [2], [0, 0, 0, 1, 1, 2], [0], [0]>} : vector<4x128x128xf32>, vector<4x128x32xf32>, vector<4x128x32xf32> -> vector<4x128x32xf32>
    %c0_26 = arith.constant 0 : index
    %c0_27 = arith.constant 0 : index
    %c0_28 = arith.constant 0 : index
    %38 = vector.load %arg10[%c0_26, %c0_27, %c0_28] : memref<4x128x32xf32, #tpu.memory_space<vmem>>, vector<4x128x32xf32>
    %39 = vector.broadcast %27 : vector<4x128x1xf32> to vector<4x128x32xf32>
    %40 = arith.mulf %39, %38 : vector<4x128x32xf32>
    %41 = arith.addf %40, %37 : vector<4x128x32xf32>
    %c0_29 = arith.constant 0 : index
    %c0_30 = arith.constant 0 : index
    %c0_31 = arith.constant 0 : index
    %42 = vector.load %arg10[%c0_29, %c0_30, %c0_31] : memref<4x128x32xf32, #tpu.memory_space<vmem>>, vector<4x128x32xf32>
    tpu.vector_store %arg10[%c0_29, %c0_30, %c0_31], %41 {strides = array<i32>} : memref<4x128x32xf32, #tpu.memory_space<vmem>>, vector<4x128x32xf32>,
    %c0_32 = arith.constant 0 : index
    %c0_33 = arith.constant 0 : index
    %c0_34 = arith.constant 0 : index
    %43 = vector.load %arg8[%c0_32, %c0_33, %c0_34] : memref<4x128x1xf32, #tpu.memory_space<vmem>>, vector<4x128x1xf32>
    tpu.vector_store %arg8[%c0_32, %c0_33, %c0_34], %25 {strides = array<i32>} : memref<4x128x1xf32, #tpu.memory_space<vmem>>, vector<4x128x1xf32>,
    %c0_i32_35 = arith.constant 0 : i32
    %44 = arith.cmpi eq, %arg3, %c0_i32_35 : i32
    %45 = arith.extui %44 : i1 to i32
    %c0_i32_36 = arith.constant 0 : i32
    %46 = arith.cmpi ne, %45, %c0_i32_36 : i32
    scf.if %46 {
      %c0_37 = arith.constant 0 : index
      %c0_38 = arith.constant 0 : index
      %c0_39 = arith.constant 0 : index
      %47 = vector.load %arg9[%c0_37, %c0_38, %c0_39] : memref<4x128x1xf32, #tpu.memory_space<vmem>>, vector<4x128x1xf32>
      %48 = tpu.reciprocal %47 {approx = true} : vector<4x128x1xf32> -> vector<4x128x1xf32>
      %49 = arith.mulf %47, %48 : vector<4x128x1xf32>
      %cst_40 = arith.constant 2.000000e+00 : f32
      %50 = vector.broadcast %cst_40 : f32 to vector<4x128x1xf32>
      %51 = arith.subf %50, %49 : vector<4x128x1xf32>
      %52 = arith.mulf %48, %51 : vector<4x128x1xf32>
      %c0_41 = arith.constant 0 : index
      %c0_42 = arith.constant 0 : index
      %c0_43 = arith.constant 0 : index
      %53 = vector.load %arg10[%c0_41, %c0_42, %c0_43] : memref<4x128x32xf32, #tpu.memory_space<vmem>>, vector<4x128x32xf32>
      %54 = vector.broadcast %52 : vector<4x128x1xf32> to vector<4x128x32xf32>
      %55 = arith.mulf %53, %54 : vector<4x128x32xf32>
      %c0_44 = arith.constant 0 : index
      %c0_45 = arith.constant 0 : index
      %c0_46 = arith.constant 0 : index
      %c0_47 = arith.constant 0 : index
      %56 = vector.load %arg7[%c0_44, %c0_45, %c0_46, %c0_47] : memref<1x4x128x32xf32, #tpu.memory_space<vmem>>, vector<1x4x128x32xf32>
      %57 = vector.shape_cast %56 : vector<1x4x128x32xf32> to vector<4x128x32xf32>
      %58 = vector.shape_cast %55 : vector<4x128x32xf32> to vector<1x4x128x32xf32>
      tpu.vector_store %arg7[%c0_44, %c0_45, %c0_46, %c0_47], %58 {strides = array<i32>} : memref<1x4x128x32xf32, #tpu.memory_space<vmem>>, vector<1x4x128x32xf32>,
    } else {
    }
    return
  }
  func.func @transform_0(%arg0: i32, %arg1: i32, %arg2: i32, %arg3: i32) -> (i32, i32, i32, i32) {
    %c0_i32 = arith.constant 0 : i32
    %c0_i32_0 = arith.constant 0 : i32
    return %arg0, %arg1, %arg2, %c0_i32 : i32, i32, i32, i32
  }
  func.func @transform_1(%arg0: i32, %arg1: i32, %arg2: i32, %arg3: i32) -> (i32, i32, i32, i32) {
    %c0_i32 = arith.constant 0 : i32
    %c0_i32_0 = arith.constant 0 : i32
    return %arg0, %arg1, %arg3, %c0_i32 : i32, i32, i32, i32
  }
  func.func @transform_2(%arg0: i32, %arg1: i32, %arg2: i32, %arg3: i32) -> (i32, i32, i32, i32) {
    %c0_i32 = arith.constant 0 : i32
    %c0_i32_0 = arith.constant 0 : i32
    return %arg0, %arg1, %arg3, %c0_i32 : i32, i32, i32, i32
  }
  func.func @transform_3(%arg0: i32, %arg1: i32, %arg2: i32, %arg3: i32) -> (i32, i32, i32, i32) {
    %c0_i32 = arith.constant 0 : i32
    %c0_i32_0 = arith.constant 0 : i32
    return %arg0, %arg1, %arg2, %c0_i32 : i32, i32, i32, i32
  }
}

</mosaic_0001>

<llo_original>
// kernel: tpu_custom_call.1
$region0: #{tpu_custom_call.1}
  #allocation0 [shape = 'u32[]', space=smem, size = 0x4, offset = 0x4, fixed_abs, tag = 'smem constant byte address 0x4 - core index']
  #allocation1 [shape = 'u32[144,128]{1,0:T(1,128)}', space=vmem, size = 0x12000, scoped, tag = 'internal scratch']
  #allocation2 [shape = 'f32[4,128,1]{2,1,0:T(8,128)}', space=vmem, size = 0x40000, scoped, tag = 'scratch operand']
  #allocation3 [shape = 'f32[4,128,1]{2,1,0:T(8,128)}', space=vmem, size = 0x40000, scoped, tag = 'scratch operand']
  #allocation4 [shape = 'f32[4,128,32]{2,1,0:T(8,128)}', space=vmem, size = 0x40000, scoped, tag = 'scratch operand']
  %s0 = inlined_call_operand.vmem [shape: f32[2,4,128,32], index: 0, kind: input, shape index: {}]
  %s1 = inlined_call_operand.vmem [shape: f32[2,4,128,32], index: 1, kind: input, shape index: {}]
  %s2 = inlined_call_operand.vmem [shape: f32[2,4,128,32], index: 2, kind: input, shape index: {}]
  %s3 = inlined_call_operand.vmem [shape: f32[2,4,128,32], index: 3, kind: output, shape index: {}]
  %s4 = sld [smem:[#allocation0]]
  $region53: #{tpu_custom_call.1} parent=0
    _
  %s6 = ssub.s32 1, %s4
  %s7 = scalar_select 0, %s6, %s4
  loop: start=0, step=1, limit=4
  $region2: #{tpu_custom_call.1} parent=0 // loop_pre_header
    _
  $region3: #{tpu_custom_call.1} parent=0 // loop_header
    %s9 = sphi 0, %s13
    %p10 = scmp.ge.s32.totalorder %s9, 4
    %s16 = sphi 0, %s42
    %s17 = sphi 0, %s38
    %s18 = sphi 0, %s34
    %s19 = sphi 0, %s30
    %s20 = sphi 0, %s16
    %s21 = sphi 0, %s17
    %s22 = sphi 0, %s18
    %s23 = sphi 0, %s19
    %s24 = sphi 0, %s20
    %s25 = sphi 0, %s21
    %s26 = sphi 0, %s22
    %s27 = sphi 0, %s23
    %s49 = sphi 0, %s51
    %s52 = sphi 0, %s49
    %s53 = sphi 0, %s52
    %s69 = sphi 0, %s53
    %s79 = sphi 0, %s81
    %s82 = sphi 0, %s79
    %s83 = sphi 0, %s82
    %s99 = sphi 0, %s83
    %s109 = sphi 0, %s111
    %s112 = sphi 0, %s109
    %s113 = sphi 0, %s112
    %s129 = sphi 0, %s113
    %s139 = sphi 0, %s141
    %s142 = sphi 0, %s139
    %s143 = sphi 0, %s142
    %s159 = sphi 0, %s143
  $region4: #{tpu_custom_call.1} parent=0 // loop_header_branch
    %12 = sbr.rel (%p10) target = $region8
  $region5: #{tpu_custom_call.1} parent=0 // loop_body
    %s14 = ssub.s32 %s9, 1
    %s15 = ssub.s32 %s9, 2
    %s28 = sadd.s32 1, %s19
    %p29 = scmp.ge.s32.totalorder %s28, 1
    %s30 = scalar_select %p29, 0, %s28
    %s31 = sadd.s32 1, %s18
    %s32 = scalar_select %p29, %s31, %s18
    %p33 = scmp.ge.s32.totalorder %s32, 1
    %s34 = scalar_select %p33, 0, %s32
    %s35 = sadd.s32 1, %s17
    %s36 = scalar_select %p33, %s35, %s17
    %p37 = scmp.ge.s32.totalorder %s36, 1
    %s38 = scalar_select %p37, 0, %s36
    %s39 = sadd.s32 1, %s16
    %s40 = scalar_select %p37, %s39, %s16
    %p41 = scmp.ge.s32.totalorder %s40, 2
    %s42 = scalar_select %p41, 0, %s40
    %s43 = ssub.s32 %s16, %s42
    %s44 = ssub.s32 %s17, %s38
    %s45 = sor.u32 %s43, %s44
    %s46 = ssub.s32 %s18, %s34
    %s47 = sor.u32 %s45, %s46
    %p48 = scmp.eq.s32.totalorder %s47, 0
    %s50 = sadd.s32 %s49, 1
    %s51 = scalar_select %p48, %s49, %s50
    %p54 = pneg %p48
    %p55 = scmp.eq.s32.totalorder %s9, 1
    %p56 = por %p54, %p55
    %p57 = scmp.ne.s32.totalorder %s49, %s52
    %p58 = scmp.eq.s32.totalorder %s9, 0
    %p59 = por %p57, %p58
    %p60 = scmp.ne.s32.totalorder %s49, %s52
    %p61 = scmp.eq.s32.totalorder %s14, 1
    %p62 = por %p60, %p61
    %p63 = scmp.ne.s32.totalorder %s52, %s53
    %p64 = scmp.eq.s32.totalorder %s14, 0
    %p65 = por %p63, %p64
    %p66 = scmp.ne.s32.totalorder %s52, %s53
    %p67 = scmp.eq.s32.totalorder %s15, 1
    %p68 = por %p66, %p67
    %p70 = scmp.ne.s32.totalorder %s53, %s69
    %p71 = scmp.eq.s32.totalorder %s15, 0
    %p72 = por %p70, %p71
    %s73 = ssub.s32 %s16, %s42
    %s74 = ssub.s32 %s17, %s38
    %s75 = sor.u32 %s73, %s74
    %s76 = ssub.s32 %s19, %s30
    %s77 = sor.u32 %s75, %s76
    %p78 = scmp.eq.s32.totalorder %s77, 0
    %s80 = sadd.s32 %s79, 1
    %s81 = scalar_select %p78, %s79, %s80
    %p84 = pneg %p78
    %p85 = scmp.eq.s32.totalorder %s9, 1
    %p86 = por %p84, %p85
    %p87 = scmp.ne.s32.totalorder %s79, %s82
    %p88 = scmp.eq.s32.totalorder %s9, 0
    %p89 = por %p87, %p88
    %p90 = scmp.ne.s32.totalorder %s79, %s82
    %p91 = scmp.eq.s32.totalorder %s14, 1
    %p92 = por %p90, %p91
    %p93 = scmp.ne.s32.totalorder %s82, %s83
    %p94 = scmp.eq.s32.totalorder %s14, 0
    %p95 = por %p93, %p94
    %p96 = scmp.ne.s32.totalorder %s82, %s83
    %p97 = scmp.eq.s32.totalorder %s15, 1
    %p98 = por %p96, %p97
    %p100 = scmp.ne.s32.totalorder %s83, %s99
    %p101 = scmp.eq.s32.totalorder %s15, 0
    %p102 = por %p100, %p101
    %s103 = ssub.s32 %s16, %s42
    %s104 = ssub.s32 %s17, %s38
    %s105 = sor.u32 %s103, %s104
    %s106 = ssub.s32 %s19, %s30
    %s107 = sor.u32 %s105, %s106
    %p108 = scmp.eq.s32.totalorder %s107, 0
    %s110 = sadd.s32 %s109, 1
    %s111 = scalar_select %p108, %s109, %s110
    %p114 = pneg %p108
    %p115 = scmp.eq.s32.totalorder %s9, 1
    %p116 = por %p114, %p115
    %p117 = scmp.ne.s32.totalorder %s109, %s112
    %p118 = scmp.eq.s32.totalorder %s9, 0
    %p119 = por %p117, %p118
    %p120 = scmp.ne.s32.totalorder %s109, %s112
    %p121 = scmp.eq.s32.totalorder %s14, 1
    %p122 = por %p120, %p121
    %p123 = scmp.ne.s32.totalorder %s112, %s113
    %p124 = scmp.eq.s32.totalorder %s14, 0
    %p125 = por %p123, %p124
    %p126 = scmp.ne.s32.totalorder %s112, %s113
    %p127 = scmp.eq.s32.totalorder %s15, 1
    %p128 = por %p126, %p127
    %p130 = scmp.ne.s32.totalorder %s113, %s129
    %p131 = scmp.eq.s32.totalorder %s15, 0
    %p132 = por %p130, %p131
    %s133 = ssub.s32 %s16, %s42
    %s134 = ssub.s32 %s17, %s38
    %s135 = sor.u32 %s133, %s134
    %s136 = ssub.s32 %s18, %s34
    %s137 = sor.u32 %s135, %s136
    %p138 = scmp.eq.s32.totalorder %s137, 0
    %s140 = sadd.s32 %s139, 1
    %s141 = scalar_select %p138, %s139, %s140
    %p144 = pneg %p138
    %p145 = scmp.eq.s32.totalorder %s9, 1
    %p146 = por %p144, %p145
    %p147 = scmp.ne.s32.totalorder %s139, %s142
    %p148 = scmp.eq.s32.totalorder %s9, 0
    %p149 = por %p147, %p148
    %p150 = scmp.ne.s32.totalorder %s139, %s142
    %p151 = scmp.eq.s32.totalorder %s14, 1
    %p152 = por %p150, %p151
    %p153 = scmp.ne.s32.totalorder %s142, %s143
    %p154 = scmp.eq.s32.totalorder %s14, 0
    %p155 = por %p153, %p154
    %p156 = scmp.ne.s32.totalorder %s142, %s143
    %p157 = scmp.eq.s32.totalorder %s15, 1
    %p158 = por %p156, %p157
    %p160 = scmp.ne.s32.totalorder %s143, %s159
    %p161 = scmp.eq.s32.totalorder %s15, 0
    %p162 = por %p160, %p161
    %p163 = scmp.le.s32.totalorder 1, %s9
    %p164 = scmp.lt.s32.totalorder %s9, 3
    %p165 = pnand %p163, %p164
    %p166 = pneg %p165
    // Predicated region
    $region9: #{tpu_custom_call.1} parent=5 // pred_check
      _
    $region10: #{tpu_custom_call.1} parent=5 // pred_check_branch
      %168 = sbr.rel (%p165) target = $region12
    $region11: #{tpu_custom_call.1} parent=5 // pred_region
      %s169 = ssub.s32 %s9, 1
    $region12: #{tpu_custom_call.1} parent=5 // pred_fallthru
      _
    %p170 = scmp.lt.s32.totalorder %s9, 2
    // Predicated region
    $region13: #{tpu_custom_call.1} parent=5 // pred_check
      %p171 = pneg %p170
    $region14: #{tpu_custom_call.1} parent=5 // pred_check_branch
      %173 = sbr.rel (%p171) target = $region16
    $region15: #{tpu_custom_call.1} parent=5 // pred_region
      // Predicated region
      $region17: #{tpu_custom_call.1} parent=15 // pred_check
        %p174 = pneg %p59
      $region18: #{tpu_custom_call.1} parent=15 // pred_check_branch
        %176 = sbr.rel (%p174) target = $region20
      $region19: #{tpu_custom_call.1} parent=15 // pred_region
        %s177 = smul.u32 4, %s17
        %s178 = smul.u32 16, %s18
        %p179 = scmp.lt.s32.totalorder %s16, 1
        %s180 = scalar_select %p179, %s16, 1
        %p181 = scmp.lt.s32.totalorder %s177, 3
        %s182 = scalar_select %p181, %s177, 3
        %p183 = scmp.lt.s32.totalorder %s178, 15
        %s184 = scalar_select %p183, %s178, 15
        %s185 = smul.addr %s182, 16
        %s186 = sadd.s32 %s184, %s185
        %s187 = smul.addr %s180, 64
        %s188 = sadd.s32 %s186, %s187
        %s189 = smul.addr %s188, 8
        %s190 = scalar_lea.vmem %s0, %s189
        %s191 = smul.u32 4, %s17
        %s192 = smul.u32 16, %s18
      $region20: #{tpu_custom_call.1} parent=15 // pred_fallthru
        _
      // Predicated region
      $region21: #{tpu_custom_call.1} parent=15 // pred_check
        %p193 = pneg %p89
      $region22: #{tpu_custom_call.1} parent=15 // pred_check_branch
        %195 = sbr.rel (%p193) target = $region24
      $region23: #{tpu_custom_call.1} parent=15 // pred_region
        %s196 = smul.u32 4, %s17
        %s197 = smul.u32 16, %s19
        %p198 = scmp.lt.s32.totalorder %s16, 1
        %s199 = scalar_select %p198, %s16, 1
        %p200 = scmp.lt.s32.totalorder %s196, 3
        %s201 = scalar_select %p200, %s196, 3
        %p202 = scmp.lt.s32.totalorder %s197, 15
        %s203 = scalar_select %p202, %s197, 15
        %s204 = smul.addr %s201, 16
        %s205 = sadd.s32 %s203, %s204
        %s206 = smul.addr %s199, 64
        %s207 = sadd.s32 %s205, %s206
        %s208 = smul.addr %s207, 8
        %s209 = scalar_lea.vmem %s1, %s208
        %s210 = smul.u32 4, %s17
        %s211 = smul.u32 16, %s19
      $region24: #{tpu_custom_call.1} parent=15 // pred_fallthru
        _
      // Predicated region
      $region25: #{tpu_custom_call.1} parent=15 // pred_check
        %p212 = pneg %p119
      $region26: #{tpu_custom_call.1} parent=15 // pred_check_branch
        %214 = sbr.rel (%p212) target = $region28
      $region27: #{tpu_custom_call.1} parent=15 // pred_region
        %s215 = smul.u32 4, %s17
        %s216 = smul.u32 16, %s19
        %p217 = scmp.lt.s32.totalorder %s16, 1
        %s218 = scalar_select %p217, %s16, 1
        %p219 = scmp.lt.s32.totalorder %s215, 3
        %s220 = scalar_select %p219, %s215, 3
        %p221 = scmp.lt.s32.totalorder %s216, 15
        %s222 = scalar_select %p221, %s216, 15
        %s223 = smul.addr %s220, 16
        %s224 = sadd.s32 %s222, %s223
        %s225 = smul.addr %s218, 64
        %s226 = sadd.s32 %s224, %s225
        %s227 = smul.addr %s226, 8
        %s228 = scalar_lea.vmem %s2, %s227
        %s229 = smul.u32 4, %s17
        %s230 = smul.u32 16, %s19
      $region28: #{tpu_custom_call.1} parent=15 // pred_fallthru
        _
    $region16: #{tpu_custom_call.1} parent=5 // pred_fallthru
      _
    %p231 = scmp.le.s32.totalorder 1, %s9
    %p232 = scmp.lt.s32.totalorder %s9, 3
    %p233 = pnand %p231, %p232
    %p234 = pneg %p233
    // Predicated region
    $region29: #{tpu_custom_call.1} parent=5 // pred_check
      _
    $region30: #{tpu_custom_call.1} parent=5 // pred_check_branch
      %236 = sbr.rel (%p233) target = $region32
    $region31: #{tpu_custom_call.1} parent=5 // pred_region
      %s237 = ssub.s32 %s9, 1
      %s238 = smul.u32 4, %s21
      %s239 = smul.u32 16, %s22
      %p240 = scmp.lt.s32.totalorder %s20, 1
      %s241 = scalar_select %p240, %s20, 1
      %p242 = scmp.lt.s32.totalorder %s238, 3
      %s243 = scalar_select %p242, %s238, 3
      %p244 = scmp.lt.s32.totalorder %s239, 15
      %s245 = scalar_select %p244, %s239, 15
      %s246 = smul.addr %s243, 16
      %s247 = sadd.s32 %s245, %s246
      %s248 = smul.addr %s241, 64
      %s249 = sadd.s32 %s247, %s248
      %s250 = smul.addr %s249, 8
      %s251 = scalar_lea.vmem %s0, %s250
      %p252 = pneg %p65
      %p253 = pneg %p62
      %s254 = smul.u32 4, %s21
      %s255 = smul.u32 16, %s23
      %p256 = scmp.lt.s32.totalorder %s20, 1
      %s257 = scalar_select %p256, %s20, 1
      %p258 = scmp.lt.s32.totalorder %s254, 3
      %s259 = scalar_select %p258, %s254, 3
      %p260 = scmp.lt.s32.totalorder %s255, 15
      %s261 = scalar_select %p260, %s255, 15
      %s262 = smul.addr %s259, 16
      %s263 = sadd.s32 %s261, %s262
      %s264 = smul.addr %s257, 64
      %s265 = sadd.s32 %s263, %s264
      %s266 = smul.addr %s265, 8
      %s267 = scalar_lea.vmem %s1, %s266
      %p268 = pneg %p95
      %p269 = pneg %p92
      %s270 = smul.u32 4, %s21
      %s271 = smul.u32 16, %s23
      %p272 = scmp.lt.s32.totalorder %s20, 1
      %s273 = scalar_select %p272, %s20, 1
      %p274 = scmp.lt.s32.totalorder %s270, 3
      %s275 = scalar_select %p274, %s270, 3
      %p276 = scmp.lt.s32.totalorder %s271, 15
      %s277 = scalar_select %p276, %s271, 15
      %s278 = smul.addr %s275, 16
      %s279 = sadd.s32 %s277, %s278
      %s280 = smul.addr %s273, 64
      %s281 = sadd.s32 %s279, %s280
      %s282 = smul.addr %s281, 8
      %s283 = scalar_lea.vmem %s2, %s282
      %p284 = pneg %p125
      %p285 = pneg %p122
      %p286 = pneg %p155
      %p287 = pneg %p152
      %s288 = smul.u32 4, %s21
      %s289 = smul.u32 16, %s22
      %p290 = scmp.lt.s32.totalorder %s20, 1
      %s291 = scalar_select %p290, %s20, 1
      %p292 = scmp.lt.s32.totalorder %s288, 3
      %s293 = scalar_select %p292, %s288, 3
      %p294 = scmp.lt.s32.totalorder %s289, 15
      %s295 = scalar_select %p294, %s289, 15
      %s296 = smul.addr %s293, 16
      %s297 = sadd.s32 %s295, %s296
      %s298 = smul.addr %s291, 64
      %s299 = sadd.s32 %s297, %s298
      %s300 = smul.addr %s299, 8
      %s301 = scalar_lea.vmem %s3, %s300
      %s302 = smul.u32 4, %s21
      %s303 = smul.u32 16, %s22
      %p304 = scmp.lt.s32.totalorder %s20, 1
      %s305 = scalar_select %p304, %s20, 1
      %p306 = scmp.lt.s32.totalorder %s302, 3
      %s307 = scalar_select %p306, %s302, 3
      %p308 = scmp.lt.s32.totalorder %s303, 15
      %s309 = scalar_select %p308, %s303, 15
      %s310 = smul.addr %s307, 16
      %s311 = sadd.s32 %s309, %s310
      %s312 = smul.addr %s305, 64
      %s313 = sadd.s32 %s311, %s312
      %s314 = smul.addr %s313, 8
      %s315 = scalar_lea.vmem %s0, %s314
      %s316 = smul.u32 4, %s21
      %s317 = smul.u32 16, %s22
      %s318 = smul.u32 4, %s21
      %s319 = smul.u32 16, %s23
      %p320 = scmp.lt.s32.totalorder %s20, 1
      %s321 = scalar_select %p320, %s20, 1
      %p322 = scmp.lt.s32.totalorder %s318, 3
      %s323 = scalar_select %p322, %s318, 3
      %p324 = scmp.lt.s32.totalorder %s319, 15
      %s325 = scalar_select %p324, %s319, 15
      %s326 = smul.addr %s323, 16
      %s327 = sadd.s32 %s325, %s326
      %s328 = smul.addr %s321, 64
      %s329 = sadd.s32 %s327, %s328
      %s330 = smul.addr %s329, 8
      %s331 = scalar_lea.vmem %s1, %s330
      %s332 = smul.u32 4, %s21
      %s333 = smul.u32 16, %s23
      %s334 = smul.u32 4, %s21
      %s335 = smul.u32 16, %s23
      %p336 = scmp.lt.s32.totalorder %s20, 1
      %s337 = scalar_select %p336, %s20, 1
      %p338 = scmp.lt.s32.totalorder %s334, 3
      %s339 = scalar_select %p338, %s334, 3
      %p340 = scmp.lt.s32.totalorder %s335, 15
      %s341 = scalar_select %p340, %s335, 15
      %s342 = smul.addr %s339, 16
      %s343 = sadd.s32 %s341, %s342
      %s344 = smul.addr %s337, 64
      %s345 = sadd.s32 %s343, %s344
      %s346 = smul.addr %s345, 8
      %s347 = scalar_lea.vmem %s2, %s346
      %s348 = smul.u32 4, %s21
      %s349 = smul.u32 16, %s23
      %s350 = smul.u32 4, %s21
      %s351 = smul.u32 16, %s22
      %p352 = scmp.lt.s32.totalorder %s20, 1
      %s353 = scalar_select %p352, %s20, 1
      %p354 = scmp.lt.s32.totalorder %s350, 3
      %s355 = scalar_select %p354, %s350, 3
      %p356 = scmp.lt.s32.totalorder %s351, 15
      %s357 = scalar_select %p356, %s351, 15
      %s358 = smul.addr %s355, 16
      %s359 = sadd.s32 %s357, %s358
      %s360 = smul.addr %s353, 64
      %s361 = sadd.s32 %s359, %s360
      %s362 = smul.addr %s361, 8
      %s363 = scalar_lea.vmem %s3, %s362
      %s364 = smul.u32 4, %s21
      %s365 = smul.u32 16, %s22
      %p366 = scmp.eq.s32.totalorder %s23, 0
      // Predicated region
      $region33: #{tpu_custom_call.1} parent=31 // pred_check
        %p367 = pneg %p366
      $region34: #{tpu_custom_call.1} parent=31 // pred_check_branch
        %369 = sbr.rel (%p367) target = $region36
      $region35: #{tpu_custom_call.1} parent=31 // pred_region
        %vm370 = vcmask 7168
        %371 = vst.msk [vmem:[#allocation2] sm:$0xff] %vm370, -inf
        %372 = vst.msk [vmem:[#allocation2 + $0x8] sm:$0xff] %vm370, -inf
        %373 = vst.msk [vmem:[#allocation2 + $0x10] sm:$0xff] %vm370, -inf
        %374 = vst.msk [vmem:[#allocation2 + $0x18] sm:$0xff] %vm370, -inf
        %375 = vst.msk [vmem:[#allocation2 + $0x20] sm:$0xff] %vm370, -inf
        %376 = vst.msk [vmem:[#allocation2 + $0x28] sm:$0xff] %vm370, -inf
        %377 = vst.msk [vmem:[#allocation2 + $0x30] sm:$0xff] %vm370, -inf
        %378 = vst.msk [vmem:[#allocation2 + $0x38] sm:$0xff] %vm370, -inf
        %379 = vst.msk [vmem:[#allocation2 + $0x40] sm:$0xff] %vm370, -inf
        %380 = vst.msk [vmem:[#allocation2 + $0x48] sm:$0xff] %vm370, -inf
        %381 = vst.msk [vmem:[#allocation2 + $0x50] sm:$0xff] %vm370, -inf
        %382 = vst.msk [vmem:[#allocation2 + $0x58] sm:$0xff] %vm370, -inf
        %383 = vst.msk [vmem:[#allocation2 + $0x60] sm:$0xff] %vm370, -inf
        %384 = vst.msk [vmem:[#allocation2 + $0x68] sm:$0xff] %vm370, -inf
        %385 = vst.msk [vmem:[#allocation2 + $0x70] sm:$0xff] %vm370, -inf
        %386 = vst.msk [vmem:[#allocation2 + $0x78] sm:$0xff] %vm370, -inf
        %387 = vst.msk [vmem:[#allocation2 + $0x80] sm:$0xff] %vm370, -inf
        %388 = vst.msk [vmem:[#allocation2 + $0x88] sm:$0xff] %vm370, -inf
        %389 = vst.msk [vmem:[#allocation2 + $0x90] sm:$0xff] %vm370, -inf
        %390 = vst.msk [vmem:[#allocation2 + $0x98] sm:$0xff] %vm370, -inf
        %391 = vst.msk [vmem:[#allocation2 + $0xa0] sm:$0xff] %vm370, -inf
        %392 = vst.msk [vmem:[#allocation2 + $0xa8] sm:$0xff] %vm370, -inf
        %393 = vst.msk [vmem:[#allocation2 + $0xb0] sm:$0xff] %vm370, -inf
        %394 = vst.msk [vmem:[#allocation2 + $0xb8] sm:$0xff] %vm370, -inf
        %395 = vst.msk [vmem:[#allocation2 + $0xc0] sm:$0xff] %vm370, -inf
        %396 = vst.msk [vmem:[#allocation2 + $0xc8] sm:$0xff] %vm370, -inf
        %397 = vst.msk [vmem:[#allocation2 + $0xd0] sm:$0xff] %vm370, -inf
        %398 = vst.msk [vmem:[#allocation2 + $0xd8] sm:$0xff] %vm370, -inf
        %399 = vst.msk [vmem:[#allocation2 + $0xe0] sm:$0xff] %vm370, -inf
        %400 = vst.msk [vmem:[#allocation2 + $0xe8] sm:$0xff] %vm370, -inf
        %401 = vst.msk [vmem:[#allocation2 + $0xf0] sm:$0xff] %vm370, -inf
        %402 = vst.msk [vmem:[#allocation2 + $0xf8] sm:$0xff] %vm370, -inf
        %403 = vst.msk [vmem:[#allocation2 + $0x100] sm:$0xff] %vm370, -inf
        %404 = vst.msk [vmem:[#allocation2 + $0x108] sm:$0xff] %vm370, -inf
        %405 = vst.msk [vmem:[#allocation2 + $0x110] sm:$0xff] %vm370, -inf
        %406 = vst.msk [vmem:[#allocation2 + $0x118] sm:$0xff] %vm370, -inf
        %407 = vst.msk [vmem:[#allocation2 + $0x120] sm:$0xff] %vm370, -inf
        %408 = vst.msk [vmem:[#allocation2 + $0x128] sm:$0xff] %vm370, -inf
        %409 = vst.msk [vmem:[#allocation2 + $0x130] sm:$0xff] %vm370, -inf
        %410 = vst.msk [vmem:[#allocation2 + $0x138] sm:$0xff] %vm370, -inf
        %411 = vst.msk [vmem:[#allocation2 + $0x140] sm:$0xff] %vm370, -inf
        %412 = vst.msk [vmem:[#allocation2 + $0x148] sm:$0xff] %vm370, -inf
        %413 = vst.msk [vmem:[#allocation2 + $0x150] sm:$0xff] %vm370, -inf
        %414 = vst.msk [vmem:[#allocation2 + $0x158] sm:$0xff] %vm370, -inf
        %415 = vst.msk [vmem:[#allocation2 + $0x160] sm:$0xff] %vm370, -inf
        %416 = vst.msk [vmem:[#allocation2 + $0x168] sm:$0xff] %vm370, -inf
        %417 = vst.msk [vmem:[#allocation2 + $0x170] sm:$0xff] %vm370, -inf
        %418 = vst.msk [vmem:[#allocation2 + $0x178] sm:$0xff] %vm370, -inf
        %419 = vst.msk [vmem:[#allocation2 + $0x180] sm:$0xff] %vm370, -inf
        %420 = vst.msk [vmem:[#allocation2 + $0x188] sm:$0xff] %vm370, -inf
        %421 = vst.msk [vmem:[#allocation2 + $0x190] sm:$0xff] %vm370, -inf
        %422 = vst.msk [vmem:[#allocation2 + $0x198] sm:$0xff] %vm370, -inf
        %423 = vst.msk [vmem:[#allocation2 + $0x1a0] sm:$0xff] %vm370, -inf
        %424 = vst.msk [vmem:[#allocation2 + $0x1a8] sm:$0xff] %vm370, -inf
        %425 = vst.msk [vmem:[#allocation2 + $0x1b0] sm:$0xff] %vm370, -inf
        %426 = vst.msk [vmem:[#allocation2 + $0x1b8] sm:$0xff] %vm370, -inf
        %427 = vst.msk [vmem:[#allocation2 + $0x1c0] sm:$0xff] %vm370, -inf
        %428 = vst.msk [vmem:[#allocation2 + $0x1c8] sm:$0xff] %vm370, -inf
        %429 = vst.msk [vmem:[#allocation2 + $0x1d0] sm:$0xff] %vm370, -inf
        %430 = vst.msk [vmem:[#allocation2 + $0x1d8] sm:$0xff] %vm370, -inf
        %431 = vst.msk [vmem:[#allocation2 + $0x1e0] sm:$0xff] %vm370, -inf
        %432 = vst.msk [vmem:[#allocation2 + $0x1e8] sm:$0xff] %vm370, -inf
        %433 = vst.msk [vmem:[#allocation2 + $0x1f0] sm:$0xff] %vm370, -inf
        %434 = vst.msk [vmem:[#allocation2 + $0x1f8] sm:$0xff] %vm370, -inf
        %435 = vst.msk [vmem:[#allocation3] sm:$0xff] %vm370, 0.0
        %436 = vst.msk [vmem:[#allocation3 + $0x8] sm:$0xff] %vm370, 0.0
        %437 = vst.msk [vmem:[#allocation3 + $0x10] sm:$0xff] %vm370, 0.0
        %438 = vst.msk [vmem:[#allocation3 + $0x18] sm:$0xff] %vm370, 0.0
        %439 = vst.msk [vmem:[#allocation3 + $0x20] sm:$0xff] %vm370, 0.0
        %440 = vst.msk [vmem:[#allocation3 + $0x28] sm:$0xff] %vm370, 0.0
        %441 = vst.msk [vmem:[#allocation3 + $0x30] sm:$0xff] %vm370, 0.0
        %442 = vst.msk [vmem:[#allocation3 + $0x38] sm:$0xff] %vm370, 0.0
        %443 = vst.msk [vmem:[#allocation3 + $0x40] sm:$0xff] %vm370, 0.0
        %444 = vst.msk [vmem:[#allocation3 + $0x48] sm:$0xff] %vm370, 0.0
        %445 = vst.msk [vmem:[#allocation3 + $0x50] sm:$0xff] %vm370, 0.0
        %446 = vst.msk [vmem:[#allocation3 + $0x58] sm:$0xff] %vm370, 0.0
        %447 = vst.msk [vmem:[#allocation3 + $0x60] sm:$0xff] %vm370, 0.0
        %448 = vst.msk [vmem:[#allocation3 + $0x68] sm:$0xff] %vm370, 0.0
        %449 = vst.msk [vmem:[#allocation3 + $0x70] sm:$0xff] %vm370, 0.0
        %450 = vst.msk [vmem:[#allocation3 + $0x78] sm:$0xff] %vm370, 0.0
        %451 = vst.msk [vmem:[#allocation3 + $0x80] sm:$0xff] %vm370, 0.0
        %452 = vst.msk [vmem:[#allocation3 + $0x88] sm:$0xff] %vm370, 0.0
        %453 = vst.msk [vmem:[#allocation3 + $0x90] sm:$0xff] %vm370, 0.0
        %454 = vst.msk [vmem:[#allocation3 + $0x98] sm:$0xff] %vm370, 0.0
        %455 = vst.msk [vmem:[#allocation3 + $0xa0] sm:$0xff] %vm370, 0.0
        %456 = vst.msk [vmem:[#allocation3 + $0xa8] sm:$0xff] %vm370, 0.0
        %457 = vst.msk [vmem:[#allocation3 + $0xb0] sm:$0xff] %vm370, 0.0
        %458 = vst.msk [vmem:[#allocation3 + $0xb8] sm:$0xff] %vm370, 0.0
        %459 = vst.msk [vmem:[#allocation3 + $0xc0] sm:$0xff] %vm370, 0.0
        %460 = vst.msk [vmem:[#allocation3 + $0xc8] sm:$0xff] %vm370, 0.0
        %461 = vst.msk [vmem:[#allocation3 + $0xd0] sm:$0xff] %vm370, 0.0
        %462 = vst.msk [vmem:[#allocation3 + $0xd8] sm:$0xff] %vm370, 0.0
        %463 = vst.msk [vmem:[#allocation3 + $0xe0] sm:$0xff] %vm370, 0.0
        %464 = vst.msk [vmem:[#allocation3 + $0xe8] sm:$0xff] %vm370, 0.0
        %465 = vst.msk [vmem:[#allocation3 + $0xf0] sm:$0xff] %vm370, 0.0
        %466 = vst.msk [vmem:[#allocation3 + $0xf8] sm:$0xff] %vm370, 0.0
        %467 = vst.msk [vmem:[#allocation3 + $0x100] sm:$0xff] %vm370, 0.0
        %468 = vst.msk [vmem:[#allocation3 + $0x108] sm:$0xff] %vm370, 0.0
        %469 = vst.msk [vmem:[#allocation3 + $0x110] sm:$0xff] %vm370, 0.0
        %470 = vst.msk [vmem:[#allocation3 + $0x118] sm:$0xff] %vm370, 0.0
        %471 = vst.msk [vmem:[#allocation3 + $0x120] sm:$0xff] %vm370, 0.0
        %472 = vst.msk [vmem:[#allocation3 + $0x128] sm:$0xff] %vm370, 0.0
        %473 = vst.msk [vmem:[#allocation3 + $0x130] sm:$0xff] %vm370, 0.0
        %474 = vst.msk [vmem:[#allocation3 + $0x138] sm:$0xff] %vm370, 0.0
        %475 = vst.msk [vmem:[#allocation3 + $0x140] sm:$0xff] %vm370, 0.0
        %476 = vst.msk [vmem:[#allocation3 + $0x148] sm:$0xff] %vm370, 0.0
        %477 = vst.msk [vmem:[#allocation3 + $0x150] sm:$0xff] %vm370, 0.0
        %478 = vst.msk [vmem:[#allocation3 + $0x158] sm:$0xff] %vm370, 0.0
        %479 = vst.msk [vmem:[#allocation3 + $0x160] sm:$0xff] %vm370, 0.0
        %480 = vst.msk [vmem:[#allocation3 + $0x168] sm:$0xff] %vm370, 0.0
        %481 = vst.msk [vmem:[#allocation3 + $0x170] sm:$0xff] %vm370, 0.0
        %482 = vst.msk [vmem:[#allocation3 + $0x178] sm:$0xff] %vm370, 0.0
        %483 = vst.msk [vmem:[#allocation3 + $0x180] sm:$0xff] %vm370, 0.0
        %484 = vst.msk [vmem:[#allocation3 + $0x188] sm:$0xff] %vm370, 0.0
        %485 = vst.msk [vmem:[#allocation3 + $0x190] sm:$0xff] %vm370, 0.0
        %486 = vst.msk [vmem:[#allocation3 + $0x198] sm:$0xff] %vm370, 0.0
        %487 = vst.msk [vmem:[#allocation3 + $0x1a0] sm:$0xff] %vm370, 0.0
        %488 = vst.msk [vmem:[#allocation3 + $0x1a8] sm:$0xff] %vm370, 0.0
        %489 = vst.msk [vmem:[#allocation3 + $0x1b0] sm:$0xff] %vm370, 0.0
        %490 = vst.msk [vmem:[#allocation3 + $0x1b8] sm:$0xff] %vm370, 0.0
        %491 = vst.msk [vmem:[#allocation3 + $0x1c0] sm:$0xff] %vm370, 0.0
        %492 = vst.msk [vmem:[#allocation3 + $0x1c8] sm:$0xff] %vm370, 0.0
        %493 = vst.msk [vmem:[#allocation3 + $0x1d0] sm:$0xff] %vm370, 0.0
        %494 = vst.msk [vmem:[#allocation3 + $0x1d8] sm:$0xff] %vm370, 0.0
        %495 = vst.msk [vmem:[#allocation3 + $0x1e0] sm:$0xff] %vm370, 0.0
        %496 = vst.msk [vmem:[#allocation3 + $0x1e8] sm:$0xff] %vm370, 0.0
        %497 = vst.msk [vmem:[#allocation3 + $0x1f0] sm:$0xff] %vm370, 0.0
        %498 = vst.msk [vmem:[#allocation3 + $0x1f8] sm:$0xff] %vm370, 0.0
        %vm499 = vcmask 261120
        %500 = vst.msk [vmem:[#allocation4] sm:$0xff] %vm499, 0.0
        %501 = vst.msk [vmem:[#allocation4 + $0x8] sm:$0xff] %vm499, 0.0
        %502 = vst.msk [vmem:[#allocation4 + $0x10] sm:$0xff] %vm499, 0.0
        %503 = vst.msk [vmem:[#allocation4 + $0x18] sm:$0xff] %vm499, 0.0
        %504 = vst.msk [vmem:[#allocation4 + $0x20] sm:$0xff] %vm499, 0.0
        %505 = vst.msk [vmem:[#allocation4 + $0x28] sm:$0xff] %vm499, 0.0
        %506 = vst.msk [vmem:[#allocation4 + $0x30] sm:$0xff] %vm499, 0.0
        %507 = vst.msk [vmem:[#allocation4 + $0x38] sm:$0xff] %vm499, 0.0
        %508 = vst.msk [vmem:[#allocation4 + $0x40] sm:$0xff] %vm499, 0.0
        %509 = vst.msk [vmem:[#allocation4 + $0x48] sm:$0xff] %vm499, 0.0
        %510 = vst.msk [vmem:[#allocation4 + $0x50] sm:$0xff] %vm499, 0.0
        %511 = vst.msk [vmem:[#allocation4 + $0x58] sm:$0xff] %vm499, 0.0
        %512 = vst.msk [vmem:[#allocation4 + $0x60] sm:$0xff] %vm499, 0.0
        %513 = vst.msk [vmem:[#allocation4 + $0x68] sm:$0xff] %vm499, 0.0
        %514 = vst.msk [vmem:[#allocation4 + $0x70] sm:$0xff] %vm499, 0.0
        %515 = vst.msk [vmem:[#allocation4 + $0x78] sm:$0xff] %vm499, 0.0
        %516 = vst.msk [vmem:[#allocation4 + $0x80] sm:$0xff] %vm499, 0.0
        %517 = vst.msk [vmem:[#allocation4 + $0x88] sm:$0xff] %vm499, 0.0
        %518 = vst.msk [vmem:[#allocation4 + $0x90] sm:$0xff] %vm499, 0.0
        %519 = vst.msk [vmem:[#allocation4 + $0x98] sm:$0xff] %vm499, 0.0
        %520 = vst.msk [vmem:[#allocation4 + $0xa0] sm:$0xff] %vm499, 0.0
        %521 = vst.msk [vmem:[#allocation4 + $0xa8] sm:$0xff] %vm499, 0.0
        %522 = vst.msk [vmem:[#allocation4 + $0xb0] sm:$0xff] %vm499, 0.0
        %523 = vst.msk [vmem:[#allocation4 + $0xb8] sm:$0xff] %vm499, 0.0
        %524 = vst.msk [vmem:[#allocation4 + $0xc0] sm:$0xff] %vm499, 0.0
        %525 = vst.msk [vmem:[#allocation4 + $0xc8] sm:$0xff] %vm499, 0.0
        %526 = vst.msk [vmem:[#allocation4 + $0xd0] sm:$0xff] %vm499, 0.0
        %527 = vst.msk [vmem:[#allocation4 + $0xd8] sm:$0xff] %vm499, 0.0
        %528 = vst.msk [vmem:[#allocation4 + $0xe0] sm:$0xff] %vm499, 0.0
        %529 = vst.msk [vmem:[#allocation4 + $0xe8] sm:$0xff] %vm499, 0.0
        %530 = vst.msk [vmem:[#allocation4 + $0xf0] sm:$0xff] %vm499, 0.0
        %531 = vst.msk [vmem:[#allocation4 + $0xf8] sm:$0xff] %vm499, 0.0
        %532 = vst.msk [vmem:[#allocation4 + $0x100] sm:$0xff] %vm499, 0.0
        %533 = vst.msk [vmem:[#allocation4 + $0x108] sm:$0xff] %vm499, 0.0
        %534 = vst.msk [vmem:[#allocation4 + $0x110] sm:$0xff] %vm499, 0.0
        %535 = vst.msk [vmem:[#allocation4 + $0x118] sm:$0xff] %vm499, 0.0
        %536 = vst.msk [vmem:[#allocation4 + $0x120] sm:$0xff] %vm499, 0.0
        %537 = vst.msk [vmem:[#allocation4 + $0x128] sm:$0xff] %vm499, 0.0
        %538 = vst.msk [vmem:[#allocation4 + $0x130] sm:$0xff] %vm499, 0.0
        %539 = vst.msk [vmem:[#allocation4 + $0x138] sm:$0xff] %vm499, 0.0
        %540 = vst.msk [vmem:[#allocation4 + $0x140] sm:$0xff] %vm499, 0.0
        %541 = vst.msk [vmem:[#allocation4 + $0x148] sm:$0xff] %vm499, 0.0
        %542 = vst.msk [vmem:[#allocation4 + $0x150] sm:$0xff] %vm499, 0.0
        %543 = vst.msk [vmem:[#allocation4 + $0x158] sm:$0xff] %vm499, 0.0
        %544 = vst.msk [vmem:[#allocation4 + $0x160] sm:$0xff] %vm499, 0.0
        %545 = vst.msk [vmem:[#allocation4 + $0x168] sm:$0xff] %vm499, 0.0
        %546 = vst.msk [vmem:[#allocation4 + $0x170] sm:$0xff] %vm499, 0.0
        %547 = vst.msk [vmem:[#allocation4 + $0x178] sm:$0xff] %vm499, 0.0
        %548 = vst.msk [vmem:[#allocation4 + $0x180] sm:$0xff] %vm499, 0.0
        %549 = vst.msk [vmem:[#allocation4 + $0x188] sm:$0xff] %vm499, 0.0
        %550 = vst.msk [vmem:[#allocation4 + $0x190] sm:$0xff] %vm499, 0.0
        %551 = vst.msk [vmem:[#allocation4 + $0x198] sm:$0xff] %vm499, 0.0
        %552 = vst.msk [vmem:[#allocation4 + $0x1a0] sm:$0xff] %vm499, 0.0
        %553 = vst.msk [vmem:[#allocation4 + $0x1a8] sm:$0xff] %vm499, 0.0
        %554 = vst.msk [vmem:[#allocation4 + $0x1b0] sm:$0xff] %vm499, 0.0
        %555 = vst.msk [vmem:[#allocation4 + $0x1b8] sm:$0xff] %vm499, 0.0
        %556 = vst.msk [vmem:[#allocation4 + $0x1c0] sm:$0xff] %vm499, 0.0
        %557 = vst.msk [vmem:[#allocation4 + $0x1c8] sm:$0xff] %vm499, 0.0
        %558 = vst.msk [vmem:[#allocation4 + $0x1d0] sm:$0xff] %vm499, 0.0
        %559 = vst.msk [vmem:[#allocation4 + $0x1d8] sm:$0xff] %vm499, 0.0
        %560 = vst.msk [vmem:[#allocation4 + $0x1e0] sm:$0xff] %vm499, 0.0
        %561 = vst.msk [vmem:[#allocation4 + $0x1e8] sm:$0xff] %vm499, 0.0
        %562 = vst.msk [vmem:[#allocation4 + $0x1f0] sm:$0xff] %vm499, 0.0
        %563 = vst.msk [vmem:[#allocation4 + $0x1f8] sm:$0xff] %vm499, 0.0
      $region36: #{tpu_custom_call.1} parent=31 // pred_fallthru
        _
      %v564 = vld [vmem:[%s315] sm:$0xff]
      %v565 = vld [vmem:[%s315 + $0x8] sm:$0xff]
      %v566 = vld [vmem:[%s315 + $0x10] sm:$0xff]
      %v567 = vld [vmem:[%s315 + $0x18] sm:$0xff]
      %v568 = vld [vmem:[%s315 + $0x20] sm:$0xff]
      %v569 = vld [vmem:[%s315 + $0x28] sm:$0xff]
      %v570 = vld [vmem:[%s315 + $0x30] sm:$0xff]
      %v571 = vld [vmem:[%s315 + $0x38] sm:$0xff]
      %v572 = vld [vmem:[%s315 + $0x40] sm:$0xff]
      %v573 = vld [vmem:[%s315 + $0x48] sm:$0xff]
      %v574 = vld [vmem:[%s315 + $0x50] sm:$0xff]
      %v575 = vld [vmem:[%s315 + $0x58] sm:$0xff]
      %v576 = vld [vmem:[%s315 + $0x60] sm:$0xff]
      %v577 = vld [vmem:[%s315 + $0x68] sm:$0xff]
      %v578 = vld [vmem:[%s315 + $0x70] sm:$0xff]
      %v579 = vld [vmem:[%s315 + $0x78] sm:$0xff]
      %v580 = vld [vmem:[%s315 + $0x80] sm:$0xff]
      %v581 = vld [vmem:[%s315 + $0x88] sm:$0xff]
      %v582 = vld [vmem:[%s315 + $0x90] sm:$0xff]
      %v583 = vld [vmem:[%s315 + $0x98] sm:$0xff]
      %v584 = vld [vmem:[%s315 + $0xa0] sm:$0xff]
      %v585 = vld [vmem:[%s315 + $0xa8] sm:$0xff]
      %v586 = vld [vmem:[%s315 + $0xb0] sm:$0xff]
      %v587 = vld [vmem:[%s315 + $0xb8] sm:$0xff]
      %v588 = vld [vmem:[%s315 + $0xc0] sm:$0xff]
      %v589 = vld [vmem:[%s315 + $0xc8] sm:$0xff]
      %v590 = vld [vmem:[%s315 + $0xd0] sm:$0xff]
      %v591 = vld [vmem:[%s315 + $0xd8] sm:$0xff]
      %v592 = vld [vmem:[%s315 + $0xe0] sm:$0xff]
      %v593 = vld [vmem:[%s315 + $0xe8] sm:$0xff]
      %v594 = vld [vmem:[%s315 + $0xf0] sm:$0xff]
      %v595 = vld [vmem:[%s315 + $0xf8] sm:$0xff]
      %v596 = vld [vmem:[%s315 + $0x100] sm:$0xff]
      %v597 = vld [vmem:[%s315 + $0x108] sm:$0xff]
      %v598 = vld [vmem:[%s315 + $0x110] sm:$0xff]
      %v599 = vld [vmem:[%s315 + $0x118] sm:$0xff]
      %v600 = vld [vmem:[%s315 + $0x120] sm:$0xff]
      %v601 = vld [vmem:[%s315 + $0x128] sm:$0xff]
      %v602 = vld [vmem:[%s315 + $0x130] sm:$0xff]
      %v603 = vld [vmem:[%s315 + $0x138] sm:$0xff]
      %v604 = vld [vmem:[%s315 + $0x140] sm:$0xff]
      %v605 = vld [vmem:[%s315 + $0x148] sm:$0xff]
      %v606 = vld [vmem:[%s315 + $0x150] sm:$0xff]
      %v607 = vld [vmem:[%s315 + $0x158] sm:$0xff]
      %v608 = vld [vmem:[%s315 + $0x160] sm:$0xff]
      %v609 = vld [vmem:[%s315 + $0x168] sm:$0xff]
      %v610 = vld [vmem:[%s315 + $0x170] sm:$0xff]
      %v611 = vld [vmem:[%s315 + $0x178] sm:$0xff]
      %v612 = vld [vmem:[%s315 + $0x180] sm:$0xff]
      %v613 = vld [vmem:[%s315 + $0x188] sm:$0xff]
      %v614 = vld [vmem:[%s315 + $0x190] sm:$0xff]
      %v615 = vld [vmem:[%s315 + $0x198] sm:$0xff]
      %v616 = vld [vmem:[%s315 + $0x1a0] sm:$0xff]
      %v617 = vld [vmem:[%s315 + $0x1a8] sm:$0xff]
      %v618 = vld [vmem:[%s315 + $0x1b0] sm:$0xff]
      %v619 = vld [vmem:[%s315 + $0x1b8] sm:$0xff]
      %v620 = vld [vmem:[%s315 + $0x1c0] sm:$0xff]
      %v621 = vld [vmem:[%s315 + $0x1c8] sm:$0xff]
      %v622 = vld [vmem:[%s315 + $0x1d0] sm:$0xff]
      %v623 = vld [vmem:[%s315 + $0x1d8] sm:$0xff]
      %v624 = vld [vmem:[%s315 + $0x1e0] sm:$0xff]
      %v625 = vld [vmem:[%s315 + $0x1e8] sm:$0xff]
      %v626 = vld [vmem:[%s315 + $0x1f0] sm:$0xff]
      %v627 = vld [vmem:[%s315 + $0x1f8] sm:$0xff]
      %v628 = vld [vmem:[%s331] sm:$0xff]
      %v629 = vld [vmem:[%s331 + $0x8] sm:$0xff]
      %v630 = vld [vmem:[%s331 + $0x10] sm:$0xff]
      %v631 = vld [vmem:[%s331 + $0x18] sm:$0xff]
      %v632 = vld [vmem:[%s331 + $0x20] sm:$0xff]
      %v633 = vld [vmem:[%s331 + $0x28] sm:$0xff]
      %v634 = vld [vmem:[%s331 + $0x30] sm:$0xff]
      %v635 = vld [vmem:[%s331 + $0x38] sm:$0xff]
      %v636 = vld [vmem:[%s331 + $0x40] sm:$0xff]
      %v637 = vld [vmem:[%s331 + $0x48] sm:$0xff]
      %v638 = vld [vmem:[%s331 + $0x50] sm:$0xff]
      %v639 = vld [vmem:[%s331 + $0x58] sm:$0xff]
      %v640 = vld [vmem:[%s331 + $0x60] sm:$0xff]
      %v641 = vld [vmem:[%s331 + $0x68] sm:$0xff]
      %v642 = vld [vmem:[%s331 + $0x70] sm:$0xff]
      %v643 = vld [vmem:[%s331 + $0x78] sm:$0xff]
      %v644 = vld [vmem:[%s331 + $0x80] sm:$0xff]
      %v645 = vld [vmem:[%s331 + $0x88] sm:$0xff]
      %v646 = vld [vmem:[%s331 + $0x90] sm:$0xff]
      %v647 = vld [vmem:[%s331 + $0x98] sm:$0xff]
      %v648 = vld [vmem:[%s331 + $0xa0] sm:$0xff]
      %v649 = vld [vmem:[%s331 + $0xa8] sm:$0xff]
      %v650 = vld [vmem:[%s331 + $0xb0] sm:$0xff]
      %v651 = vld [vmem:[%s331 + $0xb8] sm:$0xff]
      %v652 = vld [vmem:[%s331 + $0xc0] sm:$0xff]
      %v653 = vld [vmem:[%s331 + $0xc8] sm:$0xff]
      %v654 = vld [vmem:[%s331 + $0xd0] sm:$0xff]
      %v655 = vld [vmem:[%s331 + $0xd8] sm:$0xff]
      %v656 = vld [vmem:[%s331 + $0xe0] sm:$0xff]
      %v657 = vld [vmem:[%s331 + $0xe8] sm:$0xff]
      %v658 = vld [vmem:[%s331 + $0xf0] sm:$0xff]
      %v659 = vld [vmem:[%s331 + $0xf8] sm:$0xff]
      %v660 = vld [vmem:[%s331 + $0x100] sm:$0xff]
      %v661 = vld [vmem:[%s331 + $0x108] sm:$0xff]
      %v662 = vld [vmem:[%s331 + $0x110] sm:$0xff]
      %v663 = vld [vmem:[%s331 + $0x118] sm:$0xff]
      %v664 = vld [vmem:[%s331 + $0x120] sm:$0xff]
      %v665 = vld [vmem:[%s331 + $0x128] sm:$0xff]
      %v666 = vld [vmem:[%s331 + $0x130] sm:$0xff]
      %v667 = vld [vmem:[%s331 + $0x138] sm:$0xff]
      %v668 = vld [vmem:[%s331 + $0x140] sm:$0xff]
      %v669 = vld [vmem:[%s331 + $0x148] sm:$0xff]
      %v670 = vld [vmem:[%s331 + $0x150] sm:$0xff]
      %v671 = vld [vmem:[%s331 + $0x158] sm:$0xff]
      %v672 = vld [vmem:[%s331 + $0x160] sm:$0xff]
      %v673 = vld [vmem:[%s331 + $0x168] sm:$0xff]
      %v674 = vld [vmem:[%s331 + $0x170] sm:$0xff]
      %v675 = vld [vmem:[%s331 + $0x178] sm:$0xff]
      %v676 = vld [vmem:[%s331 + $0x180] sm:$0xff]
      %v677 = vld [vmem:[%s331 + $0x188] sm:$0xff]
      %v678 = vld [vmem:[%s331 + $0x190] sm:$0xff]
      %v679 = vld [vmem:[%s331 + $0x198] sm:$0xff]
      %v680 = vld [vmem:[%s331 + $0x1a0] sm:$0xff]
      %v681 = vld [vmem:[%s331 + $0x1a8] sm:$0xff]
      %v682 = vld [vmem:[%s331 + $0x1b0] sm:$0xff]
      %v683 = vld [vmem:[%s331 + $0x1b8] sm:$0xff]
      %v684 = vld [vmem:[%s331 + $0x1c0] sm:$0xff]
      %v685 = vld [vmem:[%s331 + $0x1c8] sm:$0xff]
      %v686 = vld [vmem:[%s331 + $0x1d0] sm:$0xff]
      %v687 = vld [vmem:[%s331 + $0x1d8] sm:$0xff]
      %v688 = vld [vmem:[%s331 + $0x1e0] sm:$0xff]
      %v689 = vld [vmem:[%s331 + $0x1e8] sm:$0xff]
      %v690 = vld [vmem:[%s331 + $0x1f0] sm:$0xff]
      %v691 = vld [vmem:[%s331 + $0x1f8] sm:$0xff]
      %v692 = vld [vmem:[%s347] sm:$0xff]
      %v693 = vld [vmem:[%s347 + $0x8] sm:$0xff]
      %v694 = vld [vmem:[%s347 + $0x10] sm:$0xff]
      %v695 = vld [vmem:[%s347 + $0x18] sm:$0xff]
      %v696 = vld [vmem:[%s347 + $0x20] sm:$0xff]
      %v697 = vld [vmem:[%s347 + $0x28] sm:$0xff]
      %v698 = vld [vmem:[%s347 + $0x30] sm:$0xff]
      %v699 = vld [vmem:[%s347 + $0x38] sm:$0xff]
      %v700 = vld [vmem:[%s347 + $0x40] sm:$0xff]
      %v701 = vld [vmem:[%s347 + $0x48] sm:$0xff]
      %v702 = vld [vmem:[%s347 + $0x50] sm:$0xff]
      %v703 = vld [vmem:[%s347 + $0x58] sm:$0xff]
      %v704 = vld [vmem:[%s347 + $0x60] sm:$0xff]
      %v705 = vld [vmem:[%s347 + $0x68] sm:$0xff]
      %v706 = vld [vmem:[%s347 + $0x70] sm:$0xff]
      %v707 = vld [vmem:[%s347 + $0x78] sm:$0xff]
      %v708 = vld [vmem:[%s347 + $0x80] sm:$0xff]
      %v709 = vld [vmem:[%s347 + $0x88] sm:$0xff]
      %v710 = vld [vmem:[%s347 + $0x90] sm:$0xff]
      %v711 = vld [vmem:[%s347 + $0x98] sm:$0xff]
      %v712 = vld [vmem:[%s347 + $0xa0] sm:$0xff]
      %v713 = vld [vmem:[%s347 + $0xa8] sm:$0xff]
      %v714 = vld [vmem:[%s347 + $0xb0] sm:$0xff]
      %v715 = vld [vmem:[%s347 + $0xb8] sm:$0xff]
      %v716 = vld [vmem:[%s347 + $0xc0] sm:$0xff]
      %v717 = vld [vmem:[%s347 + $0xc8] sm:$0xff]
      %v718 = vld [vmem:[%s347 + $0xd0] sm:$0xff]
      %v719 = vld [vmem:[%s347 + $0xd8] sm:$0xff]
      %v720 = vld [vmem:[%s347 + $0xe0] sm:$0xff]
      %v721 = vld [vmem:[%s347 + $0xe8] sm:$0xff]
      %v722 = vld [vmem:[%s347 + $0xf0] sm:$0xff]
      %v723 = vld [vmem:[%s347 + $0xf8] sm:$0xff]
      %v724 = vld [vmem:[%s347 + $0x100] sm:$0xff]
      %v725 = vld [vmem:[%s347 + $0x108] sm:$0xff]
      %v726 = vld [vmem:[%s347 + $0x110] sm:$0xff]
      %v727 = vld [vmem:[%s347 + $0x118] sm:$0xff]
      %v728 = vld [vmem:[%s347 + $0x120] sm:$0xff]
      %v729 = vld [vmem:[%s347 + $0x128] sm:$0xff]
      %v730 = vld [vmem:[%s347 + $0x130] sm:$0xff]
      %v731 = vld [vmem:[%s347 + $0x138] sm:$0xff]
      %v732 = vld [vmem:[%s347 + $0x140] sm:$0xff]
      %v733 = vld [vmem:[%s347 + $0x148] sm:$0xff]
      %v734 = vld [vmem:[%s347 + $0x150] sm:$0xff]
      %v735 = vld [vmem:[%s347 + $0x158] sm:$0xff]
      %v736 = vld [vmem:[%s347 + $0x160] sm:$0xff]
      %v737 = vld [vmem:[%s347 + $0x168] sm:$0xff]
      %v738 = vld [vmem:[%s347 + $0x170] sm:$0xff]
      %v739 = vld [vmem:[%s347 + $0x178] sm:$0xff]
      %v740 = vld [vmem:[%s347 + $0x180] sm:$0xff]
      %v741 = vld [vmem:[%s347 + $0x188] sm:$0xff]
      %v742 = vld [vmem:[%s347 + $0x190] sm:$0xff]
      %v743 = vld [vmem:[%s347 + $0x198] sm:$0xff]
      %v744 = vld [vmem:[%s347 + $0x1a0] sm:$0xff]
      %v745 = vld [vmem:[%s347 + $0x1a8] sm:$0xff]
      %v746 = vld [vmem:[%s347 + $0x1b0] sm:$0xff]
      %v747 = vld [vmem:[%s347 + $0x1b8] sm:$0xff]
      %v748 = vld [vmem:[%s347 + $0x1c0] sm:$0xff]
      %v749 = vld [vmem:[%s347 + $0x1c8] sm:$0xff]
      %v750 = vld [vmem:[%s347 + $0x1d0] sm:$0xff]
      %v751 = vld [vmem:[%s347 + $0x1d8] sm:$0xff]
      %v752 = vld [vmem:[%s347 + $0x1e0] sm:$0xff]
      %v753 = vld [vmem:[%s347 + $0x1e8] sm:$0xff]
      %v754 = vld [vmem:[%s347 + $0x1f0] sm:$0xff]
      %v755 = vld [vmem:[%s347 + $0x1f8] sm:$0xff]
      %v756 = vmul.f32 %v564, 0.25503486
      %v757 = vmul.f32 %v565, 0.25503486
      %v758 = vmul.f32 %v566, 0.25503486
      %v759 = vmul.f32 %v567, 0.25503486
      %v760 = vmul.f32 %v568, 0.25503486
      %v761 = vmul.f32 %v569, 0.25503486
      %v762 = vmul.f32 %v570, 0.25503486
      %v763 = vmul.f32 %v571, 0.25503486
      %v764 = vmul.f32 %v572, 0.25503486
      %v765 = vmul.f32 %v573, 0.25503486
      %v766 = vmul.f32 %v574, 0.25503486
      %v767 = vmul.f32 %v575, 0.25503486
      %v768 = vmul.f32 %v576, 0.25503486
      %v769 = vmul.f32 %v577, 0.25503486
      %v770 = vmul.f32 %v578, 0.25503486
      %v771 = vmul.f32 %v579, 0.25503486
      %v772 = vmul.f32 %v580, 0.25503486
      %v773 = vmul.f32 %v581, 0.25503486
      %v774 = vmul.f32 %v582, 0.25503486
      %v775 = vmul.f32 %v583, 0.25503486
      %v776 = vmul.f32 %v584, 0.25503486
      %v777 = vmul.f32 %v585, 0.25503486
      %v778 = vmul.f32 %v586, 0.25503486
      %v779 = vmul.f32 %v587, 0.25503486
      %v780 = vmul.f32 %v588, 0.25503486
      %v781 = vmul.f32 %v589, 0.25503486
      %v782 = vmul.f32 %v590, 0.25503486
      %v783 = vmul.f32 %v591, 0.25503486
      %v784 = vmul.f32 %v592, 0.25503486
      %v785 = vmul.f32 %v593, 0.25503486
      %v786 = vmul.f32 %v594, 0.25503486
      %v787 = vmul.f32 %v595, 0.25503486
      %v788 = vmul.f32 %v596, 0.25503486
      %v789 = vmul.f32 %v597, 0.25503486
      %v790 = vmul.f32 %v598, 0.25503486
      %v791 = vmul.f32 %v599, 0.25503486
      %v792 = vmul.f32 %v600, 0.25503486
      %v793 = vmul.f32 %v601, 0.25503486
      %v794 = vmul.f32 %v602, 0.25503486
      %v795 = vmul.f32 %v603, 0.25503486
      %v796 = vmul.f32 %v604, 0.25503486
      %v797 = vmul.f32 %v605, 0.25503486
      %v798 = vmul.f32 %v606, 0.25503486
      %v799 = vmul.f32 %v607, 0.25503486
      %v800 = vmul.f32 %v608, 0.25503486
      %v801 = vmul.f32 %v609, 0.25503486
      %v802 = vmul.f32 %v610, 0.25503486
      %v803 = vmul.f32 %v611, 0.25503486
      %v804 = vmul.f32 %v612, 0.25503486
      %v805 = vmul.f32 %v613, 0.25503486
      %v806 = vmul.f32 %v614, 0.25503486
      %v807 = vmul.f32 %v615, 0.25503486
      %v808 = vmul.f32 %v616, 0.25503486
      %v809 = vmul.f32 %v617, 0.25503486
      %v810 = vmul.f32 %v618, 0.25503486
      %v811 = vmul.f32 %v619, 0.25503486
      %v812 = vmul.f32 %v620, 0.25503486
      %v813 = vmul.f32 %v621, 0.25503486
      %v814 = vmul.f32 %v622, 0.25503486
      %v815 = vmul.f32 %v623, 0.25503486
      %v816 = vmul.f32 %v624, 0.25503486
      %v817 = vmul.f32 %v625, 0.25503486
      %v818 = vmul.f32 %v626, 0.25503486
      %v819 = vmul.f32 %v627, 0.25503486
      %vm820 = vcmask 261120
      %v822 = vsel %vm820, %v756, 0
      %v825 = vsel %vm820, %v757, 0
      %v828 = vsel %vm820, %v758, 0
      %v831 = vsel %vm820, %v759, 0
      %v834 = vsel %vm820, %v760, 0
      %v837 = vsel %vm820, %v761, 0
      %v840 = vsel %vm820, %v762, 0
      %v843 = vsel %vm820, %v763, 0
      %v846 = vsel %vm820, %v764, 0
      %v849 = vsel %vm820, %v765, 0
      %v852 = vsel %vm820, %v766, 0
      %v855 = vsel %vm820, %v767, 0
      %v858 = vsel %vm820, %v768, 0
      %v861 = vsel %vm820, %v769, 0
      %v864 = vsel %vm820, %v770, 0
      %v867 = vsel %vm820, %v771, 0
      %v870 = vsel %vm820, %v628, 0
      %v873 = vsel %vm820, %v629, 0
      %v876 = vsel %vm820, %v630, 0
      %v879 = vsel %vm820, %v631, 0
      %v882 = vsel %vm820, %v632, 0
      %v885 = vsel %vm820, %v633, 0
      %v888 = vsel %vm820, %v634, 0
      %v891 = vsel %vm820, %v635, 0
      %v894 = vsel %vm820, %v636, 0
      %v897 = vsel %vm820, %v637, 0
      %v900 = vsel %vm820, %v638, 0
      %v903 = vsel %vm820, %v639, 0
      %v906 = vsel %vm820, %v640, 0
      %v909 = vsel %vm820, %v641, 0
      %v912 = vsel %vm820, %v642, 0
      %v915 = vsel %vm820, %v643, 0
      %917 = vmatprep.subr.mxu0 0.0
      %918 = vmatpush1.xpose.msra.mxu0 %v870
      %919 = vmatprep.subr.mxu0 0.0
      %920 = vmatpush1.xpose.msra.mxu0 %v873
      %921 = vmatprep.subr.mxu0 0.0
      %922 = vmatpush1.xpose.msra.mxu0 %v876
      %923 = vmatprep.subr.mxu0 0.0
      %924 = vmatpush1.xpose.msra.mxu0 %v879
      %925 = vmatprep.subr.mxu0 0.0
      %926 = vmatpush1.xpose.msra.mxu0 %v882
      %927 = vmatprep.subr.mxu0 0.0
      %928 = vmatpush1.xpose.msra.mxu0 %v885
      %929 = vmatprep.subr.mxu0 0.0
      %930 = vmatpush1.xpose.msra.mxu0 %v888
      %931 = vmatprep.subr.mxu0 0.0
      %932 = vmatpush1.xpose.msra.mxu0 %v891
      %933 = vmatprep.subr.mxu0 0.0
      %934 = vmatpush1.xpose.msra.mxu0 %v894
      %935 = vmatprep.subr.mxu0 0.0
      %936 = vmatpush1.xpose.msra.mxu0 %v897
      %937 = vmatprep.subr.mxu0 0.0
      %938 = vmatpush1.xpose.msra.mxu0 %v900
      %939 = vmatprep.subr.mxu0 0.0
      %940 = vmatpush1.xpose.msra.mxu0 %v903
      %941 = vmatprep.subr.mxu0 0.0
      %942 = vmatpush1.xpose.msra.mxu0 %v906
      %943 = vmatprep.subr.mxu0 0.0
      %944 = vmatpush1.xpose.msra.mxu0 %v909
      %945 = vmatprep.subr.mxu0 0.0
      %946 = vmatpush1.xpose.msra.mxu0 %v912
      %947 = vmatprep.subr.mxu0 0.0
      %948 = vmatpush1.xpose.msra.mxu0 %v915
      %949 = vmatprep.subr.mxu0 0.0
      %950 = vmatpush1.xpose.msra.mxu0 0.0
      %951 = vmatprep.subr.mxu0 0.0
      %952 = vmatpush1.xpose.msra.mxu0 0.0
      %953 = vmatprep.subr.mxu0 0.0
      %954 = vmatpush1.xpose.msra.mxu0 0.0
      %955 = vmatprep.subr.mxu0 0.0
      %956 = vmatpush1.xpose.msra.mxu0 0.0
      %957 = vmatprep.subr.mxu0 0.0
      %958 = vmatpush1.xpose.msra.mxu0 0.0
      %959 = vmatprep.subr.mxu0 0.0
      %960 = vmatpush1.xpose.msra.mxu0 0.0
      %961 = vmatprep.subr.mxu0 0.0
      %962 = vmatpush1.xpose.msra.mxu0 0.0
      %963 = vmatprep.subr.mxu0 0.0
      %964 = vmatpush1.xpose.msra.mxu0 0.0
      %965 = vmatprep.subr.mxu0 0.0
      %966 = vmatpush1.xpose.msra.mxu0 0.0
      %967 = vmatprep.subr.mxu0 0.0
      %968 = vmatpush1.xpose.msra.mxu0 0.0
      %969 = vmatprep.subr.mxu0 0.0
      %970 = vmatpush1.xpose.msra.mxu0 0.0
      %971 = vmatprep.subr.mxu0 0.0
      %972 = vmatpush1.xpose.msra.mxu0 0.0
      %973 = vmatprep.subr.mxu0 0.0
      %974 = vmatpush1.xpose.msra.mxu0 0.0
      %975 = vmatprep.subr.mxu0 0.0
      %976 = vmatpush1.xpose.msra.mxu0 0.0
      %977 = vmatprep.subr.mxu0 0.0
      %978 = vmatpush1.xpose.msra.mxu0 0.0
      %979 = vmatprep.subr.mxu0 0.0
      %980 = vmatpush1.xpose.msra.mxu0 0.0
      %981 = vmatprep.mubr.f32.mxu0 0.0
      %982 = vmatmul.mubr.f32.gmra.mrb[0].mxu0 %v822
      %v983 = vpop.f32.mrb[0].mxu0
      %v984 = vadd.f32 0.0, %v983
      %v985 = vpop.f32.mrb[0].mxu0
      %986 = vmatprep.mubr.f32.mxu0 0.0
      %987 = vmatmul.mubr.f32.gmra.mrb[0].mxu0 %v825
      %v988 = vpop.f32.mrb[0].mxu0
      %v989 = vadd.f32 0.0, %v988
      %v990 = vpop.f32.mrb[0].mxu0
      %991 = vmatprep.mubr.f32.mxu0 0.0
      %992 = vmatmul.mubr.f32.gmra.mrb[0].mxu0 %v828
      %v993 = vpop.f32.mrb[0].mxu0
      %v994 = vadd.f32 0.0, %v993
      %v995 = vpop.f32.mrb[0].mxu0
      %996 = vmatprep.mubr.f32.mxu0 0.0
      %997 = vmatmul.mubr.f32.gmra.mrb[0].mxu0 %v831
      %v998 = vpop.f32.mrb[0].mxu0
      %v999 = vadd.f32 0.0, %v998
      %v1000 = vpop.f32.mrb[0].mxu0
      %1001 = vmatprep.mubr.f32.mxu0 0.0
      %1002 = vmatmul.mubr.f32.gmra.mrb[0].mxu0 %v834
      %v1003 = vpop.f32.mrb[0].mxu0
      %v1004 = vadd.f32 0.0, %v1003
      %v1005 = vpop.f32.mrb[0].mxu0
      %1006 = vmatprep.mubr.f32.mxu0 0.0
      %1007 = vmatmul.mubr.f32.gmra.mrb[0].mxu0 %v837
      %v1008 = vpop.f32.mrb[0].mxu0
      %v1009 = vadd.f32 0.0, %v1008
      %v1010 = vpop.f32.mrb[0].mxu0
      %1011 = vmatprep.mubr.f32.mxu0 0.0
      %1012 = vmatmul.mubr.f32.gmra.mrb[0].mxu0 %v840
      %v1013 = vpop.f32.mrb[0].mxu0
      %v1014 = vadd.f32 0.0, %v1013
      %v1015 = vpop.f32.mrb[0].mxu0
      %1016 = vmatprep.mubr.f32.mxu0 0.0
      %1017 = vmatmul.mubr.f32.gmra.mrb[0].mxu0 %v843
      %v1018 = vpop.f32.mrb[0].mxu0
      %v1019 = vadd.f32 0.0, %v1018
      %v1020 = vpop.f32.mrb[0].mxu0
      %1021 = vmatprep.mubr.f32.mxu0 0.0
      %1022 = vmatmul.mubr.f32.gmra.mrb[0].mxu0 %v846
      %v1023 = vpop.f32.mrb[0].mxu0
      %v1024 = vadd.f32 0.0, %v1023
      %v1025 = vpop.f32.mrb[0].mxu0
      %1026 = vmatprep.mubr.f32.mxu0 0.0
      %1027 = vmatmul.mubr.f32.gmra.mrb[0].mxu0 %v849
      %v1028 = vpop.f32.mrb[0].mxu0
      %v1029 = vadd.f32 0.0, %v1028
      %v1030 = vpop.f32.mrb[0].mxu0
      %1031 = vmatprep.mubr.f32.mxu0 0.0
      %1032 = vmatmul.mubr.f32.gmra.mrb[0].mxu0 %v852
      %v1033 = vpop.f32.mrb[0].mxu0
      %v1034 = vadd.f32 0.0, %v1033
      %v1035 = vpop.f32.mrb[0].mxu0
      %1036 = vmatprep.mubr.f32.mxu0 0.0
      %1037 = vmatmul.mubr.f32.gmra.mrb[0].mxu0 %v855
      %v1038 = vpop.f32.mrb[0].mxu0
      %v1039 = vadd.f32 0.0, %v1038
      %v1040 = vpop.f32.mrb[0].mxu0
      %1041 = vmatprep.mubr.f32.mxu0 0.0
      %1042 = vmatmul.mubr.f32.gmra.mrb[0].mxu0 %v858
      %v1043 = vpop.f32.mrb[0].mxu0
      %v1044 = vadd.f32 0.0, %v1043
      %v1045 = vpop.f32.mrb[0].mxu0
      %1046 = vmatprep.mubr.f32.mxu0 0.0
      %1047 = vmatmul.mubr.f32.gmra.mrb[0].mxu0 %v861
      %v1048 = vpop.f32.mrb[0].mxu0
      %v1049 = vadd.f32 0.0, %v1048
      %v1050 = vpop.f32.mrb[0].mxu0
      %1051 = vmatprep.mubr.f32.mxu0 0.0
      %1052 = vmatmul.mubr.f32.gmra.mrb[0].mxu0 %v864
      %v1053 = vpop.f32.mrb[0].mxu0
      %v1054 = vadd.f32 0.0, %v1053
      %v1055 = vpop.f32.mrb[0].mxu0
      %1056 = vmatprep.mubr.f32.mxu0 0.0
      %1057 = vmatmul.mubr.f32.gmra.mrb[0].mxu0 %v867
      %v1058 = vpop.f32.mrb[0].mxu0
      %v1059 = vadd.f32 0.0, %v1058
      %v1060 = vpop.f32.mrb[0].mxu0
      %1061 = vdwg.mxu0
      %v1063 = vsel %vm820, %v772, 0
      %v1066 = vsel %vm820, %v773, 0
      %v1069 = vsel %vm820, %v774, 0
      %v1072 = vsel %vm820, %v775, 0
      %v1075 = vsel %vm820, %v776, 0
      %v1078 = vsel %vm820, %v777, 0
      %v1081 = vsel %vm820, %v778, 0
      %v1084 = vsel %vm820, %v779, 0
      %v1087 = vsel %vm820, %v780, 0
      %v1090 = vsel %vm820, %v781, 0
      %v1093 = vsel %vm820, %v782, 0
      %v1096 = vsel %vm820, %v783, 0
      %v1099 = vsel %vm820, %v784, 0
      %v1102 = vsel %vm820, %v785, 0
      %v1105 = vsel %vm820, %v786, 0
      %v1108 = vsel %vm820, %v787, 0
      %v1111 = vsel %vm820, %v644, 0
      %v1114 = vsel %vm820, %v645, 0
      %v1117 = vsel %vm820, %v646, 0
      %v1120 = vsel %vm820, %v647, 0
      %v1123 = vsel %vm820, %v648, 0
      %v1126 = vsel %vm820, %v649, 0
      %v1129 = vsel %vm820, %v650, 0
      %v1132 = vsel %vm820, %v651, 0
      %v1135 = vsel %vm820, %v652, 0
      %v1138 = vsel %vm820, %v653, 0
      %v1141 = vsel %vm820, %v654, 0
      %v1144 = vsel %vm820, %v655, 0
      %v1147 = vsel %vm820, %v656, 0
      %v1150 = vsel %vm820, %v657, 0
      %v1153 = vsel %vm820, %v658, 0
      %v1156 = vsel %vm820, %v659, 0
      %1158 = vmatprep.subr.mxu0 0.0
      %1159 = vmatpush1.xpose.msra.mxu0 %v1111
      %1160 = vmatprep.subr.mxu0 0.0
      %1161 = vmatpush1.xpose.msra.mxu0 %v1114
      %1162 = vmatprep.subr.mxu0 0.0
      %1163 = vmatpush1.xpose.msra.mxu0 %v1117
      %1164 = vmatprep.subr.mxu0 0.0
      %1165 = vmatpush1.xpose.msra.mxu0 %v1120
      %1166 = vmatprep.subr.mxu0 0.0
      %1167 = vmatpush1.xpose.msra.mxu0 %v1123
      %1168 = vmatprep.subr.mxu0 0.0
      %1169 = vmatpush1.xpose.msra.mxu0 %v1126
      %1170 = vmatprep.subr.mxu0 0.0
      %1171 = vmatpush1.xpose.msra.mxu0 %v1129
      %1172 = vmatprep.subr.mxu0 0.0
      %1173 = vmatpush1.xpose.msra.mxu0 %v1132
      %1174 = vmatprep.subr.mxu0 0.0
      %1175 = vmatpush1.xpose.msra.mxu0 %v1135
      %1176 = vmatprep.subr.mxu0 0.0
      %1177 = vmatpush1.xpose.msra.mxu0 %v1138
      %1178 = vmatprep.subr.mxu0 0.0
      %1179 = vmatpush1.xpose.msra.mxu0 %v1141
      %1180 = vmatprep.subr.mxu0 0.0
      %1181 = vmatpush1.xpose.msra.mxu0 %v1144
      %1182 = vmatprep.subr.mxu0 0.0
      %1183 = vmatpush1.xpose.msra.mxu0 %v1147
      %1184 = vmatprep.subr.mxu0 0.0
      %1185 = vmatpush1.xpose.msra.mxu0 %v1150
      %1186 = vmatprep.subr.mxu0 0.0
      %1187 = vmatpush1.xpose.msra.mxu0 %v1153
      %1188 = vmatprep.subr.mxu0 0.0
      %1189 = vmatpush1.xpose.msra.mxu0 %v1156
      %1190 = vmatprep.subr.mxu0 0.0
      %1191 = vmatpush1.xpose.msra.mxu0 0.0
      %1192 = vmatprep.subr.mxu0 0.0
      %1193 = vmatpush1.xpose.msra.mxu0 0.0
      %1194 = vmatprep.subr.mxu0 0.0
      %1195 = vmatpush1.xpose.msra.mxu0 0.0
      %1196 = vmatprep.subr.mxu0 0.0
      %1197 = vmatpush1.xpose.msra.mxu0 0.0
      %1198 = vmatprep.subr.mxu0 0.0
      %1199 = vmatpush1.xpose.msra.mxu0 0.0
      %1200 = vmatprep.subr.mxu0 0.0
      %1201 = vmatpush1.xpose.msra.mxu0 0.0
      %1202 = vmatprep.subr.mxu0 0.0
      %1203 = vmatpush1.xpose.msra.mxu0 0.0
      %1204 = vmatprep.subr.mxu0 0.0
      %1205 = vmatpush1.xpose.msra.mxu0 0.0
      %1206 = vmatprep.subr.mxu0 0.0
      %1207 = vmatpush1.xpose.msra.mxu0 0.0
      %1208 = vmatprep.subr.mxu0 0.0
      %1209 = vmatpush1.xpose.msra.mxu0 0.0
      %1210 = vmatprep.subr.mxu0 0.0
      %1211 = vmatpush1.xpose.msra.mxu0 0.0
      %1212 = vmatprep.subr.mxu0 0.0
      %1213 = vmatpush1.xpose.msra.mxu0 0.0
      %1214 = vmatprep.subr.mxu0 0.0
      %1215 = vmatpush1.xpose.msra.mxu0 0.0
      %1216 = vmatprep.subr.mxu0 0.0
      %1217 = vmatpush1.xpose.msra.mxu0 0.0
      %1218 = vmatprep.subr.mxu0 0.0
      %1219 = vmatpush1.xpose.msra.mxu0 0.0
      %1220 = vmatprep.subr.mxu0 0.0
      %1221 = vmatpush1.xpose.msra.mxu0 0.0
      %1222 = vmatprep.mubr.f32.mxu0 0.0
      %1223 = vmatmul.mubr.f32.gmra.mrb[0].mxu0 %v1063
      %v1224 = vpop.f32.mrb[0].mxu0
      %v1225 = vadd.f32 0.0, %v1224
      %v1226 = vpop.f32.mrb[0].mxu0
      %1227 = vmatprep.mubr.f32.mxu0 0.0
      %1228 = vmatmul.mubr.f32.gmra.mrb[0].mxu0 %v1066
      %v1229 = vpop.f32.mrb[0].mxu0
      %v1230 = vadd.f32 0.0, %v1229
      %v1231 = vpop.f32.mrb[0].mxu0
      %1232 = vmatprep.mubr.f32.mxu0 0.0
      %1233 = vmatmul.mubr.f32.gmra.mrb[0].mxu0 %v1069
      %v1234 = vpop.f32.mrb[0].mxu0
      %v1235 = vadd.f32 0.0, %v1234
      %v1236 = vpop.f32.mrb[0].mxu0
      %1237 = vmatprep.mubr.f32.mxu0 0.0
      %1238 = vmatmul.mubr.f32.gmra.mrb[0].mxu0 %v1072
      %v1239 = vpop.f32.mrb[0].mxu0
      %v1240 = vadd.f32 0.0, %v1239
      %v1241 = vpop.f32.mrb[0].mxu0
      %1242 = vmatprep.mubr.f32.mxu0 0.0
      %1243 = vmatmul.mubr.f32.gmra.mrb[0].mxu0 %v1075
      %v1244 = vpop.f32.mrb[0].mxu0
      %v1245 = vadd.f32 0.0, %v1244
      %v1246 = vpop.f32.mrb[0].mxu0
      %1247 = vmatprep.mubr.f32.mxu0 0.0
      %1248 = vmatmul.mubr.f32.gmra.mrb[0].mxu0 %v1078
      %v1249 = vpop.f32.mrb[0].mxu0
      %v1250 = vadd.f32 0.0, %v1249
      %v1251 = vpop.f32.mrb[0].mxu0
      %1252 = vmatprep.mubr.f32.mxu0 0.0
      %1253 = vmatmul.mubr.f32.gmra.mrb[0].mxu0 %v1081
      %v1254 = vpop.f32.mrb[0].mxu0
      %v1255 = vadd.f32 0.0, %v1254
      %v1256 = vpop.f32.mrb[0].mxu0
      %1257 = vmatprep.mubr.f32.mxu0 0.0
      %1258 = vmatmul.mubr.f32.gmra.mrb[0].mxu0 %v1084
      %v1259 = vpop.f32.mrb[0].mxu0
      %v1260 = vadd.f32 0.0, %v1259
      %v1261 = vpop.f32.mrb[0].mxu0
      %1262 = vmatprep.mubr.f32.mxu0 0.0
      %1263 = vmatmul.mubr.f32.gmra.mrb[0].mxu0 %v1087
      %v1264 = vpop.f32.mrb[0].mxu0
      %v1265 = vadd.f32 0.0, %v1264
      %v1266 = vpop.f32.mrb[0].mxu0
      %1267 = vmatprep.mubr.f32.mxu0 0.0
      %1268 = vmatmul.mubr.f32.gmra.mrb[0].mxu0 %v1090
      %v1269 = vpop.f32.mrb[0].mxu0
      %v1270 = vadd.f32 0.0, %v1269
      %v1271 = vpop.f32.mrb[0].mxu0
      %1272 = vmatprep.mubr.f32.mxu0 0.0
      %1273 = vmatmul.mubr.f32.gmra.mrb[0].mxu0 %v1093
      %v1274 = vpop.f32.mrb[0].mxu0
      %v1275 = vadd.f32 0.0, %v1274
      %v1276 = vpop.f32.mrb[0].mxu0
      %1277 = vmatprep.mubr.f32.mxu0 0.0
      %1278 = vmatmul.mubr.f32.gmra.mrb[0].mxu0 %v1096
      %v1279 = vpop.f32.mrb[0].mxu0
      %v1280 = vadd.f32 0.0, %v1279
      %v1281 = vpop.f32.mrb[0].mxu0
      %1282 = vmatprep.mubr.f32.mxu0 0.0
      %1283 = vmatmul.mubr.f32.gmra.mrb[0].mxu0 %v1099
      %v1284 = vpop.f32.mrb[0].mxu0
      %v1285 = vadd.f32 0.0, %v1284
      %v1286 = vpop.f32.mrb[0].mxu0
      %1287 = vmatprep.mubr.f32.mxu0 0.0
      %1288 = vmatmul.mubr.f32.gmra.mrb[0].mxu0 %v1102
      %v1289 = vpop.f32.mrb[0].mxu0
      %v1290 = vadd.f32 0.0, %v1289
      %v1291 = vpop.f32.mrb[0].mxu0
      %1292 = vmatprep.mubr.f32.mxu0 0.0
      %1293 = vmatmul.mubr.f32.gmra.mrb[0].mxu0 %v1105
      %v1294 = vpop.f32.mrb[0].mxu0
      %v1295 = vadd.f32 0.0, %v1294
      %v1296 = vpop.f32.mrb[0].mxu0
      %1297 = vmatprep.mubr.f32.mxu0 0.0
      %1298 = vmatmul.mubr.f32.gmra.mrb[0].mxu0 %v1108
      %v1299 = vpop.f32.mrb[0].mxu0
      %v1300 = vadd.f32 0.0, %v1299
      %v1301 = vpop.f32.mrb[0].mxu0
      %1302 = vdwg.mxu0
      %v1304 = vsel %vm820, %v788, 0
      %v1307 = vsel %vm820, %v789, 0
      %v1310 = vsel %vm820, %v790, 0
      %v1313 = vsel %vm820, %v791, 0
      %v1316 = vsel %vm820, %v792, 0
      %v1319 = vsel %vm820, %v793, 0
      %v1322 = vsel %vm820, %v794, 0
      %v1325 = vsel %vm820, %v795, 0
      %v1328 = vsel %vm820, %v796, 0
      %v1331 = vsel %vm820, %v797, 0
      %v1334 = vsel %vm820, %v798, 0
      %v1337 = vsel %vm820, %v799, 0
      %v1340 = vsel %vm820, %v800, 0
      %v1343 = vsel %vm820, %v801, 0
      %v1346 = vsel %vm820, %v802, 0
      %v1349 = vsel %vm820, %v803, 0
      %v1352 = vsel %vm820, %v660, 0
      %v1355 = vsel %vm820, %v661, 0
      %v1358 = vsel %vm820, %v662, 0
      %v1361 = vsel %vm820, %v663, 0
      %v1364 = vsel %vm820, %v664, 0
      %v1367 = vsel %vm820, %v665, 0
      %v1370 = vsel %vm820, %v666, 0
      %v1373 = vsel %vm820, %v667, 0
      %v1376 = vsel %vm820, %v668, 0
      %v1379 = vsel %vm820, %v669, 0
      %v1382 = vsel %vm820, %v670, 0
      %v1385 = vsel %vm820, %v671, 0
      %v1388 = vsel %vm820, %v672, 0
      %v1391 = vsel %vm820, %v673, 0
      %v1394 = vsel %vm820, %v674, 0
      %v1397 = vsel %vm820, %v675, 0
      %1399 = vmatprep.subr.mxu0 0.0
      %1400 = vmatpush1.xpose.msra.mxu0 %v1352
      %1401 = vmatprep.subr.mxu0 0.0
      %1402 = vmatpush1.xpose.msra.mxu0 %v1355
      %1403 = vmatprep.subr.mxu0 0.0
      %1404 = vmatpush1.xpose.msra.mxu0 %v1358
      %1405 = vmatprep.subr.mxu0 0.0
      %1406 = vmatpush1.xpose.msra.mxu0 %v1361
      %1407 = vmatprep.subr.mxu0 0.0
      %1408 = vmatpush1.xpose.msra.mxu0 %v1364
      %1409 = vmatprep.subr.mxu0 0.0
      %1410 = vmatpush1.xpose.msra.mxu0 %v1367
      %1411 = vmatprep.subr.mxu0 0.0
      %1412 = vmatpush1.xpose.msra.mxu0 %v1370
      %1413 = vmatprep.subr.mxu0 0.0
      %1414 = vmatpush1.xpose.msra.mxu0 %v1373
      %1415 = vmatprep.subr.mxu0 0.0
      %1416 = vmatpush1.xpose.msra.mxu0 %v1376
      %1417 = vmatprep.subr.mxu0 0.0
      %1418 = vmatpush1.xpose.msra.mxu0 %v1379
      %1419 = vmatprep.subr.mxu0 0.0
      %1420 = vmatpush1.xpose.msra.mxu0 %v1382
      %1421 = vmatprep.subr.mxu0 0.0
      %1422 = vmatpush1.xpose.msra.mxu0 %v1385
      %1423 = vmatprep.subr.mxu0 0.0
      %1424 = vmatpush1.xpose.msra.mxu0 %v1388
      %1425 = vmatprep.subr.mxu0 0.0
      %1426 = vmatpush1.xpose.msra.mxu0 %v1391
      %1427 = vmatprep.subr.mxu0 0.0
      %1428 = vmatpush1.xpose.msra.mxu0 %v1394
      %1429 = vmatprep.subr.mxu0 0.0
      %1430 = vmatpush1.xpose.msra.mxu0 %v1397
      %1431 = vmatprep.subr.mxu0 0.0
      %1432 = vmatpush1.xpose.msra.mxu0 0.0
      %1433 = vmatprep.subr.mxu0 0.0
      %1434 = vmatpush1.xpose.msra.mxu0 0.0
      %1435 = vmatprep.subr.mxu0 0.0
      %1436 = vmatpush1.xpose.msra.mxu0 0.0
      %1437 = vmatprep.subr.mxu0 0.0
      %1438 = vmatpush1.xpose.msra.mxu0 0.0
      %1439 = vmatprep.subr.mxu0 0.0
      %1440 = vmatpush1.xpose.msra.mxu0 0.0
      %1441 = vmatprep.subr.mxu0 0.0
      %1442 = vmatpush1.xpose.msra.mxu0 0.0
      %1443 = vmatprep.subr.mxu0 0.0
      %1444 = vmatpush1.xpose.msra.mxu0 0.0
      %1445 = vmatprep.subr.mxu0 0.0
      %1446 = vmatpush1.xpose.msra.mxu0 0.0
      %1447 = vmatprep.subr.mxu0 0.0
      %1448 = vmatpush1.xpose.msra.mxu0 0.0
      %1449 = vmatprep.subr.mxu0 0.0
      %1450 = vmatpush1.xpose.msra.mxu0 0.0
      %1451 = vmatprep.subr.mxu0 0.0
      %1452 = vmatpush1.xpose.msra.mxu0 0.0
      %1453 = vmatprep.subr.mxu0 0.0
      %1454 = vmatpush1.xpose.msra.mxu0 0.0
      %1455 = vmatprep.subr.mxu0 0.0
      %1456 = vmatpush1.xpose.msra.mxu0 0.0
      %1457 = vmatprep.subr.mxu0 0.0
      %1458 = vmatpush1.xpose.msra.mxu0 0.0
      %1459 = vmatprep.subr.mxu0 0.0
      %1460 = vmatpush1.xpose.msra.mxu0 0.0
      %1461 = vmatprep.subr.mxu0 0.0
      %1462 = vmatpush1.xpose.msra.mxu0 0.0
      %1463 = vmatprep.mubr.f32.mxu0 0.0
      %1464 = vmatmul.mubr.f32.gmra.mrb[0].mxu0 %v1304
      %v1465 = vpop.f32.mrb[0].mxu0
      %v1466 = vadd.f32 0.0, %v1465
      %v1467 = vpop.f32.mrb[0].mxu0
      %1468 = vmatprep.mubr.f32.mxu0 0.0
      %1469 = vmatmul.mubr.f32.gmra.mrb[0].mxu0 %v1307
      %v1470 = vpop.f32.mrb[0].mxu0
      %v1471 = vadd.f32 0.0, %v1470
      %v1472 = vpop.f32.mrb[0].mxu0
      %1473 = vmatprep.mubr.f32.mxu0 0.0
      %1474 = vmatmul.mubr.f32.gmra.mrb[0].mxu0 %v1310
      %v1475 = vpop.f32.mrb[0].mxu0
      %v1476 = vadd.f32 0.0, %v1475
      %v1477 = vpop.f32.mrb[0].mxu0
      %1478 = vmatprep.mubr.f32.mxu0 0.0
      %1479 = vmatmul.mubr.f32.gmra.mrb[0].mxu0 %v1313
      %v1480 = vpop.f32.mrb[0].mxu0
      %v1481 = vadd.f32 0.0, %v1480
      %v1482 = vpop.f32.mrb[0].mxu0
      %1483 = vmatprep.mubr.f32.mxu0 0.0
      %1484 = vmatmul.mubr.f32.gmra.mrb[0].mxu0 %v1316
      %v1485 = vpop.f32.mrb[0].mxu0
      %v1486 = vadd.f32 0.0, %v1485
      %v1487 = vpop.f32.mrb[0].mxu0
      %1488 = vmatprep.mubr.f32.mxu0 0.0
      %1489 = vmatmul.mubr.f32.gmra.mrb[0].mxu0 %v1319
      %v1490 = vpop.f32.mrb[0].mxu0
      %v1491 = vadd.f32 0.0, %v1490
      %v1492 = vpop.f32.mrb[0].mxu0
      %1493 = vmatprep.mubr.f32.mxu0 0.0
      %1494 = vmatmul.mubr.f32.gmra.mrb[0].mxu0 %v1322
      %v1495 = vpop.f32.mrb[0].mxu0
      %v1496 = vadd.f32 0.0, %v1495
      %v1497 = vpop.f32.mrb[0].mxu0
      %1498 = vmatprep.mubr.f32.mxu0 0.0
      %1499 = vmatmul.mubr.f32.gmra.mrb[0].mxu0 %v1325
      %v1500 = vpop.f32.mrb[0].mxu0
      %v1501 = vadd.f32 0.0, %v1500
      %v1502 = vpop.f32.mrb[0].mxu0
      %1503 = vmatprep.mubr.f32.mxu0 0.0
      %1504 = vmatmul.mubr.f32.gmra.mrb[0].mxu0 %v1328
      %v1505 = vpop.f32.mrb[0].mxu0
      %v1506 = vadd.f32 0.0, %v1505
      %v1507 = vpop.f32.mrb[0].mxu0
      %1508 = vmatprep.mubr.f32.mxu0 0.0
      %1509 = vmatmul.mubr.f32.gmra.mrb[0].mxu0 %v1331
      %v1510 = vpop.f32.mrb[0].mxu0
      %v1511 = vadd.f32 0.0, %v1510
      %v1512 = vpop.f32.mrb[0].mxu0
      %1513 = vmatprep.mubr.f32.mxu0 0.0
      %1514 = vmatmul.mubr.f32.gmra.mrb[0].mxu0 %v1334
      %v1515 = vpop.f32.mrb[0].mxu0
      %v1516 = vadd.f32 0.0, %v1515
      %v1517 = vpop.f32.mrb[0].mxu0
      %1518 = vmatprep.mubr.f32.mxu0 0.0
      %1519 = vmatmul.mubr.f32.gmra.mrb[0].mxu0 %v1337
      %v1520 = vpop.f32.mrb[0].mxu0
      %v1521 = vadd.f32 0.0, %v1520
      %v1522 = vpop.f32.mrb[0].mxu0
      %1523 = vmatprep.mubr.f32.mxu0 0.0
      %1524 = vmatmul.mubr.f32.gmra.mrb[0].mxu0 %v1340
      %v1525 = vpop.f32.mrb[0].mxu0
      %v1526 = vadd.f32 0.0, %v1525
      %v1527 = vpop.f32.mrb[0].mxu0
      %1528 = vmatprep.mubr.f32.mxu0 0.0
      %1529 = vmatmul.mubr.f32.gmra.mrb[0].mxu0 %v1343
      %v1530 = vpop.f32.mrb[0].mxu0
      %v1531 = vadd.f32 0.0, %v1530
      %v1532 = vpop.f32.mrb[0].mxu0
      %1533 = vmatprep.mubr.f32.mxu0 0.0
      %1534 = vmatmul.mubr.f32.gmra.mrb[0].mxu0 %v1346
      %v1535 = vpop.f32.mrb[0].mxu0
      %v1536 = vadd.f32 0.0, %v1535
      %v1537 = vpop.f32.mrb[0].mxu0
      %1538 = vmatprep.mubr.f32.mxu0 0.0
      %1539 = vmatmul.mubr.f32.gmra.mrb[0].mxu0 %v1349
      %v1540 = vpop.f32.mrb[0].mxu0
      %v1541 = vadd.f32 0.0, %v1540
      %v1542 = vpop.f32.mrb[0].mxu0
      %1543 = vdwg.mxu0
      %v1545 = vsel %vm820, %v804, 0
      %v1548 = vsel %vm820, %v805, 0
      %v1551 = vsel %vm820, %v806, 0
      %v1554 = vsel %vm820, %v807, 0
      %v1557 = vsel %vm820, %v808, 0
      %v1560 = vsel %vm820, %v809, 0
      %v1563 = vsel %vm820, %v810, 0
      %v1566 = vsel %vm820, %v811, 0
      %v1569 = vsel %vm820, %v812, 0
      %v1572 = vsel %vm820, %v813, 0
      %v1575 = vsel %vm820, %v814, 0
      %v1578 = vsel %vm820, %v815, 0
      %v1581 = vsel %vm820, %v816, 0
      %v1584 = vsel %vm820, %v817, 0
      %v1587 = vsel %vm820, %v818, 0
      %v1590 = vsel %vm820, %v819, 0
      %v1593 = vsel %vm820, %v676, 0
      %v1596 = vsel %vm820, %v677, 0
      %v1599 = vsel %vm820, %v678, 0
      %v1602 = vsel %vm820, %v679, 0
      %v1605 = vsel %vm820, %v680, 0
      %v1608 = vsel %vm820, %v681, 0
      %v1611 = vsel %vm820, %v682, 0
      %v1614 = vsel %vm820, %v683, 0
      %v1617 = vsel %vm820, %v684, 0
      %v1620 = vsel %vm820, %v685, 0
      %v1623 = vsel %vm820, %v686, 0
      %v1626 = vsel %vm820, %v687, 0
      %v1629 = vsel %vm820, %v688, 0
      %v1632 = vsel %vm820, %v689, 0
      %v1635 = vsel %vm820, %v690, 0
      %v1638 = vsel %vm820, %v691, 0
      %1640 = vmatprep.subr.mxu0 0.0
      %1641 = vmatpush1.xpose.msra.mxu0 %v1593
      %1642 = vmatprep.subr.mxu0 0.0
      %1643 = vmatpush1.xpose.msra.mxu0 %v1596
      %1644 = vmatprep.subr.mxu0 0.0
      %1645 = vmatpush1.xpose.msra.mxu0 %v1599
      %1646 = vmatprep.subr.mxu0 0.0
      %1647 = vmatpush1.xpose.msra.mxu0 %v1602
      %1648 = vmatprep.subr.mxu0 0.0
      %1649 = vmatpush1.xpose.msra.mxu0 %v1605
      %1650 = vmatprep.subr.mxu0 0.0
      %1651 = vmatpush1.xpose.msra.mxu0 %v1608
      %1652 = vmatprep.subr.mxu0 0.0
      %1653 = vmatpush1.xpose.msra.mxu0 %v1611
      %1654 = vmatprep.subr.mxu0 0.0
      %1655 = vmatpush1.xpose.msra.mxu0 %v1614
      %1656 = vmatprep.subr.mxu0 0.0
      %1657 = vmatpush1.xpose.msra.mxu0 %v1617
      %1658 = vmatprep.subr.mxu0 0.0
      %1659 = vmatpush1.xpose.msra.mxu0 %v1620
      %1660 = vmatprep.subr.mxu0 0.0
      %1661 = vmatpush1.xpose.msra.mxu0 %v1623
      %1662 = vmatprep.subr.mxu0 0.0
      %1663 = vmatpush1.xpose.msra.mxu0 %v1626
      %1664 = vmatprep.subr.mxu0 0.0
      %1665 = vmatpush1.xpose.msra.mxu0 %v1629
      %1666 = vmatprep.subr.mxu0 0.0
      %1667 = vmatpush1.xpose.msra.mxu0 %v1632
      %1668 = vmatprep.subr.mxu0 0.0
      %1669 = vmatpush1.xpose.msra.mxu0 %v1635
      %1670 = vmatprep.subr.mxu0 0.0
      %1671 = vmatpush1.xpose.msra.mxu0 %v1638
      %1672 = vmatprep.subr.mxu0 0.0
      %1673 = vmatpush1.xpose.msra.mxu0 0.0
      %1674 = vmatprep.subr.mxu0 0.0
      %1675 = vmatpush1.xpose.msra.mxu0 0.0
      %1676 = vmatprep.subr.mxu0 0.0
      %1677 = vmatpush1.xpose.msra.mxu0 0.0
      %1678 = vmatprep.subr.mxu0 0.0
      %1679 = vmatpush1.xpose.msra.mxu0 0.0
      %1680 = vmatprep.subr.mxu0 0.0
      %1681 = vmatpush1.xpose.msra.mxu0 0.0
      %1682 = vmatprep.subr.mxu0 0.0
      %1683 = vmatpush1.xpose.msra.mxu0 0.0
      %1684 = vmatprep.subr.mxu0 0.0
      %1685 = vmatpush1.xpose.msra.mxu0 0.0
      %1686 = vmatprep.subr.mxu0 0.0
      %1687 = vmatpush1.xpose.msra.mxu0 0.0
      %1688 = vmatprep.subr.mxu0 0.0
      %1689 = vmatpush1.xpose.msra.mxu0 0.0
      %1690 = vmatprep.subr.mxu0 0.0
      %1691 = vmatpush1.xpose.msra.mxu0 0.0
      %1692 = vmatprep.subr.mxu0 0.0
      %1693 = vmatpush1.xpose.msra.mxu0 0.0
      %1694 = vmatprep.subr.mxu0 0.0
      %1695 = vmatpush1.xpose.msra.mxu0 0.0
      %1696 = vmatprep.subr.mxu0 0.0
      %1697 = vmatpush1.xpose.msra.mxu0 0.0
      %1698 = vmatprep.subr.mxu0 0.0
      %1699 = vmatpush1.xpose.msra.mxu0 0.0
      %1700 = vmatprep.subr.mxu0 0.0
      %1701 = vmatpush1.xpose.msra.mxu0 0.0
      %1702 = vmatprep.subr.mxu0 0.0
      %1703 = vmatpush1.xpose.msra.mxu0 0.0
      %1704 = vmatprep.mubr.f32.mxu0 0.0
      %1705 = vmatmul.mubr.f32.gmra.mrb[0].mxu0 %v1545
      %v1706 = vpop.f32.mrb[0].mxu0
      %v1707 = vadd.f32 0.0, %v1706
      %v1708 = vpop.f32.mrb[0].mxu0
      %1709 = vmatprep.mubr.f32.mxu0 0.0
      %1710 = vmatmul.mubr.f32.gmra.mrb[0].mxu0 %v1548
      %v1711 = vpop.f32.mrb[0].mxu0
      %v1712 = vadd.f32 0.0, %v1711
      %v1713 = vpop.f32.mrb[0].mxu0
      %1714 = vmatprep.mubr.f32.mxu0 0.0
      %1715 = vmatmul.mubr.f32.gmra.mrb[0].mxu0 %v1551
      %v1716 = vpop.f32.mrb[0].mxu0
      %v1717 = vadd.f32 0.0, %v1716
      %v1718 = vpop.f32.mrb[0].mxu0
      %1719 = vmatprep.mubr.f32.mxu0 0.0
      %1720 = vmatmul.mubr.f32.gmra.mrb[0].mxu0 %v1554
      %v1721 = vpop.f32.mrb[0].mxu0
      %v1722 = vadd.f32 0.0, %v1721
      %v1723 = vpop.f32.mrb[0].mxu0
      %1724 = vmatprep.mubr.f32.mxu0 0.0
      %1725 = vmatmul.mubr.f32.gmra.mrb[0].mxu0 %v1557
      %v1726 = vpop.f32.mrb[0].mxu0
      %v1727 = vadd.f32 0.0, %v1726
      %v1728 = vpop.f32.mrb[0].mxu0
      %1729 = vmatprep.mubr.f32.mxu0 0.0
      %1730 = vmatmul.mubr.f32.gmra.mrb[0].mxu0 %v1560
      %v1731 = vpop.f32.mrb[0].mxu0
      %v1732 = vadd.f32 0.0, %v1731
      %v1733 = vpop.f32.mrb[0].mxu0
      %1734 = vmatprep.mubr.f32.mxu0 0.0
      %1735 = vmatmul.mubr.f32.gmra.mrb[0].mxu0 %v1563
      %v1736 = vpop.f32.mrb[0].mxu0
      %v1737 = vadd.f32 0.0, %v1736
      %v1738 = vpop.f32.mrb[0].mxu0
      %1739 = vmatprep.mubr.f32.mxu0 0.0
      %1740 = vmatmul.mubr.f32.gmra.mrb[0].mxu0 %v1566
      %v1741 = vpop.f32.mrb[0].mxu0
      %v1742 = vadd.f32 0.0, %v1741
      %v1743 = vpop.f32.mrb[0].mxu0
      %1744 = vmatprep.mubr.f32.mxu0 0.0
      %1745 = vmatmul.mubr.f32.gmra.mrb[0].mxu0 %v1569
      %v1746 = vpop.f32.mrb[0].mxu0
      %v1747 = vadd.f32 0.0, %v1746
      %v1748 = vpop.f32.mrb[0].mxu0
      %1749 = vmatprep.mubr.f32.mxu0 0.0
      %1750 = vmatmul.mubr.f32.gmra.mrb[0].mxu0 %v1572
      %v1751 = vpop.f32.mrb[0].mxu0
      %v1752 = vadd.f32 0.0, %v1751
      %v1753 = vpop.f32.mrb[0].mxu0
      %1754 = vmatprep.mubr.f32.mxu0 0.0
      %1755 = vmatmul.mubr.f32.gmra.mrb[0].mxu0 %v1575
      %v1756 = vpop.f32.mrb[0].mxu0
      %v1757 = vadd.f32 0.0, %v1756
      %v1758 = vpop.f32.mrb[0].mxu0
      %1759 = vmatprep.mubr.f32.mxu0 0.0
      %1760 = vmatmul.mubr.f32.gmra.mrb[0].mxu0 %v1578
      %v1761 = vpop.f32.mrb[0].mxu0
      %v1762 = vadd.f32 0.0, %v1761
      %v1763 = vpop.f32.mrb[0].mxu0
      %1764 = vmatprep.mubr.f32.mxu0 0.0
      %1765 = vmatmul.mubr.f32.gmra.mrb[0].mxu0 %v1581
      %v1766 = vpop.f32.mrb[0].mxu0
      %v1767 = vadd.f32 0.0, %v1766
      %v1768 = vpop.f32.mrb[0].mxu0
      %1769 = vmatprep.mubr.f32.mxu0 0.0
      %1770 = vmatmul.mubr.f32.gmra.mrb[0].mxu0 %v1584
      %v1771 = vpop.f32.mrb[0].mxu0
      %v1772 = vadd.f32 0.0, %v1771
      %v1773 = vpop.f32.mrb[0].mxu0
      %1774 = vmatprep.mubr.f32.mxu0 0.0
      %1775 = vmatmul.mubr.f32.gmra.mrb[0].mxu0 %v1587
      %v1776 = vpop.f32.mrb[0].mxu0
      %v1777 = vadd.f32 0.0, %v1776
      %v1778 = vpop.f32.mrb[0].mxu0
      %1779 = vmatprep.mubr.f32.mxu0 0.0
      %1780 = vmatmul.mubr.f32.gmra.mrb[0].mxu0 %v1590
      %v1781 = vpop.f32.mrb[0].mxu0
      %v1782 = vadd.f32 0.0, %v1781
      %v1783 = vpop.f32.mrb[0].mxu0
      %1784 = vdwg.mxu0
      %s1785 = smul.u32 %s23, 128
      %v1786 = vlaneseq
      %v1787 = vand.u32 %v1786, 127
      %v1788 = vstv %s1785
      %v1789 = vadd.s32 %v1788, %v1787
      %vm1790 = vcmp.lt.s32.totalorder %v1789, 8
      %v1791 = vsel %vm1790, 1, 0
      %vm1792 = vcmp.eq.s32.totalorder %v1791, 1
      %v1793 = vsel %vm1792, %v984, -1e+30
      %v1794 = vsel %vm1792, %v989, -1e+30
      %v1795 = vsel %vm1792, %v994, -1e+30
      %v1796 = vsel %vm1792, %v999, -1e+30
      %v1797 = vsel %vm1792, %v1004, -1e+30
      %v1798 = vsel %vm1792, %v1009, -1e+30
      %v1799 = vsel %vm1792, %v1014, -1e+30
      %v1800 = vsel %vm1792, %v1019, -1e+30
      %v1801 = vsel %vm1792, %v1024, -1e+30
      %v1802 = vsel %vm1792, %v1029, -1e+30
      %v1803 = vsel %vm1792, %v1034, -1e+30
      %v1804 = vsel %vm1792, %v1039, -1e+30
      %v1805 = vsel %vm1792, %v1044, -1e+30
      %v1806 = vsel %vm1792, %v1049, -1e+30
      %v1807 = vsel %vm1792, %v1054, -1e+30
      %v1808 = vsel %vm1792, %v1059, -1e+30
      %v1809 = vsel %vm1792, %v1225, -1e+30
      %v1810 = vsel %vm1792, %v1230, -1e+30
      %v1811 = vsel %vm1792, %v1235, -1e+30
      %v1812 = vsel %vm1792, %v1240, -1e+30
      %v1813 = vsel %vm1792, %v1245, -1e+30
      %v1814 = vsel %vm1792, %v1250, -1e+30
      %v1815 = vsel %vm1792, %v1255, -1e+30
      %v1816 = vsel %vm1792, %v1260, -1e+30
      %v1817 = vsel %vm1792, %v1265, -1e+30
      %v1818 = vsel %vm1792, %v1270, -1e+30
      %v1819 = vsel %vm1792, %v1275, -1e+30
      %v1820 = vsel %vm1792, %v1280, -1e+30
      %v1821 = vsel %vm1792, %v1285, -1e+30
      %v1822 = vsel %vm1792, %v1290, -1e+30
      %v1823 = vsel %vm1792, %v1295, -1e+30
      %v1824 = vsel %vm1792, %v1300, -1e+30
      %v1825 = vsel %vm1792, %v1466, -1e+30
      %v1826 = vsel %vm1792, %v1471, -1e+30
      %v1827 = vsel %vm1792, %v1476, -1e+30
      %v1828 = vsel %vm1792, %v1481, -1e+30
      %v1829 = vsel %vm1792, %v1486, -1e+30
      %v1830 = vsel %vm1792, %v1491, -1e+30
      %v1831 = vsel %vm1792, %v1496, -1e+30
      %v1832 = vsel %vm1792, %v1501, -1e+30
      %v1833 = vsel %vm1792, %v1506, -1e+30
      %v1834 = vsel %vm1792, %v1511, -1e+30
      %v1835 = vsel %vm1792, %v1516, -1e+30
      %v1836 = vsel %vm1792, %v1521, -1e+30
      %v1837 = vsel %vm1792, %v1526, -1e+30
      %v1838 = vsel %vm1792, %v1531, -1e+30
      %v1839 = vsel %vm1792, %v1536, -1e+30
      %v1840 = vsel %vm1792, %v1541, -1e+30
      %v1841 = vsel %vm1792, %v1707, -1e+30
      %v1842 = vsel %vm1792, %v1712, -1e+30
      %v1843 = vsel %vm1792, %v1717, -1e+30
      %v1844 = vsel %vm1792, %v1722, -1e+30
      %v1845 = vsel %vm1792, %v1727, -1e+30
      %v1846 = vsel %vm1792, %v1732, -1e+30
      %v1847 = vsel %vm1792, %v1737, -1e+30
      %v1848 = vsel %vm1792, %v1742, -1e+30
      %v1849 = vsel %vm1792, %v1747, -1e+30
      %v1850 = vsel %vm1792, %v1752, -1e+30
      %v1851 = vsel %vm1792, %v1757, -1e+30
      %v1852 = vsel %vm1792, %v1762, -1e+30
      %v1853 = vsel %vm1792, %v1767, -1e+30
      %v1854 = vsel %vm1792, %v1772, -1e+30
      %v1855 = vsel %vm1792, %v1777, -1e+30
      %v1856 = vsel %vm1792, %v1782, -1e+30
      %v1857 = vld [vmem:[#allocation2] sm:$0xff]
      %v1858 = vld [vmem:[#allocation2 + $0x8] sm:$0xff]
      %v1859 = vld [vmem:[#allocation2 + $0x10] sm:$0xff]
      %v1860 = vld [vmem:[#allocation2 + $0x18] sm:$0xff]
      %v1861 = vld [vmem:[#allocation2 + $0x20] sm:$0xff]
      %v1862 = vld [vmem:[#allocation2 + $0x28] sm:$0xff]
      %v1863 = vld [vmem:[#allocation2 + $0x30] sm:$0xff]
      %v1864 = vld [vmem:[#allocation2 + $0x38] sm:$0xff]
      %v1865 = vld [vmem:[#allocation2 + $0x40] sm:$0xff]
      %v1866 = vld [vmem:[#allocation2 + $0x48] sm:$0xff]
      %v1867 = vld [vmem:[#allocation2 + $0x50] sm:$0xff]
      %v1868 = vld [vmem:[#allocation2 + $0x58] sm:$0xff]
      %v1869 = vld [vmem:[#allocation2 + $0x60] sm:$0xff]
      %v1870 = vld [vmem:[#allocation2 + $0x68] sm:$0xff]
      %v1871 = vld [vmem:[#allocation2 + $0x70] sm:$0xff]
      %v1872 = vld [vmem:[#allocation2 + $0x78] sm:$0xff]
      %v1873 = vld [vmem:[#allocation2 + $0x80] sm:$0xff]
      %v1874 = vld [vmem:[#allocation2 + $0x88] sm:$0xff]
      %v1875 = vld [vmem:[#allocation2 + $0x90] sm:$0xff]
      %v1876 = vld [vmem:[#allocation2 + $0x98] sm:$0xff]
      %v1877 = vld [vmem:[#allocation2 + $0xa0] sm:$0xff]
      %v1878 = vld [vmem:[#allocation2 + $0xa8] sm:$0xff]
      %v1879 = vld [vmem:[#allocation2 + $0xb0] sm:$0xff]
      %v1880 = vld [vmem:[#allocation2 + $0xb8] sm:$0xff]
      %v1881 = vld [vmem:[#allocation2 + $0xc0] sm:$0xff]
      %v1882 = vld [vmem:[#allocation2 + $0xc8] sm:$0xff]
      %v1883 = vld [vmem:[#allocation2 + $0xd0] sm:$0xff]
      %v1884 = vld [vmem:[#allocation2 + $0xd8] sm:$0xff]
      %v1885 = vld [vmem:[#allocation2 + $0xe0] sm:$0xff]
      %v1886 = vld [vmem:[#allocation2 + $0xe8] sm:$0xff]
      %v1887 = vld [vmem:[#allocation2 + $0xf0] sm:$0xff]
      %v1888 = vld [vmem:[#allocation2 + $0xf8] sm:$0xff]
      %v1889 = vld [vmem:[#allocation2 + $0x100] sm:$0xff]
      %v1890 = vld [vmem:[#allocation2 + $0x108] sm:$0xff]
      %v1891 = vld [vmem:[#allocation2 + $0x110] sm:$0xff]
      %v1892 = vld [vmem:[#allocation2 + $0x118] sm:$0xff]
      %v1893 = vld [vmem:[#allocation2 + $0x120] sm:$0xff]
      %v1894 = vld [vmem:[#allocation2 + $0x128] sm:$0xff]
      %v1895 = vld [vmem:[#allocation2 + $0x130] sm:$0xff]
      %v1896 = vld [vmem:[#allocation2 + $0x138] sm:$0xff]
      %v1897 = vld [vmem:[#allocation2 + $0x140] sm:$0xff]
      %v1898 = vld [vmem:[#allocation2 + $0x148] sm:$0xff]
      %v1899 = vld [vmem:[#allocation2 + $0x150] sm:$0xff]
      %v1900 = vld [vmem:[#allocation2 + $0x158] sm:$0xff]
      %v1901 = vld [vmem:[#allocation2 + $0x160] sm:$0xff]
      %v1902 = vld [vmem:[#allocation2 + $0x168] sm:$0xff]
      %v1903 = vld [vmem:[#allocation2 + $0x170] sm:$0xff]
      %v1904 = vld [vmem:[#allocation2 + $0x178] sm:$0xff]
      %v1905 = vld [vmem:[#allocation2 + $0x180] sm:$0xff]
      %v1906 = vld [vmem:[#allocation2 + $0x188] sm:$0xff]
      %v1907 = vld [vmem:[#allocation2 + $0x190] sm:$0xff]
      %v1908 = vld [vmem:[#allocation2 + $0x198] sm:$0xff]
      %v1909 = vld [vmem:[#allocation2 + $0x1a0] sm:$0xff]
      %v1910 = vld [vmem:[#allocation2 + $0x1a8] sm:$0xff]
      %v1911 = vld [vmem:[#allocation2 + $0x1b0] sm:$0xff]
      %v1912 = vld [vmem:[#allocation2 + $0x1b8] sm:$0xff]
      %v1913 = vld [vmem:[#allocation2 + $0x1c0] sm:$0xff]
      %v1914 = vld [vmem:[#allocation2 + $0x1c8] sm:$0xff]
      %v1915 = vld [vmem:[#allocation2 + $0x1d0] sm:$0xff]
      %v1916 = vld [vmem:[#allocation2 + $0x1d8] sm:$0xff]
      %v1917 = vld [vmem:[#allocation2 + $0x1e0] sm:$0xff]
      %v1918 = vld [vmem:[#allocation2 + $0x1e8] sm:$0xff]
      %v1919 = vld [vmem:[#allocation2 + $0x1f0] sm:$0xff]
      %v1920 = vld [vmem:[#allocation2 + $0x1f8] sm:$0xff]
      %1921 = vmax.xlane.f32.xlu0 %v1793
      %v1922 = vpop.xlane.xlu0 %1921
      %1923 = vmax.xlane.f32.xlu0 %v1794
      %v1924 = vpop.xlane.xlu0 %1923
      %1925 = vmax.xlane.f32.xlu0 %v1795
      %v1926 = vpop.xlane.xlu0 %1925
      %1927 = vmax.xlane.f32.xlu0 %v1796
      %v1928 = vpop.xlane.xlu0 %1927
      %1929 = vmax.xlane.f32.xlu0 %v1797
      %v1930 = vpop.xlane.xlu0 %1929
      %1931 = vmax.xlane.f32.xlu0 %v1798
      %v1932 = vpop.xlane.xlu0 %1931
      %1933 = vmax.xlane.f32.xlu0 %v1799
      %v1934 = vpop.xlane.xlu0 %1933
      %1935 = vmax.xlane.f32.xlu0 %v1800
      %v1936 = vpop.xlane.xlu0 %1935
      %1937 = vmax.xlane.f32.xlu0 %v1801
      %v1938 = vpop.xlane.xlu0 %1937
      %1939 = vmax.xlane.f32.xlu0 %v1802
      %v1940 = vpop.xlane.xlu0 %1939
      %1941 = vmax.xlane.f32.xlu0 %v1803
      %v1942 = vpop.xlane.xlu0 %1941
      %1943 = vmax.xlane.f32.xlu0 %v1804
      %v1944 = vpop.xlane.xlu0 %1943
      %1945 = vmax.xlane.f32.xlu0 %v1805
      %v1946 = vpop.xlane.xlu0 %1945
      %1947 = vmax.xlane.f32.xlu0 %v1806
      %v1948 = vpop.xlane.xlu0 %1947
      %1949 = vmax.xlane.f32.xlu0 %v1807
      %v1950 = vpop.xlane.xlu0 %1949
      %1951 = vmax.xlane.f32.xlu0 %v1808
      %v1952 = vpop.xlane.xlu0 %1951
      %1953 = vmax.xlane.f32.xlu0 %v1809
      %v1954 = vpop.xlane.xlu0 %1953
      %1955 = vmax.xlane.f32.xlu0 %v1810
      %v1956 = vpop.xlane.xlu0 %1955
      %1957 = vmax.xlane.f32.xlu0 %v1811
      %v1958 = vpop.xlane.xlu0 %1957
      %1959 = vmax.xlane.f32.xlu0 %v1812
      %v1960 = vpop.xlane.xlu0 %1959
      %1961 = vmax.xlane.f32.xlu0 %v1813
      %v1962 = vpop.xlane.xlu0 %1961
      %1963 = vmax.xlane.f32.xlu0 %v1814
      %v1964 = vpop.xlane.xlu0 %1963
      %1965 = vmax.xlane.f32.xlu0 %v1815
      %v1966 = vpop.xlane.xlu0 %1965
      %1967 = vmax.xlane.f32.xlu0 %v1816
      %v1968 = vpop.xlane.xlu0 %1967
      %1969 = vmax.xlane.f32.xlu0 %v1817
      %v1970 = vpop.xlane.xlu0 %1969
      %1971 = vmax.xlane.f32.xlu0 %v1818
      %v1972 = vpop.xlane.xlu0 %1971
      %1973 = vmax.xlane.f32.xlu0 %v1819
      %v1974 = vpop.xlane.xlu0 %1973
      %1975 = vmax.xlane.f32.xlu0 %v1820
      %v1976 = vpop.xlane.xlu0 %1975
      %1977 = vmax.xlane.f32.xlu0 %v1821
      %v1978 = vpop.xlane.xlu0 %1977
      %1979 = vmax.xlane.f32.xlu0 %v1822
      %v1980 = vpop.xlane.xlu0 %1979
      %1981 = vmax.xlane.f32.xlu0 %v1823
      %v1982 = vpop.xlane.xlu0 %1981
      %1983 = vmax.xlane.f32.xlu0 %v1824
      %v1984 = vpop.xlane.xlu0 %1983
      %1985 = vmax.xlane.f32.xlu0 %v1825
      %v1986 = vpop.xlane.xlu0 %1985
      %1987 = vmax.xlane.f32.xlu0 %v1826
      %v1988 = vpop.xlane.xlu0 %1987
      %1989 = vmax.xlane.f32.xlu0 %v1827
      %v1990 = vpop.xlane.xlu0 %1989
      %1991 = vmax.xlane.f32.xlu0 %v1828
      %v1992 = vpop.xlane.xlu0 %1991
      %1993 = vmax.xlane.f32.xlu0 %v1829
      %v1994 = vpop.xlane.xlu0 %1993
      %1995 = vmax.xlane.f32.xlu0 %v1830
      %v1996 = vpop.xlane.xlu0 %1995
      %1997 = vmax.xlane.f32.xlu0 %v1831
      %v1998 = vpop.xlane.xlu0 %1997
      %1999 = vmax.xlane.f32.xlu0 %v1832
      %v2000 = vpop.xlane.xlu0 %1999
      %2001 = vmax.xlane.f32.xlu0 %v1833
      %v2002 = vpop.xlane.xlu0 %2001
      %2003 = vmax.xlane.f32.xlu0 %v1834
      %v2004 = vpop.xlane.xlu0 %2003
      %2005 = vmax.xlane.f32.xlu0 %v1835
      %v2006 = vpop.xlane.xlu0 %2005
      %2007 = vmax.xlane.f32.xlu0 %v1836
      %v2008 = vpop.xlane.xlu0 %2007
      %2009 = vmax.xlane.f32.xlu0 %v1837
      %v2010 = vpop.xlane.xlu0 %2009
      %2011 = vmax.xlane.f32.xlu0 %v1838
      %v2012 = vpop.xlane.xlu0 %2011
      %2013 = vmax.xlane.f32.xlu0 %v1839
      %v2014 = vpop.xlane.xlu0 %2013
      %2015 = vmax.xlane.f32.xlu0 %v1840
      %v2016 = vpop.xlane.xlu0 %2015
      %2017 = vmax.xlane.f32.xlu0 %v1841
      %v2018 = vpop.xlane.xlu0 %2017
      %2019 = vmax.xlane.f32.xlu0 %v1842
      %v2020 = vpop.xlane.xlu0 %2019
      %2021 = vmax.xlane.f32.xlu0 %v1843
      %v2022 = vpop.xlane.xlu0 %2021
      %2023 = vmax.xlane.f32.xlu0 %v1844
      %v2024 = vpop.xlane.xlu0 %2023
      %2025 = vmax.xlane.f32.xlu0 %v1845
      %v2026 = vpop.xlane.xlu0 %2025
      %2027 = vmax.xlane.f32.xlu0 %v1846
      %v2028 = vpop.xlane.xlu0 %2027
      %2029 = vmax.xlane.f32.xlu0 %v1847
      %v2030 = vpop.xlane.xlu0 %2029
      %2031 = vmax.xlane.f32.xlu0 %v1848
      %v2032 = vpop.xlane.xlu0 %2031
      %2033 = vmax.xlane.f32.xlu0 %v1849
      %v2034 = vpop.xlane.xlu0 %2033
      %2035 = vmax.xlane.f32.xlu0 %v1850
      %v2036 = vpop.xlane.xlu0 %2035
      %2037 = vmax.xlane.f32.xlu0 %v1851
      %v2038 = vpop.xlane.xlu0 %2037
      %2039 = vmax.xlane.f32.xlu0 %v1852
      %v2040 = vpop.xlane.xlu0 %2039
      %2041 = vmax.xlane.f32.xlu0 %v1853
      %v2042 = vpop.xlane.xlu0 %2041
      %2043 = vmax.xlane.f32.xlu0 %v1854
      %v2044 = vpop.xlane.xlu0 %2043
      %2045 = vmax.xlane.f32.xlu0 %v1855
      %v2046 = vpop.xlane.xlu0 %2045
      %2047 = vmax.xlane.f32.xlu0 %v1856
      %v2048 = vpop.xlane.xlu0 %2047
      %v2049 = vmax.f32 %v1857, %v1922
      %v2050 = vmax.f32 %v1858, %v1924
      %v2051 = vmax.f32 %v1859, %v1926
      %v2052 = vmax.f32 %v1860, %v1928
      %v2053 = vmax.f32 %v1861, %v1930
      %v2054 = vmax.f32 %v1862, %v1932
      %v2055 = vmax.f32 %v1863, %v1934
      %v2056 = vmax.f32 %v1864, %v1936
      %v2057 = vmax.f32 %v1865, %v1938
      %v2058 = vmax.f32 %v1866, %v1940
      %v2059 = vmax.f32 %v1867, %v1942
      %v2060 = vmax.f32 %v1868, %v1944
      %v2061 = vmax.f32 %v1869, %v1946
      %v2062 = vmax.f32 %v1870, %v1948
      %v2063 = vmax.f32 %v1871, %v1950
      %v2064 = vmax.f32 %v1872, %v1952
      %v2065 = vmax.f32 %v1873, %v1954
      %v2066 = vmax.f32 %v1874, %v1956
      %v2067 = vmax.f32 %v1875, %v1958
      %v2068 = vmax.f32 %v1876, %v1960
      %v2069 = vmax.f32 %v1877, %v1962
      %v2070 = vmax.f32 %v1878, %v1964
      %v2071 = vmax.f32 %v1879, %v1966
      %v2072 = vmax.f32 %v1880, %v1968
      %v2073 = vmax.f32 %v1881, %v1970
      %v2074 = vmax.f32 %v1882, %v1972
      %v2075 = vmax.f32 %v1883, %v1974
      %v2076 = vmax.f32 %v1884, %v1976
      %v2077 = vmax.f32 %v1885, %v1978
      %v2078 = vmax.f32 %v1886, %v1980
      %v2079 = vmax.f32 %v1887, %v1982
      %v2080 = vmax.f32 %v1888, %v1984
      %v2081 = vmax.f32 %v1889, %v1986
      %v2082 = vmax.f32 %v1890, %v1988
      %v2083 = vmax.f32 %v1891, %v1990
      %v2084 = vmax.f32 %v1892, %v1992
      %v2085 = vmax.f32 %v1893, %v1994
      %v2086 = vmax.f32 %v1894, %v1996
      %v2087 = vmax.f32 %v1895, %v1998
      %v2088 = vmax.f32 %v1896, %v2000
      %v2089 = vmax.f32 %v1897, %v2002
      %v2090 = vmax.f32 %v1898, %v2004
      %v2091 = vmax.f32 %v1899, %v2006
      %v2092 = vmax.f32 %v1900, %v2008
      %v2093 = vmax.f32 %v1901, %v2010
      %v2094 = vmax.f32 %v1902, %v2012
      %v2095 = vmax.f32 %v1903, %v2014
      %v2096 = vmax.f32 %v1904, %v2016
      %v2097 = vmax.f32 %v1905, %v2018
      %v2098 = vmax.f32 %v1906, %v2020
      %v2099 = vmax.f32 %v1907, %v2022
      %v2100 = vmax.f32 %v1908, %v2024
      %v2101 = vmax.f32 %v1909, %v2026
      %v2102 = vmax.f32 %v1910, %v2028
      %v2103 = vmax.f32 %v1911, %v2030
      %v2104 = vmax.f32 %v1912, %v2032
      %v2105 = vmax.f32 %v1913, %v2034
      %v2106 = vmax.f32 %v1914, %v2036
      %v2107 = vmax.f32 %v1915, %v2038
      %v2108 = vmax.f32 %v1916, %v2040
      %v2109 = vmax.f32 %v1917, %v2042
      %v2110 = vmax.f32 %v1918, %v2044
      %v2111 = vmax.f32 %v1919, %v2046
      %v2112 = vmax.f32 %v1920, %v2048
      %v2113 = vsub.f32 %v1857, %v2049
      %v2114 = vsub.f32 %v1858, %v2050
      %v2115 = vsub.f32 %v1859, %v2051
      %v2116 = vsub.f32 %v1860, %v2052
      %v2117 = vsub.f32 %v1861, %v2053
      %v2118 = vsub.f32 %v1862, %v2054
      %v2119 = vsub.f32 %v1863, %v2055
      %v2120 = vsub.f32 %v1864, %v2056
      %v2121 = vsub.f32 %v1865, %v2057
      %v2122 = vsub.f32 %v1866, %v2058
      %v2123 = vsub.f32 %v1867, %v2059
      %v2124 = vsub.f32 %v1868, %v2060
      %v2125 = vsub.f32 %v1869, %v2061
      %v2126 = vsub.f32 %v1870, %v2062
      %v2127 = vsub.f32 %v1871, %v2063
      %v2128 = vsub.f32 %v1872, %v2064
      %v2129 = vsub.f32 %v1873, %v2065
      %v2130 = vsub.f32 %v1874, %v2066
      %v2131 = vsub.f32 %v1875, %v2067
      %v2132 = vsub.f32 %v1876, %v2068
      %v2133 = vsub.f32 %v1877, %v2069
      %v2134 = vsub.f32 %v1878, %v2070
      %v2135 = vsub.f32 %v1879, %v2071
      %v2136 = vsub.f32 %v1880, %v2072
      %v2137 = vsub.f32 %v1881, %v2073
      %v2138 = vsub.f32 %v1882, %v2074
      %v2139 = vsub.f32 %v1883, %v2075
      %v2140 = vsub.f32 %v1884, %v2076
      %v2141 = vsub.f32 %v1885, %v2077
      %v2142 = vsub.f32 %v1886, %v2078
      %v2143 = vsub.f32 %v1887, %v2079
      %v2144 = vsub.f32 %v1888, %v2080
      %v2145 = vsub.f32 %v1889, %v2081
      %v2146 = vsub.f32 %v1890, %v2082
      %v2147 = vsub.f32 %v1891, %v2083
      %v2148 = vsub.f32 %v1892, %v2084
      %v2149 = vsub.f32 %v1893, %v2085
      %v2150 = vsub.f32 %v1894, %v2086
      %v2151 = vsub.f32 %v1895, %v2087
      %v2152 = vsub.f32 %v1896, %v2088
      %v2153 = vsub.f32 %v1897, %v2089
      %v2154 = vsub.f32 %v1898, %v2090
      %v2155 = vsub.f32 %v1899, %v2091
      %v2156 = vsub.f32 %v1900, %v2092
      %v2157 = vsub.f32 %v1901, %v2093
      %v2158 = vsub.f32 %v1902, %v2094
      %v2159 = vsub.f32 %v1903, %v2095
      %v2160 = vsub.f32 %v1904, %v2096
      %v2161 = vsub.f32 %v1905, %v2097
      %v2162 = vsub.f32 %v1906, %v2098
      %v2163 = vsub.f32 %v1907, %v2099
      %v2164 = vsub.f32 %v1908, %v2100
      %v2165 = vsub.f32 %v1909, %v2101
      %v2166 = vsub.f32 %v1910, %v2102
      %v2167 = vsub.f32 %v1911, %v2103
      %v2168 = vsub.f32 %v1912, %v2104
      %v2169 = vsub.f32 %v1913, %v2105
      %v2170 = vsub.f32 %v1914, %v2106
      %v2171 = vsub.f32 %v1915, %v2107
      %v2172 = vsub.f32 %v1916, %v2108
      %v2173 = vsub.f32 %v1917, %v2109
      %v2174 = vsub.f32 %v1918, %v2110
      %v2175 = vsub.f32 %v1919, %v2111
      %v2176 = vsub.f32 %v1920, %v2112
      %v2177 = vpow.pop %v2113
      %v2178 = vpow.pop %v2114
      %v2179 = vpow.pop %v2115
      %v2180 = vpow.pop %v2116
      %v2181 = vpow.pop %v2117
      %v2182 = vpow.pop %v2118
      %v2183 = vpow.pop %v2119
      %v2184 = vpow.pop %v2120
      %v2185 = vpow.pop %v2121
      %v2186 = vpow.pop %v2122
      %v2187 = vpow.pop %v2123
      %v2188 = vpow.pop %v2124
      %v2189 = vpow.pop %v2125
      %v2190 = vpow.pop %v2126
      %v2191 = vpow.pop %v2127
      %v2192 = vpow.pop %v2128
      %v2193 = vpow.pop %v2129
      %v2194 = vpow.pop %v2130
      %v2195 = vpow.pop %v2131
      %v2196 = vpow.pop %v2132
      %v2197 = vpow.pop %v2133
      %v2198 = vpow.pop %v2134
      %v2199 = vpow.pop %v2135
      %v2200 = vpow.pop %v2136
      %v2201 = vpow.pop %v2137
      %v2202 = vpow.pop %v2138
      %v2203 = vpow.pop %v2139
      %v2204 = vpow.pop %v2140
      %v2205 = vpow.pop %v2141
      %v2206 = vpow.pop %v2142
      %v2207 = vpow.pop %v2143
      %v2208 = vpow.pop %v2144
      %v2209 = vpow.pop %v2145
      %v2210 = vpow.pop %v2146
      %v2211 = vpow.pop %v2147
      %v2212 = vpow.pop %v2148
      %v2213 = vpow.pop %v2149
      %v2214 = vpow.pop %v2150
      %v2215 = vpow.pop %v2151
      %v2216 = vpow.pop %v2152
      %v2217 = vpow.pop %v2153
      %v2218 = vpow.pop %v2154
      %v2219 = vpow.pop %v2155
      %v2220 = vpow.pop %v2156
      %v2221 = vpow.pop %v2157
      %v2222 = vpow.pop %v2158
      %v2223 = vpow.pop %v2159
      %v2224 = vpow.pop %v2160
      %v2225 = vpow.pop %v2161
      %v2226 = vpow.pop %v2162
      %v2227 = vpow.pop %v2163
      %v2228 = vpow.pop %v2164
      %v2229 = vpow.pop %v2165
      %v2230 = vpow.pop %v2166
      %v2231 = vpow.pop %v2167
      %v2232 = vpow.pop %v2168
      %v2233 = vpow.pop %v2169
      %v2234 = vpow.pop %v2170
      %v2235 = vpow.pop %v2171
      %v2236 = vpow.pop %v2172
      %v2237 = vpow.pop %v2173
      %v2238 = vpow.pop %v2174
      %v2239 = vpow.pop %v2175
      %v2240 = vpow.pop %v2176
      %2242 = vset.pattern.permute.xlu0 0
      %2243 = vperm.xlu0 %2242, %v2049
      %v2244 = vpop.permute.xlu0 %2243
      %2247 = vset.pattern.permute.xlu0 0
      %2248 = vperm.xlu0 %2247, %v2050
      %v2249 = vpop.permute.xlu0 %2248
      %2252 = vset.pattern.permute.xlu0 0
      %2253 = vperm.xlu0 %2252, %v2051
      %v2254 = vpop.permute.xlu0 %2253
      %2257 = vset.pattern.permute.xlu0 0
      %2258 = vperm.xlu0 %2257, %v2052
      %v2259 = vpop.permute.xlu0 %2258
      %2262 = vset.pattern.permute.xlu0 0
      %2263 = vperm.xlu0 %2262, %v2053
      %v2264 = vpop.permute.xlu0 %2263
      %2267 = vset.pattern.permute.xlu0 0
      %2268 = vperm.xlu0 %2267, %v2054
      %v2269 = vpop.permute.xlu0 %2268
      %2272 = vset.pattern.permute.xlu0 0
      %2273 = vperm.xlu0 %2272, %v2055
      %v2274 = vpop.permute.xlu0 %2273
      %2277 = vset.pattern.permute.xlu0 0
      %2278 = vperm.xlu0 %2277, %v2056
      %v2279 = vpop.permute.xlu0 %2278
      %2282 = vset.pattern.permute.xlu0 0
      %2283 = vperm.xlu0 %2282, %v2057
      %v2284 = vpop.permute.xlu0 %2283
      %2287 = vset.pattern.permute.xlu0 0
      %2288 = vperm.xlu0 %2287, %v2058
      %v2289 = vpop.permute.xlu0 %2288
      %2292 = vset.pattern.permute.xlu0 0
      %2293 = vperm.xlu0 %2292, %v2059
      %v2294 = vpop.permute.xlu0 %2293
      %2297 = vset.pattern.permute.xlu0 0
      %2298 = vperm.xlu0 %2297, %v2060
      %v2299 = vpop.permute.xlu0 %2298
      %2302 = vset.pattern.permute.xlu0 0
      %2303 = vperm.xlu0 %2302, %v2061
      %v2304 = vpop.permute.xlu0 %2303
      %2307 = vset.pattern.permute.xlu0 0
      %2308 = vperm.xlu0 %2307, %v2062
      %v2309 = vpop.permute.xlu0 %2308
      %2312 = vset.pattern.permute.xlu0 0
      %2313 = vperm.xlu0 %2312, %v2063
      %v2314 = vpop.permute.xlu0 %2313
      %2317 = vset.pattern.permute.xlu0 0
      %2318 = vperm.xlu0 %2317, %v2064
      %v2319 = vpop.permute.xlu0 %2318
      %2322 = vset.pattern.permute.xlu0 0
      %2323 = vperm.xlu0 %2322, %v2065
      %v2324 = vpop.permute.xlu0 %2323
      %2327 = vset.pattern.permute.xlu0 0
      %2328 = vperm.xlu0 %2327, %v2066
      %v2329 = vpop.permute.xlu0 %2328
      %2332 = vset.pattern.permute.xlu0 0
      %2333 = vperm.xlu0 %2332, %v2067
      %v2334 = vpop.permute.xlu0 %2333
      %2337 = vset.pattern.permute.xlu0 0
      %2338 = vperm.xlu0 %2337, %v2068
      %v2339 = vpop.permute.xlu0 %2338
      %2342 = vset.pattern.permute.xlu0 0
      %2343 = vperm.xlu0 %2342, %v2069
      %v2344 = vpop.permute.xlu0 %2343
      %2347 = vset.pattern.permute.xlu0 0
      %2348 = vperm.xlu0 %2347, %v2070
      %v2349 = vpop.permute.xlu0 %2348
      %2352 = vset.pattern.permute.xlu0 0
      %2353 = vperm.xlu0 %2352, %v2071
      %v2354 = vpop.permute.xlu0 %2353
      %2357 = vset.pattern.permute.xlu0 0
      %2358 = vperm.xlu0 %2357, %v2072
      %v2359 = vpop.permute.xlu0 %2358
      %2362 = vset.pattern.permute.xlu0 0
      %2363 = vperm.xlu0 %2362, %v2073
      %v2364 = vpop.permute.xlu0 %2363
      %2367 = vset.pattern.permute.xlu0 0
      %2368 = vperm.xlu0 %2367, %v2074
      %v2369 = vpop.permute.xlu0 %2368
      %2372 = vset.pattern.permute.xlu0 0
      %2373 = vperm.xlu0 %2372, %v2075
      %v2374 = vpop.permute.xlu0 %2373
      %2377 = vset.pattern.permute.xlu0 0
      %2378 = vperm.xlu0 %2377, %v2076
      %v2379 = vpop.permute.xlu0 %2378
      %2382 = vset.pattern.permute.xlu0 0
      %2383 = vperm.xlu0 %2382, %v2077
      %v2384 = vpop.permute.xlu0 %2383
      %2387 = vset.pattern.permute.xlu0 0
      %2388 = vperm.xlu0 %2387, %v2078
      %v2389 = vpop.permute.xlu0 %2388
      %2392 = vset.pattern.permute.xlu0 0
      %2393 = vperm.xlu0 %2392, %v2079
      %v2394 = vpop.permute.xlu0 %2393
      %2397 = vset.pattern.permute.xlu0 0
      %2398 = vperm.xlu0 %2397, %v2080
      %v2399 = vpop.permute.xlu0 %2398
      %2402 = vset.pattern.permute.xlu0 0
      %2403 = vperm.xlu0 %2402, %v2081
      %v2404 = vpop.permute.xlu0 %2403
      %2407 = vset.pattern.permute.xlu0 0
      %2408 = vperm.xlu0 %2407, %v2082
      %v2409 = vpop.permute.xlu0 %2408
      %2412 = vset.pattern.permute.xlu0 0
      %2413 = vperm.xlu0 %2412, %v2083
      %v2414 = vpop.permute.xlu0 %2413
      %2417 = vset.pattern.permute.xlu0 0
      %2418 = vperm.xlu0 %2417, %v2084
      %v2419 = vpop.permute.xlu0 %2418
      %2422 = vset.pattern.permute.xlu0 0
      %2423 = vperm.xlu0 %2422, %v2085
      %v2424 = vpop.permute.xlu0 %2423
      %2427 = vset.pattern.permute.xlu0 0
      %2428 = vperm.xlu0 %2427, %v2086
      %v2429 = vpop.permute.xlu0 %2428
      %2432 = vset.pattern.permute.xlu0 0
      %2433 = vperm.xlu0 %2432, %v2087
      %v2434 = vpop.permute.xlu0 %2433
      %2437 = vset.pattern.permute.xlu0 0
      %2438 = vperm.xlu0 %2437, %v2088
      %v2439 = vpop.permute.xlu0 %2438
      %2442 = vset.pattern.permute.xlu0 0
      %2443 = vperm.xlu0 %2442, %v2089
      %v2444 = vpop.permute.xlu0 %2443
      %2447 = vset.pattern.permute.xlu0 0
      %2448 = vperm.xlu0 %2447, %v2090
      %v2449 = vpop.permute.xlu0 %2448
      %2452 = vset.pattern.permute.xlu0 0
      %2453 = vperm.xlu0 %2452, %v2091
      %v2454 = vpop.permute.xlu0 %2453
      %2457 = vset.pattern.permute.xlu0 0
      %2458 = vperm.xlu0 %2457, %v2092
      %v2459 = vpop.permute.xlu0 %2458
      %2462 = vset.pattern.permute.xlu0 0
      %2463 = vperm.xlu0 %2462, %v2093
      %v2464 = vpop.permute.xlu0 %2463
      %2467 = vset.pattern.permute.xlu0 0
      %2468 = vperm.xlu0 %2467, %v2094
      %v2469 = vpop.permute.xlu0 %2468
      %2472 = vset.pattern.permute.xlu0 0
      %2473 = vperm.xlu0 %2472, %v2095
      %v2474 = vpop.permute.xlu0 %2473
      %2477 = vset.pattern.permute.xlu0 0
      %2478 = vperm.xlu0 %2477, %v2096
      %v2479 = vpop.permute.xlu0 %2478
      %2482 = vset.pattern.permute.xlu0 0
      %2483 = vperm.xlu0 %2482, %v2097
      %v2484 = vpop.permute.xlu0 %2483
      %2487 = vset.pattern.permute.xlu0 0
      %2488 = vperm.xlu0 %2487, %v2098
      %v2489 = vpop.permute.xlu0 %2488
      %2492 = vset.pattern.permute.xlu0 0
      %2493 = vperm.xlu0 %2492, %v2099
      %v2494 = vpop.permute.xlu0 %2493
      %2497 = vset.pattern.permute.xlu0 0
      %2498 = vperm.xlu0 %2497, %v2100
      %v2499 = vpop.permute.xlu0 %2498
      %2502 = vset.pattern.permute.xlu0 0
      %2503 = vperm.xlu0 %2502, %v2101
      %v2504 = vpop.permute.xlu0 %2503
      %2507 = vset.pattern.permute.xlu0 0
      %2508 = vperm.xlu0 %2507, %v2102
      %v2509 = vpop.permute.xlu0 %2508
      %2512 = vset.pattern.permute.xlu0 0
      %2513 = vperm.xlu0 %2512, %v2103
      %v2514 = vpop.permute.xlu0 %2513
      %2517 = vset.pattern.permute.xlu0 0
      %2518 = vperm.xlu0 %2517, %v2104
      %v2519 = vpop.permute.xlu0 %2518
      %2522 = vset.pattern.permute.xlu0 0
      %2523 = vperm.xlu0 %2522, %v2105
      %v2524 = vpop.permute.xlu0 %2523
      %2527 = vset.pattern.permute.xlu0 0
      %2528 = vperm.xlu0 %2527, %v2106
      %v2529 = vpop.permute.xlu0 %2528
      %2532 = vset.pattern.permute.xlu0 0
      %2533 = vperm.xlu0 %2532, %v2107
      %v2534 = vpop.permute.xlu0 %2533
      %2537 = vset.pattern.permute.xlu0 0
      %2538 = vperm.xlu0 %2537, %v2108
      %v2539 = vpop.permute.xlu0 %2538
      %2542 = vset.pattern.permute.xlu0 0
      %2543 = vperm.xlu0 %2542, %v2109
      %v2544 = vpop.permute.xlu0 %2543
      %2547 = vset.pattern.permute.xlu0 0
      %2548 = vperm.xlu0 %2547, %v2110
      %v2549 = vpop.permute.xlu0 %2548
      %2552 = vset.pattern.permute.xlu0 0
      %2553 = vperm.xlu0 %2552, %v2111
      %v2554 = vpop.permute.xlu0 %2553
      %2557 = vset.pattern.permute.xlu0 0
      %2558 = vperm.xlu0 %2557, %v2112
      %v2559 = vpop.permute.xlu0 %2558
      %v2561 = vsub.f32 %v1793, %v2244
      %v2562 = vsub.f32 %v1794, %v2249
      %v2563 = vsub.f32 %v1795, %v2254
      %v2564 = vsub.f32 %v1796, %v2259
      %v2565 = vsub.f32 %v1797, %v2264
      %v2566 = vsub.f32 %v1798, %v2269
      %v2567 = vsub.f32 %v1799, %v2274
      %v2568 = vsub.f32 %v1800, %v2279
      %v2569 = vsub.f32 %v1801, %v2284
      %v2570 = vsub.f32 %v1802, %v2289
      %v2571 = vsub.f32 %v1803, %v2294
      %v2572 = vsub.f32 %v1804, %v2299
      %v2573 = vsub.f32 %v1805, %v2304
      %v2574 = vsub.f32 %v1806, %v2309
      %v2575 = vsub.f32 %v1807, %v2314
      %v2576 = vsub.f32 %v1808, %v2319
      %v2577 = vsub.f32 %v1809, %v2324
      %v2578 = vsub.f32 %v1810, %v2329
      %v2579 = vsub.f32 %v1811, %v2334
      %v2580 = vsub.f32 %v1812, %v2339
      %v2581 = vsub.f32 %v1813, %v2344
      %v2582 = vsub.f32 %v1814, %v2349
      %v2583 = vsub.f32 %v1815, %v2354
      %v2584 = vsub.f32 %v1816, %v2359
      %v2585 = vsub.f32 %v1817, %v2364
      %v2586 = vsub.f32 %v1818, %v2369
      %v2587 = vsub.f32 %v1819, %v2374
      %v2588 = vsub.f32 %v1820, %v2379
      %v2589 = vsub.f32 %v1821, %v2384
      %v2590 = vsub.f32 %v1822, %v2389
      %v2591 = vsub.f32 %v1823, %v2394
      %v2592 = vsub.f32 %v1824, %v2399
      %v2593 = vsub.f32 %v1825, %v2404
      %v2594 = vsub.f32 %v1826, %v2409
      %v2595 = vsub.f32 %v1827, %v2414
      %v2596 = vsub.f32 %v1828, %v2419
      %v2597 = vsub.f32 %v1829, %v2424
      %v2598 = vsub.f32 %v1830, %v2429
      %v2599 = vsub.f32 %v1831, %v2434
      %v2600 = vsub.f32 %v1832, %v2439
      %v2601 = vsub.f32 %v1833, %v2444
      %v2602 = vsub.f32 %v1834, %v2449
      %v2603 = vsub.f32 %v1835, %v2454
      %v2604 = vsub.f32 %v1836, %v2459
      %v2605 = vsub.f32 %v1837, %v2464
      %v2606 = vsub.f32 %v1838, %v2469
      %v2607 = vsub.f32 %v1839, %v2474
      %v2608 = vsub.f32 %v1840, %v2479
      %v2609 = vsub.f32 %v1841, %v2484
      %v2610 = vsub.f32 %v1842, %v2489
      %v2611 = vsub.f32 %v1843, %v2494
      %v2612 = vsub.f32 %v1844, %v2499
      %v2613 = vsub.f32 %v1845, %v2504
      %v2614 = vsub.f32 %v1846, %v2509
      %v2615 = vsub.f32 %v1847, %v2514
      %v2616 = vsub.f32 %v1848, %v2519
      %v2617 = vsub.f32 %v1849, %v2524
      %v2618 = vsub.f32 %v1850, %v2529
      %v2619 = vsub.f32 %v1851, %v2534
      %v2620 = vsub.f32 %v1852, %v2539
      %v2621 = vsub.f32 %v1853, %v2544
      %v2622 = vsub.f32 %v1854, %v2549
      %v2623 = vsub.f32 %v1855, %v2554
      %v2624 = vsub.f32 %v1856, %v2559
      %v2625 = vpow.pop %v2561
      %v2626 = vpow.pop %v2562
      %v2627 = vpow.pop %v2563
      %v2628 = vpow.pop %v2564
      %v2629 = vpow.pop %v2565
      %v2630 = vpow.pop %v2566
      %v2631 = vpow.pop %v2567
      %v2632 = vpow.pop %v2568
      %v2633 = vpow.pop %v2569
      %v2634 = vpow.pop %v2570
      %v2635 = vpow.pop %v2571
      %v2636 = vpow.pop %v2572
      %v2637 = vpow.pop %v2573
      %v2638 = vpow.pop %v2574
      %v2639 = vpow.pop %v2575
      %v2640 = vpow.pop %v2576
      %v2641 = vpow.pop %v2577
      %v2642 = vpow.pop %v2578
      %v2643 = vpow.pop %v2579
      %v2644 = vpow.pop %v2580
      %v2645 = vpow.pop %v2581
      %v2646 = vpow.pop %v2582
      %v2647 = vpow.pop %v2583
      %v2648 = vpow.pop %v2584
      %v2649 = vpow.pop %v2585
      %v2650 = vpow.pop %v2586
      %v2651 = vpow.pop %v2587
      %v2652 = vpow.pop %v2588
      %v2653 = vpow.pop %v2589
      %v2654 = vpow.pop %v2590
      %v2655 = vpow.pop %v2591
      %v2656 = vpow.pop %v2592
      %v2657 = vpow.pop %v2593
      %v2658 = vpow.pop %v2594
      %v2659 = vpow.pop %v2595
      %v2660 = vpow.pop %v2596
      %v2661 = vpow.pop %v2597
      %v2662 = vpow.pop %v2598
      %v2663 = vpow.pop %v2599
      %v2664 = vpow.pop %v2600
      %v2665 = vpow.pop %v2601
      %v2666 = vpow.pop %v2602
      %v2667 = vpow.pop %v2603
      %v2668 = vpow.pop %v2604
      %v2669 = vpow.pop %v2605
      %v2670 = vpow.pop %v2606
      %v2671 = vpow.pop %v2607
      %v2672 = vpow.pop %v2608
      %v2673 = vpow.pop %v2609
      %v2674 = vpow.pop %v2610
      %v2675 = vpow.pop %v2611
      %v2676 = vpow.pop %v2612
      %v2677 = vpow.pop %v2613
      %v2678 = vpow.pop %v2614
      %v2679 = vpow.pop %v2615
      %v2680 = vpow.pop %v2616
      %v2681 = vpow.pop %v2617
      %v2682 = vpow.pop %v2618
      %v2683 = vpow.pop %v2619
      %v2684 = vpow.pop %v2620
      %v2685 = vpow.pop %v2621
      %v2686 = vpow.pop %v2622
      %v2687 = vpow.pop %v2623
      %v2688 = vpow.pop %v2624
      %v2689 = vld [vmem:[#allocation3] sm:$0xff]
      %v2690 = vld [vmem:[#allocation3 + $0x8] sm:$0xff]
      %v2691 = vld [vmem:[#allocation3 + $0x10] sm:$0xff]
      %v2692 = vld [vmem:[#allocation3 + $0x18] sm:$0xff]
      %v2693 = vld [vmem:[#allocation3 + $0x20] sm:$0xff]
      %v2694 = vld [vmem:[#allocation3 + $0x28] sm:$0xff]
      %v2695 = vld [vmem:[#allocation3 + $0x30] sm:$0xff]
      %v2696 = vld [vmem:[#allocation3 + $0x38] sm:$0xff]
      %v2697 = vld [vmem:[#allocation3 + $0x40] sm:$0xff]
      %v2698 = vld [vmem:[#allocation3 + $0x48] sm:$0xff]
      %v2699 = vld [vmem:[#allocation3 + $0x50] sm:$0xff]
      %v2700 = vld [vmem:[#allocation3 + $0x58] sm:$0xff]
      %v2701 = vld [vmem:[#allocation3 + $0x60] sm:$0xff]
      %v2702 = vld [vmem:[#allocation3 + $0x68] sm:$0xff]
      %v2703 = vld [vmem:[#allocation3 + $0x70] sm:$0xff]
      %v2704 = vld [vmem:[#allocation3 + $0x78] sm:$0xff]
      %v2705 = vld [vmem:[#allocation3 + $0x80] sm:$0xff]
      %v2706 = vld [vmem:[#allocation3 + $0x88] sm:$0xff]
      %v2707 = vld [vmem:[#allocation3 + $0x90] sm:$0xff]
      %v2708 = vld [vmem:[#allocation3 + $0x98] sm:$0xff]
      %v2709 = vld [vmem:[#allocation3 + $0xa0] sm:$0xff]
      %v2710 = vld [vmem:[#allocation3 + $0xa8] sm:$0xff]
      %v2711 = vld [vmem:[#allocation3 + $0xb0] sm:$0xff]
      %v2712 = vld [vmem:[#allocation3 + $0xb8] sm:$0xff]
      %v2713 = vld [vmem:[#allocation3 + $0xc0] sm:$0xff]
      %v2714 = vld [vmem:[#allocation3 + $0xc8] sm:$0xff]
      %v2715 = vld [vmem:[#allocation3 + $0xd0] sm:$0xff]
      %v2716 = vld [vmem:[#allocation3 + $0xd8] sm:$0xff]
      %v2717 = vld [vmem:[#allocation3 + $0xe0] sm:$0xff]
      %v2718 = vld [vmem:[#allocation3 + $0xe8] sm:$0xff]
      %v2719 = vld [vmem:[#allocation3 + $0xf0] sm:$0xff]
      %v2720 = vld [vmem:[#allocation3 + $0xf8] sm:$0xff]
      %v2721 = vld [vmem:[#allocation3 + $0x100] sm:$0xff]
      %v2722 = vld [vmem:[#allocation3 + $0x108] sm:$0xff]
      %v2723 = vld [vmem:[#allocation3 + $0x110] sm:$0xff]
      %v2724 = vld [vmem:[#allocation3 + $0x118] sm:$0xff]
      %v2725 = vld [vmem:[#allocation3 + $0x120] sm:$0xff]
      %v2726 = vld [vmem:[#allocation3 + $0x128] sm:$0xff]
      %v2727 = vld [vmem:[#allocation3 + $0x130] sm:$0xff]
      %v2728 = vld [vmem:[#allocation3 + $0x138] sm:$0xff]
      %v2729 = vld [vmem:[#allocation3 + $0x140] sm:$0xff]
      %v2730 = vld [vmem:[#allocation3 + $0x148] sm:$0xff]
      %v2731 = vld [vmem:[#allocation3 + $0x150] sm:$0xff]
      %v2732 = vld [vmem:[#allocation3 + $0x158] sm:$0xff]
      %v2733 = vld [vmem:[#allocation3 + $0x160] sm:$0xff]
      %v2734 = vld [vmem:[#allocation3 + $0x168] sm:$0xff]
      %v2735 = vld [vmem:[#allocation3 + $0x170] sm:$0xff]
      %v2736 = vld [vmem:[#allocation3 + $0x178] sm:$0xff]
      %v2737 = vld [vmem:[#allocation3 + $0x180] sm:$0xff]
      %v2738 = vld [vmem:[#allocation3 + $0x188] sm:$0xff]
      %v2739 = vld [vmem:[#allocation3 + $0x190] sm:$0xff]
      %v2740 = vld [vmem:[#allocation3 + $0x198] sm:$0xff]
      %v2741 = vld [vmem:[#allocation3 + $0x1a0] sm:$0xff]
      %v2742 = vld [vmem:[#allocation3 + $0x1a8] sm:$0xff]
      %v2743 = vld [vmem:[#allocation3 + $0x1b0] sm:$0xff]
      %v2744 = vld [vmem:[#allocation3 + $0x1b8] sm:$0xff]
      %v2745 = vld [vmem:[#allocation3 + $0x1c0] sm:$0xff]
      %v2746 = vld [vmem:[#allocation3 + $0x1c8] sm:$0xff]
      %v2747 = vld [vmem:[#allocation3 + $0x1d0] sm:$0xff]
      %v2748 = vld [vmem:[#allocation3 + $0x1d8] sm:$0xff]
      %v2749 = vld [vmem:[#allocation3 + $0x1e0] sm:$0xff]
      %v2750 = vld [vmem:[#allocation3 + $0x1e8] sm:$0xff]
      %v2751 = vld [vmem:[#allocation3 + $0x1f0] sm:$0xff]
      %v2752 = vld [vmem:[#allocation3 + $0x1f8] sm:$0xff]
      %v2753 = vmul.f32 %v2177, %v2689
      %v2754 = vmul.f32 %v2178, %v2690
      %v2755 = vmul.f32 %v2179, %v2691
      %v2756 = vmul.f32 %v2180, %v2692
      %v2757 = vmul.f32 %v2181, %v2693
      %v2758 = vmul.f32 %v2182, %v2694
      %v2759 = vmul.f32 %v2183, %v2695
      %v2760 = vmul.f32 %v2184, %v2696
      %v2761 = vmul.f32 %v2185, %v2697
      %v2762 = vmul.f32 %v2186, %v2698
      %v2763 = vmul.f32 %v2187, %v2699
      %v2764 = vmul.f32 %v2188, %v2700
      %v2765 = vmul.f32 %v2189, %v2701
      %v2766 = vmul.f32 %v2190, %v2702
      %v2767 = vmul.f32 %v2191, %v2703
      %v2768 = vmul.f32 %v2192, %v2704
      %v2769 = vmul.f32 %v2193, %v2705
      %v2770 = vmul.f32 %v2194, %v2706
      %v2771 = vmul.f32 %v2195, %v2707
      %v2772 = vmul.f32 %v2196, %v2708
      %v2773 = vmul.f32 %v2197, %v2709
      %v2774 = vmul.f32 %v2198, %v2710
      %v2775 = vmul.f32 %v2199, %v2711
      %v2776 = vmul.f32 %v2200, %v2712
      %v2777 = vmul.f32 %v2201, %v2713
      %v2778 = vmul.f32 %v2202, %v2714
      %v2779 = vmul.f32 %v2203, %v2715
      %v2780 = vmul.f32 %v2204, %v2716
      %v2781 = vmul.f32 %v2205, %v2717
      %v2782 = vmul.f32 %v2206, %v2718
      %v2783 = vmul.f32 %v2207, %v2719
      %v2784 = vmul.f32 %v2208, %v2720
      %v2785 = vmul.f32 %v2209, %v2721
      %v2786 = vmul.f32 %v2210, %v2722
      %v2787 = vmul.f32 %v2211, %v2723
      %v2788 = vmul.f32 %v2212, %v2724
      %v2789 = vmul.f32 %v2213, %v2725
      %v2790 = vmul.f32 %v2214, %v2726
      %v2791 = vmul.f32 %v2215, %v2727
      %v2792 = vmul.f32 %v2216, %v2728
      %v2793 = vmul.f32 %v2217, %v2729
      %v2794 = vmul.f32 %v2218, %v2730
      %v2795 = vmul.f32 %v2219, %v2731
      %v2796 = vmul.f32 %v2220, %v2732
      %v2797 = vmul.f32 %v2221, %v2733
      %v2798 = vmul.f32 %v2222, %v2734
      %v2799 = vmul.f32 %v2223, %v2735
      %v2800 = vmul.f32 %v2224, %v2736
      %v2801 = vmul.f32 %v2225, %v2737
      %v2802 = vmul.f32 %v2226, %v2738
      %v2803 = vmul.f32 %v2227, %v2739
      %v2804 = vmul.f32 %v2228, %v2740
      %v2805 = vmul.f32 %v2229, %v2741
      %v2806 = vmul.f32 %v2230, %v2742
      %v2807 = vmul.f32 %v2231, %v2743
      %v2808 = vmul.f32 %v2232, %v2744
      %v2809 = vmul.f32 %v2233, %v2745
      %v2810 = vmul.f32 %v2234, %v2746
      %v2811 = vmul.f32 %v2235, %v2747
      %v2812 = vmul.f32 %v2236, %v2748
      %v2813 = vmul.f32 %v2237, %v2749
      %v2814 = vmul.f32 %v2238, %v2750
      %v2815 = vmul.f32 %v2239, %v2751
      %v2816 = vmul.f32 %v2240, %v2752
      %2817 = vadd.xlane.f32.xlu0 %v2625
      %v2818 = vpop.xlane.xlu0 %2817
      %2819 = vadd.xlane.f32.xlu0 %v2626
      %v2820 = vpop.xlane.xlu0 %2819
      %2821 = vadd.xlane.f32.xlu0 %v2627
      %v2822 = vpop.xlane.xlu0 %2821
      %2823 = vadd.xlane.f32.xlu0 %v2628
      %v2824 = vpop.xlane.xlu0 %2823
      %2825 = vadd.xlane.f32.xlu0 %v2629
      %v2826 = vpop.xlane.xlu0 %2825
      %2827 = vadd.xlane.f32.xlu0 %v2630
      %v2828 = vpop.xlane.xlu0 %2827
      %2829 = vadd.xlane.f32.xlu0 %v2631
      %v2830 = vpop.xlane.xlu0 %2829
      %2831 = vadd.xlane.f32.xlu0 %v2632
      %v2832 = vpop.xlane.xlu0 %2831
      %2833 = vadd.xlane.f32.xlu0 %v2633
      %v2834 = vpop.xlane.xlu0 %2833
      %2835 = vadd.xlane.f32.xlu0 %v2634
      %v2836 = vpop.xlane.xlu0 %2835
      %2837 = vadd.xlane.f32.xlu0 %v2635
      %v2838 = vpop.xlane.xlu0 %2837
      %2839 = vadd.xlane.f32.xlu0 %v2636
      %v2840 = vpop.xlane.xlu0 %2839
      %2841 = vadd.xlane.f32.xlu0 %v2637
      %v2842 = vpop.xlane.xlu0 %2841
      %2843 = vadd.xlane.f32.xlu0 %v2638
      %v2844 = vpop.xlane.xlu0 %2843
      %2845 = vadd.xlane.f32.xlu0 %v2639
      %v2846 = vpop.xlane.xlu0 %2845
      %2847 = vadd.xlane.f32.xlu0 %v2640
      %v2848 = vpop.xlane.xlu0 %2847
      %2849 = vadd.xlane.f32.xlu0 %v2641
      %v2850 = vpop.xlane.xlu0 %2849
      %2851 = vadd.xlane.f32.xlu0 %v2642
      %v2852 = vpop.xlane.xlu0 %2851
      %2853 = vadd.xlane.f32.xlu0 %v2643
      %v2854 = vpop.xlane.xlu0 %2853
      %2855 = vadd.xlane.f32.xlu0 %v2644
      %v2856 = vpop.xlane.xlu0 %2855
      %2857 = vadd.xlane.f32.xlu0 %v2645
      %v2858 = vpop.xlane.xlu0 %2857
      %2859 = vadd.xlane.f32.xlu0 %v2646
      %v2860 = vpop.xlane.xlu0 %2859
      %2861 = vadd.xlane.f32.xlu0 %v2647
      %v2862 = vpop.xlane.xlu0 %2861
      %2863 = vadd.xlane.f32.xlu0 %v2648
      %v2864 = vpop.xlane.xlu0 %2863
      %2865 = vadd.xlane.f32.xlu0 %v2649
      %v2866 = vpop.xlane.xlu0 %2865
      %2867 = vadd.xlane.f32.xlu0 %v2650
      %v2868 = vpop.xlane.xlu0 %2867
      %2869 = vadd.xlane.f32.xlu0 %v2651
      %v2870 = vpop.xlane.xlu0 %2869
      %2871 = vadd.xlane.f32.xlu0 %v2652
      %v2872 = vpop.xlane.xlu0 %2871
      %2873 = vadd.xlane.f32.xlu0 %v2653
      %v2874 = vpop.xlane.xlu0 %2873
      %2875 = vadd.xlane.f32.xlu0 %v2654
      %v2876 = vpop.xlane.xlu0 %2875
      %2877 = vadd.xlane.f32.xlu0 %v2655
      %v2878 = vpop.xlane.xlu0 %2877
      %2879 = vadd.xlane.f32.xlu0 %v2656
      %v2880 = vpop.xlane.xlu0 %2879
      %2881 = vadd.xlane.f32.xlu0 %v2657
      %v2882 = vpop.xlane.xlu0 %2881
      %2883 = vadd.xlane.f32.xlu0 %v2658
      %v2884 = vpop.xlane.xlu0 %2883
      %2885 = vadd.xlane.f32.xlu0 %v2659
      %v2886 = vpop.xlane.xlu0 %2885
      %2887 = vadd.xlane.f32.xlu0 %v2660
      %v2888 = vpop.xlane.xlu0 %2887
      %2889 = vadd.xlane.f32.xlu0 %v2661
      %v2890 = vpop.xlane.xlu0 %2889
      %2891 = vadd.xlane.f32.xlu0 %v2662
      %v2892 = vpop.xlane.xlu0 %2891
      %2893 = vadd.xlane.f32.xlu0 %v2663
      %v2894 = vpop.xlane.xlu0 %2893
      %2895 = vadd.xlane.f32.xlu0 %v2664
      %v2896 = vpop.xlane.xlu0 %2895
      %2897 = vadd.xlane.f32.xlu0 %v2665
      %v2898 = vpop.xlane.xlu0 %2897
      %2899 = vadd.xlane.f32.xlu0 %v2666
      %v2900 = vpop.xlane.xlu0 %2899
      %2901 = vadd.xlane.f32.xlu0 %v2667
      %v2902 = vpop.xlane.xlu0 %2901
      %2903 = vadd.xlane.f32.xlu0 %v2668
      %v2904 = vpop.xlane.xlu0 %2903
      %2905 = vadd.xlane.f32.xlu0 %v2669
      %v2906 = vpop.xlane.xlu0 %2905
      %2907 = vadd.xlane.f32.xlu0 %v2670
      %v2908 = vpop.xlane.xlu0 %2907
      %2909 = vadd.xlane.f32.xlu0 %v2671
      %v2910 = vpop.xlane.xlu0 %2909
      %2911 = vadd.xlane.f32.xlu0 %v2672
      %v2912 = vpop.xlane.xlu0 %2911
      %2913 = vadd.xlane.f32.xlu0 %v2673
      %v2914 = vpop.xlane.xlu0 %2913
      %2915 = vadd.xlane.f32.xlu0 %v2674
      %v2916 = vpop.xlane.xlu0 %2915
      %2917 = vadd.xlane.f32.xlu0 %v2675
      %v2918 = vpop.xlane.xlu0 %2917
      %2919 = vadd.xlane.f32.xlu0 %v2676
      %v2920 = vpop.xlane.xlu0 %2919
      %2921 = vadd.xlane.f32.xlu0 %v2677
      %v2922 = vpop.xlane.xlu0 %2921
      %2923 = vadd.xlane.f32.xlu0 %v2678
      %v2924 = vpop.xlane.xlu0 %2923
      %2925 = vadd.xlane.f32.xlu0 %v2679
      %v2926 = vpop.xlane.xlu0 %2925
      %2927 = vadd.xlane.f32.xlu0 %v2680
      %v2928 = vpop.xlane.xlu0 %2927
      %2929 = vadd.xlane.f32.xlu0 %v2681
      %v2930 = vpop.xlane.xlu0 %2929
      %2931 = vadd.xlane.f32.xlu0 %v2682
      %v2932 = vpop.xlane.xlu0 %2931
      %2933 = vadd.xlane.f32.xlu0 %v2683
      %v2934 = vpop.xlane.xlu0 %2933
      %2935 = vadd.xlane.f32.xlu0 %v2684
      %v2936 = vpop.xlane.xlu0 %2935
      %2937 = vadd.xlane.f32.xlu0 %v2685
      %v2938 = vpop.xlane.xlu0 %2937
      %2939 = vadd.xlane.f32.xlu0 %v2686
      %v2940 = vpop.xlane.xlu0 %2939
      %2941 = vadd.xlane.f32.xlu0 %v2687
      %v2942 = vpop.xlane.xlu0 %2941
      %2943 = vadd.xlane.f32.xlu0 %v2688
      %v2944 = vpop.xlane.xlu0 %2943
      %v2945 = vadd.f32 %v2753, %v2818
      %v2946 = vadd.f32 %v2754, %v2820
      %v2947 = vadd.f32 %v2755, %v2822
      %v2948 = vadd.f32 %v2756, %v2824
      %v2949 = vadd.f32 %v2757, %v2826
      %v2950 = vadd.f32 %v2758, %v2828
      %v2951 = vadd.f32 %v2759, %v2830
      %v2952 = vadd.f32 %v2760, %v2832
      %v2953 = vadd.f32 %v2761, %v2834
      %v2954 = vadd.f32 %v2762, %v2836
      %v2955 = vadd.f32 %v2763, %v2838
      %v2956 = vadd.f32 %v2764, %v2840
      %v2957 = vadd.f32 %v2765, %v2842
      %v2958 = vadd.f32 %v2766, %v2844
      %v2959 = vadd.f32 %v2767, %v2846
      %v2960 = vadd.f32 %v2768, %v2848
      %v2961 = vadd.f32 %v2769, %v2850
      %v2962 = vadd.f32 %v2770, %v2852
      %v2963 = vadd.f32 %v2771, %v2854
      %v2964 = vadd.f32 %v2772, %v2856
      %v2965 = vadd.f32 %v2773, %v2858
      %v2966 = vadd.f32 %v2774, %v2860
      %v2967 = vadd.f32 %v2775, %v2862
      %v2968 = vadd.f32 %v2776, %v2864
      %v2969 = vadd.f32 %v2777, %v2866
      %v2970 = vadd.f32 %v2778, %v2868
      %v2971 = vadd.f32 %v2779, %v2870
      %v2972 = vadd.f32 %v2780, %v2872
      %v2973 = vadd.f32 %v2781, %v2874
      %v2974 = vadd.f32 %v2782, %v2876
      %v2975 = vadd.f32 %v2783, %v2878
      %v2976 = vadd.f32 %v2784, %v2880
      %v2977 = vadd.f32 %v2785, %v2882
      %v2978 = vadd.f32 %v2786, %v2884
      %v2979 = vadd.f32 %v2787, %v2886
      %v2980 = vadd.f32 %v2788, %v2888
      %v2981 = vadd.f32 %v2789, %v2890
      %v2982 = vadd.f32 %v2790, %v2892
      %v2983 = vadd.f32 %v2791, %v2894
      %v2984 = vadd.f32 %v2792, %v2896
      %v2985 = vadd.f32 %v2793, %v2898
      %v2986 = vadd.f32 %v2794, %v2900
      %v2987 = vadd.f32 %v2795, %v2902
      %v2988 = vadd.f32 %v2796, %v2904
      %v2989 = vadd.f32 %v2797, %v2906
      %v2990 = vadd.f32 %v2798, %v2908
      %v2991 = vadd.f32 %v2799, %v2910
      %v2992 = vadd.f32 %v2800, %v2912
      %v2993 = vadd.f32 %v2801, %v2914
      %v2994 = vadd.f32 %v2802, %v2916
      %v2995 = vadd.f32 %v2803, %v2918
      %v2996 = vadd.f32 %v2804, %v2920
      %v2997 = vadd.f32 %v2805, %v2922
      %v2998 = vadd.f32 %v2806, %v2924
      %v2999 = vadd.f32 %v2807, %v2926
      %v3000 = vadd.f32 %v2808, %v2928
      %v3001 = vadd.f32 %v2809, %v2930
      %v3002 = vadd.f32 %v2810, %v2932
      %v3003 = vadd.f32 %v2811, %v2934
      %v3004 = vadd.f32 %v2812, %v2936
      %v3005 = vadd.f32 %v2813, %v2938
      %v3006 = vadd.f32 %v2814, %v2940
      %v3007 = vadd.f32 %v2815, %v2942
      %v3008 = vadd.f32 %v2816, %v2944
      %vm3009 = vcmask 7168
      %3010 = vst.msk [vmem:[#allocation3] sm:$0xff] %vm3009, %v2945
      %3011 = vst.msk [vmem:[#allocation3 + $0x8] sm:$0xff] %vm3009, %v2946
      %3012 = vst.msk [vmem:[#allocation3 + $0x10] sm:$0xff] %vm3009, %v2947
      %3013 = vst.msk [vmem:[#allocation3 + $0x18] sm:$0xff] %vm3009, %v2948
      %3014 = vst.msk [vmem:[#allocation3 + $0x20] sm:$0xff] %vm3009, %v2949
      %3015 = vst.msk [vmem:[#allocation3 + $0x28] sm:$0xff] %vm3009, %v2950
      %3016 = vst.msk [vmem:[#allocation3 + $0x30] sm:$0xff] %vm3009, %v2951
      %3017 = vst.msk [vmem:[#allocation3 + $0x38] sm:$0xff] %vm3009, %v2952
      %3018 = vst.msk [vmem:[#allocation3 + $0x40] sm:$0xff] %vm3009, %v2953
      %3019 = vst.msk [vmem:[#allocation3 + $0x48] sm:$0xff] %vm3009, %v2954
      %3020 = vst.msk [vmem:[#allocation3 + $0x50] sm:$0xff] %vm3009, %v2955
      %3021 = vst.msk [vmem:[#allocation3 + $0x58] sm:$0xff] %vm3009, %v2956
      %3022 = vst.msk [vmem:[#allocation3 + $0x60] sm:$0xff] %vm3009, %v2957
      %3023 = vst.msk [vmem:[#allocation3 + $0x68] sm:$0xff] %vm3009, %v2958
      %3024 = vst.msk [vmem:[#allocation3 + $0x70] sm:$0xff] %vm3009, %v2959
      %3025 = vst.msk [vmem:[#allocation3 + $0x78] sm:$0xff] %vm3009, %v2960
      %3026 = vst.msk [vmem:[#allocation3 + $0x80] sm:$0xff] %vm3009, %v2961
      %3027 = vst.msk [vmem:[#allocation3 + $0x88] sm:$0xff] %vm3009, %v2962
      %3028 = vst.msk [vmem:[#allocation3 + $0x90] sm:$0xff] %vm3009, %v2963
      %3029 = vst.msk [vmem:[#allocation3 + $0x98] sm:$0xff] %vm3009, %v2964
      %3030 = vst.msk [vmem:[#allocation3 + $0xa0] sm:$0xff] %vm3009, %v2965
      %3031 = vst.msk [vmem:[#allocation3 + $0xa8] sm:$0xff] %vm3009, %v2966
      %3032 = vst.msk [vmem:[#allocation3 + $0xb0] sm:$0xff] %vm3009, %v2967
      %3033 = vst.msk [vmem:[#allocation3 + $0xb8] sm:$0xff] %vm3009, %v2968
      %3034 = vst.msk [vmem:[#allocation3 + $0xc0] sm:$0xff] %vm3009, %v2969
      %3035 = vst.msk [vmem:[#allocation3 + $0xc8] sm:$0xff] %vm3009, %v2970
      %3036 = vst.msk [vmem:[#allocation3 + $0xd0] sm:$0xff] %vm3009, %v2971
      %3037 = vst.msk [vmem:[#allocation3 + $0xd8] sm:$0xff] %vm3009, %v2972
      %3038 = vst.msk [vmem:[#allocation3 + $0xe0] sm:$0xff] %vm3009, %v2973
      %3039 = vst.msk [vmem:[#allocation3 + $0xe8] sm:$0xff] %vm3009, %v2974
      %3040 = vst.msk [vmem:[#allocation3 + $0xf0] sm:$0xff] %vm3009, %v2975
      %3041 = vst.msk [vmem:[#allocation3 + $0xf8] sm:$0xff] %vm3009, %v2976
      %3042 = vst.msk [vmem:[#allocation3 + $0x100] sm:$0xff] %vm3009, %v2977
      %3043 = vst.msk [vmem:[#allocation3 + $0x108] sm:$0xff] %vm3009, %v2978
      %3044 = vst.msk [vmem:[#allocation3 + $0x110] sm:$0xff] %vm3009, %v2979
      %3045 = vst.msk [vmem:[#allocation3 + $0x118] sm:$0xff] %vm3009, %v2980
      %3046 = vst.msk [vmem:[#allocation3 + $0x120] sm:$0xff] %vm3009, %v2981
      %3047 = vst.msk [vmem:[#allocation3 + $0x128] sm:$0xff] %vm3009, %v2982
      %3048 = vst.msk [vmem:[#allocation3 + $0x130] sm:$0xff] %vm3009, %v2983
      %3049 = vst.msk [vmem:[#allocation3 + $0x138] sm:$0xff] %vm3009, %v2984
      %3050 = vst.msk [vmem:[#allocation3 + $0x140] sm:$0xff] %vm3009, %v2985
      %3051 = vst.msk [vmem:[#allocation3 + $0x148] sm:$0xff] %vm3009, %v2986
      %3052 = vst.msk [vmem:[#allocation3 + $0x150] sm:$0xff] %vm3009, %v2987
      %3053 = vst.msk [vmem:[#allocation3 + $0x158] sm:$0xff] %vm3009, %v2988
      %3054 = vst.msk [vmem:[#allocation3 + $0x160] sm:$0xff] %vm3009, %v2989
      %3055 = vst.msk [vmem:[#allocation3 + $0x168] sm:$0xff] %vm3009, %v2990
      %3056 = vst.msk [vmem:[#allocation3 + $0x170] sm:$0xff] %vm3009, %v2991
      %3057 = vst.msk [vmem:[#allocation3 + $0x178] sm:$0xff] %vm3009, %v2992
      %3058 = vst.msk [vmem:[#allocation3 + $0x180] sm:$0xff] %vm3009, %v2993
      %3059 = vst.msk [vmem:[#allocation3 + $0x188] sm:$0xff] %vm3009, %v2994
      %3060 = vst.msk [vmem:[#allocation3 + $0x190] sm:$0xff] %vm3009, %v2995
      %3061 = vst.msk [vmem:[#allocation3 + $0x198] sm:$0xff] %vm3009, %v2996
      %3062 = vst.msk [vmem:[#allocation3 + $0x1a0] sm:$0xff] %vm3009, %v2997
      %3063 = vst.msk [vmem:[#allocation3 + $0x1a8] sm:$0xff] %vm3009, %v2998
      %3064 = vst.msk [vmem:[#allocation3 + $0x1b0] sm:$0xff] %vm3009, %v2999
      %3065 = vst.msk [vmem:[#allocation3 + $0x1b8] sm:$0xff] %vm3009, %v3000
      %3066 = vst.msk [vmem:[#allocation3 + $0x1c0] sm:$0xff] %vm3009, %v3001
      %3067 = vst.msk [vmem:[#allocation3 + $0x1c8] sm:$0xff] %vm3009, %v3002
      %3068 = vst.msk [vmem:[#allocation3 + $0x1d0] sm:$0xff] %vm3009, %v3003
      %3069 = vst.msk [vmem:[#allocation3 + $0x1d8] sm:$0xff] %vm3009, %v3004
      %3070 = vst.msk [vmem:[#allocation3 + $0x1e0] sm:$0xff] %vm3009, %v3005
      %3071 = vst.msk [vmem:[#allocation3 + $0x1e8] sm:$0xff] %vm3009, %v3006
      %3072 = vst.msk [vmem:[#allocation3 + $0x1f0] sm:$0xff] %vm3009, %v3007
      %3073 = vst.msk [vmem:[#allocation3 + $0x1f8] sm:$0xff] %vm3009, %v3008
      %3074 = vmatprep.subr.mxu0 0.0
      %3075 = vmatpush1.msra.mxu0 %v692
      %3076 = vmatprep.subr.mxu0 0.0
      %3077 = vmatpush1.msra.mxu0 %v693
      %3078 = vmatprep.subr.mxu0 0.0
      %3079 = vmatpush1.msra.mxu0 %v694
      %3080 = vmatprep.subr.mxu0 0.0
      %3081 = vmatpush1.msra.mxu0 %v695
      %3082 = vmatprep.subr.mxu0 0.0
      %3083 = vmatpush1.msra.mxu0 %v696
      %3084 = vmatprep.subr.mxu0 0.0
      %3085 = vmatpush1.msra.mxu0 %v697
      %3086 = vmatprep.subr.mxu0 0.0
      %3087 = vmatpush1.msra.mxu0 %v698
      %3088 = vmatprep.subr.mxu0 0.0
      %3089 = vmatpush1.msra.mxu0 %v699
      %3090 = vmatprep.subr.mxu0 0.0
      %3091 = vmatpush1.msra.mxu0 %v700
      %3092 = vmatprep.subr.mxu0 0.0
      %3093 = vmatpush1.msra.mxu0 %v701
      %3094 = vmatprep.subr.mxu0 0.0
      %3095 = vmatpush1.msra.mxu0 %v702
      %3096 = vmatprep.subr.mxu0 0.0
      %3097 = vmatpush1.msra.mxu0 %v703
      %3098 = vmatprep.subr.mxu0 0.0
      %3099 = vmatpush1.msra.mxu0 %v704
      %3100 = vmatprep.subr.mxu0 0.0
      %3101 = vmatpush1.msra.mxu0 %v705
      %3102 = vmatprep.subr.mxu0 0.0
      %3103 = vmatpush1.msra.mxu0 %v706
      %3104 = vmatprep.subr.mxu0 0.0
      %3105 = vmatpush1.msra.mxu0 %v707
      %3106 = vmatprep.subr.mxu0 0.0
      %3107 = vmatpush1.msra.mxu0 0.0
      %3108 = vmatprep.subr.mxu0 0.0
      %3109 = vmatpush1.msra.mxu0 0.0
      %3110 = vmatprep.subr.mxu0 0.0
      %3111 = vmatpush1.msra.mxu0 0.0
      %3112 = vmatprep.subr.mxu0 0.0
      %3113 = vmatpush1.msra.mxu0 0.0
      %3114 = vmatprep.subr.mxu0 0.0
      %3115 = vmatpush1.msra.mxu0 0.0
      %3116 = vmatprep.subr.mxu0 0.0
      %3117 = vmatpush1.msra.mxu0 0.0
      %3118 = vmatprep.subr.mxu0 0.0
      %3119 = vmatpush1.msra.mxu0 0.0
      %3120 = vmatprep.subr.mxu0 0.0
      %3121 = vmatpush1.msra.mxu0 0.0
      %3122 = vmatprep.subr.mxu0 0.0
      %3123 = vmatpush1.msra.mxu0 0.0
      %3124 = vmatprep.subr.mxu0 0.0
      %3125 = vmatpush1.msra.mxu0 0.0
      %3126 = vmatprep.subr.mxu0 0.0
      %3127 = vmatpush1.msra.mxu0 0.0
      %3128 = vmatprep.subr.mxu0 0.0
      %3129 = vmatpush1.msra.mxu0 0.0
      %3130 = vmatprep.subr.mxu0 0.0
      %3131 = vmatpush1.msra.mxu0 0.0
      %3132 = vmatprep.subr.mxu0 0.0
      %3133 = vmatpush1.msra.mxu0 0.0
      %3134 = vmatprep.subr.mxu0 0.0
      %3135 = vmatpush1.msra.mxu0 0.0
      %3136 = vmatprep.subr.mxu0 0.0
      %3137 = vmatpush1.msra.mxu0 0.0
      %3138 = vmatprep.mubr.f32.mxu0 0.0
      %3139 = vmatmul.mubr.f32.gmra.mrb[0].mxu0 %v2625
      %v3140 = vpop.f32.mrb[0].mxu0
      %v3141 = vadd.f32 0.0, %v3140
      %v3142 = vpop.f32.mrb[0].mxu0
      %3143 = vmatprep.mubr.f32.mxu0 0.0
      %3144 = vmatmul.mubr.f32.gmra.mrb[0].mxu0 %v2626
      %v3145 = vpop.f32.mrb[0].mxu0
      %v3146 = vadd.f32 0.0, %v3145
      %v3147 = vpop.f32.mrb[0].mxu0
      %3148 = vmatprep.mubr.f32.mxu0 0.0
      %3149 = vmatmul.mubr.f32.gmra.mrb[0].mxu0 %v2627
      %v3150 = vpop.f32.mrb[0].mxu0
      %v3151 = vadd.f32 0.0, %v3150
      %v3152 = vpop.f32.mrb[0].mxu0
      %3153 = vmatprep.mubr.f32.mxu0 0.0
      %3154 = vmatmul.mubr.f32.gmra.mrb[0].mxu0 %v2628
      %v3155 = vpop.f32.mrb[0].mxu0
      %v3156 = vadd.f32 0.0, %v3155
      %v3157 = vpop.f32.mrb[0].mxu0
      %3158 = vmatprep.mubr.f32.mxu0 0.0
      %3159 = vmatmul.mubr.f32.gmra.mrb[0].mxu0 %v2629
      %v3160 = vpop.f32.mrb[0].mxu0
      %v3161 = vadd.f32 0.0, %v3160
      %v3162 = vpop.f32.mrb[0].mxu0
      %3163 = vmatprep.mubr.f32.mxu0 0.0
      %3164 = vmatmul.mubr.f32.gmra.mrb[0].mxu0 %v2630
      %v3165 = vpop.f32.mrb[0].mxu0
      %v3166 = vadd.f32 0.0, %v3165
      %v3167 = vpop.f32.mrb[0].mxu0
      %3168 = vmatprep.mubr.f32.mxu0 0.0
      %3169 = vmatmul.mubr.f32.gmra.mrb[0].mxu0 %v2631
      %v3170 = vpop.f32.mrb[0].mxu0
      %v3171 = vadd.f32 0.0, %v3170
      %v3172 = vpop.f32.mrb[0].mxu0
      %3173 = vmatprep.mubr.f32.mxu0 0.0
      %3174 = vmatmul.mubr.f32.gmra.mrb[0].mxu0 %v2632
      %v3175 = vpop.f32.mrb[0].mxu0
      %v3176 = vadd.f32 0.0, %v3175
      %v3177 = vpop.f32.mrb[0].mxu0
      %3178 = vmatprep.mubr.f32.mxu0 0.0
      %3179 = vmatmul.mubr.f32.gmra.mrb[0].mxu0 %v2633
      %v3180 = vpop.f32.mrb[0].mxu0
      %v3181 = vadd.f32 0.0, %v3180
      %v3182 = vpop.f32.mrb[0].mxu0
      %3183 = vmatprep.mubr.f32.mxu0 0.0
      %3184 = vmatmul.mubr.f32.gmra.mrb[0].mxu0 %v2634
      %v3185 = vpop.f32.mrb[0].mxu0
      %v3186 = vadd.f32 0.0, %v3185
      %v3187 = vpop.f32.mrb[0].mxu0
      %3188 = vmatprep.mubr.f32.mxu0 0.0
      %3189 = vmatmul.mubr.f32.gmra.mrb[0].mxu0 %v2635
      %v3190 = vpop.f32.mrb[0].mxu0
      %v3191 = vadd.f32 0.0, %v3190
      %v3192 = vpop.f32.mrb[0].mxu0
      %3193 = vmatprep.mubr.f32.mxu0 0.0
      %3194 = vmatmul.mubr.f32.gmra.mrb[0].mxu0 %v2636
      %v3195 = vpop.f32.mrb[0].mxu0
      %v3196 = vadd.f32 0.0, %v3195
      %v3197 = vpop.f32.mrb[0].mxu0
      %3198 = vmatprep.mubr.f32.mxu0 0.0
      %3199 = vmatmul.mubr.f32.gmra.mrb[0].mxu0 %v2637
      %v3200 = vpop.f32.mrb[0].mxu0
      %v3201 = vadd.f32 0.0, %v3200
      %v3202 = vpop.f32.mrb[0].mxu0
      %3203 = vmatprep.mubr.f32.mxu0 0.0
      %3204 = vmatmul.mubr.f32.gmra.mrb[0].mxu0 %v2638
      %v3205 = vpop.f32.mrb[0].mxu0
      %v3206 = vadd.f32 0.0, %v3205
      %v3207 = vpop.f32.mrb[0].mxu0
      %3208 = vmatprep.mubr.f32.mxu0 0.0
      %3209 = vmatmul.mubr.f32.gmra.mrb[0].mxu0 %v2639
      %v3210 = vpop.f32.mrb[0].mxu0
      %v3211 = vadd.f32 0.0, %v3210
      %v3212 = vpop.f32.mrb[0].mxu0
      %3213 = vmatprep.mubr.f32.mxu0 0.0
      %3214 = vmatmul.mubr.f32.gmra.mrb[0].mxu0 %v2640
      %v3215 = vpop.f32.mrb[0].mxu0
      %v3216 = vadd.f32 0.0, %v3215
      %v3217 = vpop.f32.mrb[0].mxu0
      %3218 = vdwg.mxu0
      %3219 = vmatprep.subr.mxu0 0.0
      %3220 = vmatpush1.msra.mxu0 %v708
      %3221 = vmatprep.subr.mxu0 0.0
      %3222 = vmatpush1.msra.mxu0 %v709
      %3223 = vmatprep.subr.mxu0 0.0
      %3224 = vmatpush1.msra.mxu0 %v710
      %3225 = vmatprep.subr.mxu0 0.0
      %3226 = vmatpush1.msra.mxu0 %v711
      %3227 = vmatprep.subr.mxu0 0.0
      %3228 = vmatpush1.msra.mxu0 %v712
      %3229 = vmatprep.subr.mxu0 0.0
      %3230 = vmatpush1.msra.mxu0 %v713
      %3231 = vmatprep.subr.mxu0 0.0
      %3232 = vmatpush1.msra.mxu0 %v714
      %3233 = vmatprep.subr.mxu0 0.0
      %3234 = vmatpush1.msra.mxu0 %v715
      %3235 = vmatprep.subr.mxu0 0.0
      %3236 = vmatpush1.msra.mxu0 %v716
      %3237 = vmatprep.subr.mxu0 0.0
      %3238 = vmatpush1.msra.mxu0 %v717
      %3239 = vmatprep.subr.mxu0 0.0
      %3240 = vmatpush1.msra.mxu0 %v718
      %3241 = vmatprep.subr.mxu0 0.0
      %3242 = vmatpush1.msra.mxu0 %v719
      %3243 = vmatprep.subr.mxu0 0.0
      %3244 = vmatpush1.msra.mxu0 %v720
      %3245 = vmatprep.subr.mxu0 0.0
      %3246 = vmatpush1.msra.mxu0 %v721
      %3247 = vmatprep.subr.mxu0 0.0
      %3248 = vmatpush1.msra.mxu0 %v722
      %3249 = vmatprep.subr.mxu0 0.0
      %3250 = vmatpush1.msra.mxu0 %v723
      %3251 = vmatprep.subr.mxu0 0.0
      %3252 = vmatpush1.msra.mxu0 0.0
      %3253 = vmatprep.subr.mxu0 0.0
      %3254 = vmatpush1.msra.mxu0 0.0
      %3255 = vmatprep.subr.mxu0 0.0
      %3256 = vmatpush1.msra.mxu0 0.0
      %3257 = vmatprep.subr.mxu0 0.0
      %3258 = vmatpush1.msra.mxu0 0.0
      %3259 = vmatprep.subr.mxu0 0.0
      %3260 = vmatpush1.msra.mxu0 0.0
      %3261 = vmatprep.subr.mxu0 0.0
      %3262 = vmatpush1.msra.mxu0 0.0
      %3263 = vmatprep.subr.mxu0 0.0
      %3264 = vmatpush1.msra.mxu0 0.0
      %3265 = vmatprep.subr.mxu0 0.0
      %3266 = vmatpush1.msra.mxu0 0.0
      %3267 = vmatprep.subr.mxu0 0.0
      %3268 = vmatpush1.msra.mxu0 0.0
      %3269 = vmatprep.subr.mxu0 0.0
      %3270 = vmatpush1.msra.mxu0 0.0
      %3271 = vmatprep.subr.mxu0 0.0
      %3272 = vmatpush1.msra.mxu0 0.0
      %3273 = vmatprep.subr.mxu0 0.0
      %3274 = vmatpush1.msra.mxu0 0.0
      %3275 = vmatprep.subr.mxu0 0.0
      %3276 = vmatpush1.msra.mxu0 0.0
      %3277 = vmatprep.subr.mxu0 0.0
      %3278 = vmatpush1.msra.mxu0 0.0
      %3279 = vmatprep.subr.mxu0 0.0
      %3280 = vmatpush1.msra.mxu0 0.0
      %3281 = vmatprep.subr.mxu0 0.0
      %3282 = vmatpush1.msra.mxu0 0.0
      %3283 = vmatprep.mubr.f32.mxu0 0.0
      %3284 = vmatmul.mubr.f32.gmra.mrb[0].mxu0 %v2641
      %v3285 = vpop.f32.mrb[0].mxu0
      %v3286 = vadd.f32 0.0, %v3285
      %v3287 = vpop.f32.mrb[0].mxu0
      %3288 = vmatprep.mubr.f32.mxu0 0.0
      %3289 = vmatmul.mubr.f32.gmra.mrb[0].mxu0 %v2642
      %v3290 = vpop.f32.mrb[0].mxu0
      %v3291 = vadd.f32 0.0, %v3290
      %v3292 = vpop.f32.mrb[0].mxu0
      %3293 = vmatprep.mubr.f32.mxu0 0.0
      %3294 = vmatmul.mubr.f32.gmra.mrb[0].mxu0 %v2643
      %v3295 = vpop.f32.mrb[0].mxu0
      %v3296 = vadd.f32 0.0, %v3295
      %v3297 = vpop.f32.mrb[0].mxu0
      %3298 = vmatprep.mubr.f32.mxu0 0.0
      %3299 = vmatmul.mubr.f32.gmra.mrb[0].mxu0 %v2644
      %v3300 = vpop.f32.mrb[0].mxu0
      %v3301 = vadd.f32 0.0, %v3300
      %v3302 = vpop.f32.mrb[0].mxu0
      %3303 = vmatprep.mubr.f32.mxu0 0.0
      %3304 = vmatmul.mubr.f32.gmra.mrb[0].mxu0 %v2645
      %v3305 = vpop.f32.mrb[0].mxu0
      %v3306 = vadd.f32 0.0, %v3305
      %v3307 = vpop.f32.mrb[0].mxu0
      %3308 = vmatprep.mubr.f32.mxu0 0.0
      %3309 = vmatmul.mubr.f32.gmra.mrb[0].mxu0 %v2646
      %v3310 = vpop.f32.mrb[0].mxu0
      %v3311 = vadd.f32 0.0, %v3310
      %v3312 = vpop.f32.mrb[0].mxu0
      %3313 = vmatprep.mubr.f32.mxu0 0.0
      %3314 = vmatmul.mubr.f32.gmra.mrb[0].mxu0 %v2647
      %v3315 = vpop.f32.mrb[0].mxu0
      %v3316 = vadd.f32 0.0, %v3315
      %v3317 = vpop.f32.mrb[0].mxu0
      %3318 = vmatprep.mubr.f32.mxu0 0.0
      %3319 = vmatmul.mubr.f32.gmra.mrb[0].mxu0 %v2648
      %v3320 = vpop.f32.mrb[0].mxu0
      %v3321 = vadd.f32 0.0, %v3320
      %v3322 = vpop.f32.mrb[0].mxu0
      %3323 = vmatprep.mubr.f32.mxu0 0.0
      %3324 = vmatmul.mubr.f32.gmra.mrb[0].mxu0 %v2649
      %v3325 = vpop.f32.mrb[0].mxu0
      %v3326 = vadd.f32 0.0, %v3325
      %v3327 = vpop.f32.mrb[0].mxu0
      %3328 = vmatprep.mubr.f32.mxu0 0.0
      %3329 = vmatmul.mubr.f32.gmra.mrb[0].mxu0 %v2650
      %v3330 = vpop.f32.mrb[0].mxu0
      %v3331 = vadd.f32 0.0, %v3330
      %v3332 = vpop.f32.mrb[0].mxu0
      %3333 = vmatprep.mubr.f32.mxu0 0.0
      %3334 = vmatmul.mubr.f32.gmra.mrb[0].mxu0 %v2651
      %v3335 = vpop.f32.mrb[0].mxu0
      %v3336 = vadd.f32 0.0, %v3335
      %v3337 = vpop.f32.mrb[0].mxu0
      %3338 = vmatprep.mubr.f32.mxu0 0.0
      %3339 = vmatmul.mubr.f32.gmra.mrb[0].mxu0 %v2652
      %v3340 = vpop.f32.mrb[0].mxu0
      %v3341 = vadd.f32 0.0, %v3340
      %v3342 = vpop.f32.mrb[0].mxu0
      %3343 = vmatprep.mubr.f32.mxu0 0.0
      %3344 = vmatmul.mubr.f32.gmra.mrb[0].mxu0 %v2653
      %v3345 = vpop.f32.mrb[0].mxu0
      %v3346 = vadd.f32 0.0, %v3345
      %v3347 = vpop.f32.mrb[0].mxu0
      %3348 = vmatprep.mubr.f32.mxu0 0.0
      %3349 = vmatmul.mubr.f32.gmra.mrb[0].mxu0 %v2654
      %v3350 = vpop.f32.mrb[0].mxu0
      %v3351 = vadd.f32 0.0, %v3350
      %v3352 = vpop.f32.mrb[0].mxu0
      %3353 = vmatprep.mubr.f32.mxu0 0.0
      %3354 = vmatmul.mubr.f32.gmra.mrb[0].mxu0 %v2655
      %v3355 = vpop.f32.mrb[0].mxu0
      %v3356 = vadd.f32 0.0, %v3355
      %v3357 = vpop.f32.mrb[0].mxu0
      %3358 = vmatprep.mubr.f32.mxu0 0.0
      %3359 = vmatmul.mubr.f32.gmra.mrb[0].mxu0 %v2656
      %v3360 = vpop.f32.mrb[0].mxu0
      %v3361 = vadd.f32 0.0, %v3360
      %v3362 = vpop.f32.mrb[0].mxu0
      %3363 = vdwg.mxu0
      %3364 = vmatprep.subr.mxu0 0.0
      %3365 = vmatpush1.msra.mxu0 %v724
      %3366 = vmatprep.subr.mxu0 0.0
      %3367 = vmatpush1.msra.mxu0 %v725
      %3368 = vmatprep.subr.mxu0 0.0
      %3369 = vmatpush1.msra.mxu0 %v726
      %3370 = vmatprep.subr.mxu0 0.0
      %3371 = vmatpush1.msra.mxu0 %v727
      %3372 = vmatprep.subr.mxu0 0.0
      %3373 = vmatpush1.msra.mxu0 %v728
      %3374 = vmatprep.subr.mxu0 0.0
      %3375 = vmatpush1.msra.mxu0 %v729
      %3376 = vmatprep.subr.mxu0 0.0
      %3377 = vmatpush1.msra.mxu0 %v730
      %3378 = vmatprep.subr.mxu0 0.0
      %3379 = vmatpush1.msra.mxu0 %v731
      %3380 = vmatprep.subr.mxu0 0.0
      %3381 = vmatpush1.msra.mxu0 %v732
      %3382 = vmatprep.subr.mxu0 0.0
      %3383 = vmatpush1.msra.mxu0 %v733
      %3384 = vmatprep.subr.mxu0 0.0
      %3385 = vmatpush1.msra.mxu0 %v734
      %3386 = vmatprep.subr.mxu0 0.0
      %3387 = vmatpush1.msra.mxu0 %v735
      %3388 = vmatprep.subr.mxu0 0.0
      %3389 = vmatpush1.msra.mxu0 %v736
      %3390 = vmatprep.subr.mxu0 0.0
      %3391 = vmatpush1.msra.mxu0 %v737
      %3392 = vmatprep.subr.mxu0 0.0
      %3393 = vmatpush1.msra.mxu0 %v738
      %3394 = vmatprep.subr.mxu0 0.0
      %3395 = vmatpush1.msra.mxu0 %v739
      %3396 = vmatprep.subr.mxu0 0.0
      %3397 = vmatpush1.msra.mxu0 0.0
      %3398 = vmatprep.subr.mxu0 0.0
      %3399 = vmatpush1.msra.mxu0 0.0
      %3400 = vmatprep.subr.mxu0 0.0
      %3401 = vmatpush1.msra.mxu0 0.0
      %3402 = vmatprep.subr.mxu0 0.0
      %3403 = vmatpush1.msra.mxu0 0.0
      %3404 = vmatprep.subr.mxu0 0.0
      %3405 = vmatpush1.msra.mxu0 0.0
      %3406 = vmatprep.subr.mxu0 0.0
      %3407 = vmatpush1.msra.mxu0 0.0
      %3408 = vmatprep.subr.mxu0 0.0
      %3409 = vmatpush1.msra.mxu0 0.0
      %3410 = vmatprep.subr.mxu0 0.0
      %3411 = vmatpush1.msra.mxu0 0.0
      %3412 = vmatprep.subr.mxu0 0.0
      %3413 = vmatpush1.msra.mxu0 0.0
      %3414 = vmatprep.subr.mxu0 0.0
      %3415 = vmatpush1.msra.mxu0 0.0
      %3416 = vmatprep.subr.mxu0 0.0
      %3417 = vmatpush1.msra.mxu0 0.0
      %3418 = vmatprep.subr.mxu0 0.0
      %3419 = vmatpush1.msra.mxu0 0.0
      %3420 = vmatprep.subr.mxu0 0.0
      %3421 = vmatpush1.msra.mxu0 0.0
      %3422 = vmatprep.subr.mxu0 0.0
      %3423 = vmatpush1.msra.mxu0 0.0
      %3424 = vmatprep.subr.mxu0 0.0
      %3425 = vmatpush1.msra.mxu0 0.0
      %3426 = vmatprep.subr.mxu0 0.0
      %3427 = vmatpush1.msra.mxu0 0.0
      %3428 = vmatprep.mubr.f32.mxu0 0.0
      %3429 = vmatmul.mubr.f32.gmra.mrb[0].mxu0 %v2657
      %v3430 = vpop.f32.mrb[0].mxu0
      %v3431 = vadd.f32 0.0, %v3430
      %v3432 = vpop.f32.mrb[0].mxu0
      %3433 = vmatprep.mubr.f32.mxu0 0.0
      %3434 = vmatmul.mubr.f32.gmra.mrb[0].mxu0 %v2658
      %v3435 = vpop.f32.mrb[0].mxu0
      %v3436 = vadd.f32 0.0, %v3435
      %v3437 = vpop.f32.mrb[0].mxu0
      %3438 = vmatprep.mubr.f32.mxu0 0.0
      %3439 = vmatmul.mubr.f32.gmra.mrb[0].mxu0 %v2659
      %v3440 = vpop.f32.mrb[0].mxu0
      %v3441 = vadd.f32 0.0, %v3440
      %v3442 = vpop.f32.mrb[0].mxu0
      %3443 = vmatprep.mubr.f32.mxu0 0.0
      %3444 = vmatmul.mubr.f32.gmra.mrb[0].mxu0 %v2660
      %v3445 = vpop.f32.mrb[0].mxu0
      %v3446 = vadd.f32 0.0, %v3445
      %v3447 = vpop.f32.mrb[0].mxu0
      %3448 = vmatprep.mubr.f32.mxu0 0.0
      %3449 = vmatmul.mubr.f32.gmra.mrb[0].mxu0 %v2661
      %v3450 = vpop.f32.mrb[0].mxu0
      %v3451 = vadd.f32 0.0, %v3450
      %v3452 = vpop.f32.mrb[0].mxu0
      %3453 = vmatprep.mubr.f32.mxu0 0.0
      %3454 = vmatmul.mubr.f32.gmra.mrb[0].mxu0 %v2662
      %v3455 = vpop.f32.mrb[0].mxu0
      %v3456 = vadd.f32 0.0, %v3455
      %v3457 = vpop.f32.mrb[0].mxu0
      %3458 = vmatprep.mubr.f32.mxu0 0.0
      %3459 = vmatmul.mubr.f32.gmra.mrb[0].mxu0 %v2663
      %v3460 = vpop.f32.mrb[0].mxu0
      %v3461 = vadd.f32 0.0, %v3460
      %v3462 = vpop.f32.mrb[0].mxu0
      %3463 = vmatprep.mubr.f32.mxu0 0.0
      %3464 = vmatmul.mubr.f32.gmra.mrb[0].mxu0 %v2664
      %v3465 = vpop.f32.mrb[0].mxu0
      %v3466 = vadd.f32 0.0, %v3465
      %v3467 = vpop.f32.mrb[0].mxu0
      %3468 = vmatprep.mubr.f32.mxu0 0.0
      %3469 = vmatmul.mubr.f32.gmra.mrb[0].mxu0 %v2665
      %v3470 = vpop.f32.mrb[0].mxu0
      %v3471 = vadd.f32 0.0, %v3470
      %v3472 = vpop.f32.mrb[0].mxu0
      %3473 = vmatprep.mubr.f32.mxu0 0.0
      %3474 = vmatmul.mubr.f32.gmra.mrb[0].mxu0 %v2666
      %v3475 = vpop.f32.mrb[0].mxu0
      %v3476 = vadd.f32 0.0, %v3475
      %v3477 = vpop.f32.mrb[0].mxu0
      %3478 = vmatprep.mubr.f32.mxu0 0.0
      %3479 = vmatmul.mubr.f32.gmra.mrb[0].mxu0 %v2667
      %v3480 = vpop.f32.mrb[0].mxu0
      %v3481 = vadd.f32 0.0, %v3480
      %v3482 = vpop.f32.mrb[0].mxu0
      %3483 = vmatprep.mubr.f32.mxu0 0.0
      %3484 = vmatmul.mubr.f32.gmra.mrb[0].mxu0 %v2668
      %v3485 = vpop.f32.mrb[0].mxu0
      %v3486 = vadd.f32 0.0, %v3485
      %v3487 = vpop.f32.mrb[0].mxu0
      %3488 = vmatprep.mubr.f32.mxu0 0.0
      %3489 = vmatmul.mubr.f32.gmra.mrb[0].mxu0 %v2669
      %v3490 = vpop.f32.mrb[0].mxu0
      %v3491 = vadd.f32 0.0, %v3490
      %v3492 = vpop.f32.mrb[0].mxu0
      %3493 = vmatprep.mubr.f32.mxu0 0.0
      %3494 = vmatmul.mubr.f32.gmra.mrb[0].mxu0 %v2670
      %v3495 = vpop.f32.mrb[0].mxu0
      %v3496 = vadd.f32 0.0, %v3495
      %v3497 = vpop.f32.mrb[0].mxu0
      %3498 = vmatprep.mubr.f32.mxu0 0.0
      %3499 = vmatmul.mubr.f32.gmra.mrb[0].mxu0 %v2671
      %v3500 = vpop.f32.mrb[0].mxu0
      %v3501 = vadd.f32 0.0, %v3500
      %v3502 = vpop.f32.mrb[0].mxu0
      %3503 = vmatprep.mubr.f32.mxu0 0.0
      %3504 = vmatmul.mubr.f32.gmra.mrb[0].mxu0 %v2672
      %v3505 = vpop.f32.mrb[0].mxu0
      %v3506 = vadd.f32 0.0, %v3505
      %v3507 = vpop.f32.mrb[0].mxu0
      %3508 = vdwg.mxu0
      %3509 = vmatprep.subr.mxu0 0.0
      %3510 = vmatpush1.msra.mxu0 %v740
      %3511 = vmatprep.subr.mxu0 0.0
      %3512 = vmatpush1.msra.mxu0 %v741
      %3513 = vmatprep.subr.mxu0 0.0
      %3514 = vmatpush1.msra.mxu0 %v742
      %3515 = vmatprep.subr.mxu0 0.0
      %3516 = vmatpush1.msra.mxu0 %v743
      %3517 = vmatprep.subr.mxu0 0.0
      %3518 = vmatpush1.msra.mxu0 %v744
      %3519 = vmatprep.subr.mxu0 0.0
      %3520 = vmatpush1.msra.mxu0 %v745
      %3521 = vmatprep.subr.mxu0 0.0
      %3522 = vmatpush1.msra.mxu0 %v746
      %3523 = vmatprep.subr.mxu0 0.0
      %3524 = vmatpush1.msra.mxu0 %v747
      %3525 = vmatprep.subr.mxu0 0.0
      %3526 = vmatpush1.msra.mxu0 %v748
      %3527 = vmatprep.subr.mxu0 0.0
      %3528 = vmatpush1.msra.mxu0 %v749
      %3529 = vmatprep.subr.mxu0 0.0
      %3530 = vmatpush1.msra.mxu0 %v750
      %3531 = vmatprep.subr.mxu0 0.0
      %3532 = vmatpush1.msra.mxu0 %v751
      %3533 = vmatprep.subr.mxu0 0.0
      %3534 = vmatpush1.msra.mxu0 %v752
      %3535 = vmatprep.subr.mxu0 0.0
      %3536 = vmatpush1.msra.mxu0 %v753
      %3537 = vmatprep.subr.mxu0 0.0
      %3538 = vmatpush1.msra.mxu0 %v754
      %3539 = vmatprep.subr.mxu0 0.0
      %3540 = vmatpush1.msra.mxu0 %v755
      %3541 = vmatprep.subr.mxu0 0.0
      %3542 = vmatpush1.msra.mxu0 0.0
      %3543 = vmatprep.subr.mxu0 0.0
      %3544 = vmatpush1.msra.mxu0 0.0
      %3545 = vmatprep.subr.mxu0 0.0
      %3546 = vmatpush1.msra.mxu0 0.0
      %3547 = vmatprep.subr.mxu0 0.0
      %3548 = vmatpush1.msra.mxu0 0.0
      %3549 = vmatprep.subr.mxu0 0.0
      %3550 = vmatpush1.msra.mxu0 0.0
      %3551 = vmatprep.subr.mxu0 0.0
      %3552 = vmatpush1.msra.mxu0 0.0
      %3553 = vmatprep.subr.mxu0 0.0
      %3554 = vmatpush1.msra.mxu0 0.0
      %3555 = vmatprep.subr.mxu0 0.0
      %3556 = vmatpush1.msra.mxu0 0.0
      %3557 = vmatprep.subr.mxu0 0.0
      %3558 = vmatpush1.msra.mxu0 0.0
      %3559 = vmatprep.subr.mxu0 0.0
      %3560 = vmatpush1.msra.mxu0 0.0
      %3561 = vmatprep.subr.mxu0 0.0
      %3562 = vmatpush1.msra.mxu0 0.0
      %3563 = vmatprep.subr.mxu0 0.0
      %3564 = vmatpush1.msra.mxu0 0.0
      %3565 = vmatprep.subr.mxu0 0.0
      %3566 = vmatpush1.msra.mxu0 0.0
      %3567 = vmatprep.subr.mxu0 0.0
      %3568 = vmatpush1.msra.mxu0 0.0
      %3569 = vmatprep.subr.mxu0 0.0
      %3570 = vmatpush1.msra.mxu0 0.0
      %3571 = vmatprep.subr.mxu0 0.0
      %3572 = vmatpush1.msra.mxu0 0.0
      %3573 = vmatprep.mubr.f32.mxu0 0.0
      %3574 = vmatmul.mubr.f32.gmra.mrb[0].mxu0 %v2673
      %v3575 = vpop.f32.mrb[0].mxu0
      %v3576 = vadd.f32 0.0, %v3575
      %v3577 = vpop.f32.mrb[0].mxu0
      %3578 = vmatprep.mubr.f32.mxu0 0.0
      %3579 = vmatmul.mubr.f32.gmra.mrb[0].mxu0 %v2674
      %v3580 = vpop.f32.mrb[0].mxu0
      %v3581 = vadd.f32 0.0, %v3580
      %v3582 = vpop.f32.mrb[0].mxu0
      %3583 = vmatprep.mubr.f32.mxu0 0.0
      %3584 = vmatmul.mubr.f32.gmra.mrb[0].mxu0 %v2675
      %v3585 = vpop.f32.mrb[0].mxu0
      %v3586 = vadd.f32 0.0, %v3585
      %v3587 = vpop.f32.mrb[0].mxu0
      %3588 = vmatprep.mubr.f32.mxu0 0.0
      %3589 = vmatmul.mubr.f32.gmra.mrb[0].mxu0 %v2676
      %v3590 = vpop.f32.mrb[0].mxu0
      %v3591 = vadd.f32 0.0, %v3590
      %v3592 = vpop.f32.mrb[0].mxu0
      %3593 = vmatprep.mubr.f32.mxu0 0.0
      %3594 = vmatmul.mubr.f32.gmra.mrb[0].mxu0 %v2677
      %v3595 = vpop.f32.mrb[0].mxu0
      %v3596 = vadd.f32 0.0, %v3595
      %v3597 = vpop.f32.mrb[0].mxu0
      %3598 = vmatprep.mubr.f32.mxu0 0.0
      %3599 = vmatmul.mubr.f32.gmra.mrb[0].mxu0 %v2678
      %v3600 = vpop.f32.mrb[0].mxu0
      %v3601 = vadd.f32 0.0, %v3600
      %v3602 = vpop.f32.mrb[0].mxu0
      %3603 = vmatprep.mubr.f32.mxu0 0.0
      %3604 = vmatmul.mubr.f32.gmra.mrb[0].mxu0 %v2679
      %v3605 = vpop.f32.mrb[0].mxu0
      %v3606 = vadd.f32 0.0, %v3605
      %v3607 = vpop.f32.mrb[0].mxu0
      %3608 = vmatprep.mubr.f32.mxu0 0.0
      %3609 = vmatmul.mubr.f32.gmra.mrb[0].mxu0 %v2680
      %v3610 = vpop.f32.mrb[0].mxu0
      %v3611 = vadd.f32 0.0, %v3610
      %v3612 = vpop.f32.mrb[0].mxu0
      %3613 = vmatprep.mubr.f32.mxu0 0.0
      %3614 = vmatmul.mubr.f32.gmra.mrb[0].mxu0 %v2681
      %v3615 = vpop.f32.mrb[0].mxu0
      %v3616 = vadd.f32 0.0, %v3615
      %v3617 = vpop.f32.mrb[0].mxu0
      %3618 = vmatprep.mubr.f32.mxu0 0.0
      %3619 = vmatmul.mubr.f32.gmra.mrb[0].mxu0 %v2682
      %v3620 = vpop.f32.mrb[0].mxu0
      %v3621 = vadd.f32 0.0, %v3620
      %v3622 = vpop.f32.mrb[0].mxu0
      %3623 = vmatprep.mubr.f32.mxu0 0.0
      %3624 = vmatmul.mubr.f32.gmra.mrb[0].mxu0 %v2683
      %v3625 = vpop.f32.mrb[0].mxu0
      %v3626 = vadd.f32 0.0, %v3625
      %v3627 = vpop.f32.mrb[0].mxu0
      %3628 = vmatprep.mubr.f32.mxu0 0.0
      %3629 = vmatmul.mubr.f32.gmra.mrb[0].mxu0 %v2684
      %v3630 = vpop.f32.mrb[0].mxu0
      %v3631 = vadd.f32 0.0, %v3630
      %v3632 = vpop.f32.mrb[0].mxu0
      %3633 = vmatprep.mubr.f32.mxu0 0.0
      %3634 = vmatmul.mubr.f32.gmra.mrb[0].mxu0 %v2685
      %v3635 = vpop.f32.mrb[0].mxu0
      %v3636 = vadd.f32 0.0, %v3635
      %v3637 = vpop.f32.mrb[0].mxu0
      %3638 = vmatprep.mubr.f32.mxu0 0.0
      %3639 = vmatmul.mubr.f32.gmra.mrb[0].mxu0 %v2686
      %v3640 = vpop.f32.mrb[0].mxu0
      %v3641 = vadd.f32 0.0, %v3640
      %v3642 = vpop.f32.mrb[0].mxu0
      %3643 = vmatprep.mubr.f32.mxu0 0.0
      %3644 = vmatmul.mubr.f32.gmra.mrb[0].mxu0 %v2687
      %v3645 = vpop.f32.mrb[0].mxu0
      %v3646 = vadd.f32 0.0, %v3645
      %v3647 = vpop.f32.mrb[0].mxu0
      %3648 = vmatprep.mubr.f32.mxu0 0.0
      %3649 = vmatmul.mubr.f32.gmra.mrb[0].mxu0 %v2688
      %v3650 = vpop.f32.mrb[0].mxu0
      %v3651 = vadd.f32 0.0, %v3650
      %v3652 = vpop.f32.mrb[0].mxu0
      %3653 = vdwg.mxu0
      %v3654 = vld [vmem:[#allocation4] sm:$0xff]
      %v3655 = vld [vmem:[#allocation4 + $0x8] sm:$0xff]
      %v3656 = vld [vmem:[#allocation4 + $0x10] sm:$0xff]
      %v3657 = vld [vmem:[#allocation4 + $0x18] sm:$0xff]
      %v3658 = vld [vmem:[#allocation4 + $0x20] sm:$0xff]
      %v3659 = vld [vmem:[#allocation4 + $0x28] sm:$0xff]
      %v3660 = vld [vmem:[#allocation4 + $0x30] sm:$0xff]
      %v3661 = vld [vmem:[#allocation4 + $0x38] sm:$0xff]
      %v3662 = vld [vmem:[#allocation4 + $0x40] sm:$0xff]
      %v3663 = vld [vmem:[#allocation4 + $0x48] sm:$0xff]
      %v3664 = vld [vmem:[#allocation4 + $0x50] sm:$0xff]
      %v3665 = vld [vmem:[#allocation4 + $0x58] sm:$0xff]
      %v3666 = vld [vmem:[#allocation4 + $0x60] sm:$0xff]
      %v3667 = vld [vmem:[#allocation4 + $0x68] sm:$0xff]
      %v3668 = vld [vmem:[#allocation4 + $0x70] sm:$0xff]
      %v3669 = vld [vmem:[#allocation4 + $0x78] sm:$0xff]
      %v3670 = vld [vmem:[#allocation4 + $0x80] sm:$0xff]
      %v3671 = vld [vmem:[#allocation4 + $0x88] sm:$0xff]
      %v3672 = vld [vmem:[#allocation4 + $0x90] sm:$0xff]
      %v3673 = vld [vmem:[#allocation4 + $0x98] sm:$0xff]
      %v3674 = vld [vmem:[#allocation4 + $0xa0] sm:$0xff]
      %v3675 = vld [vmem:[#allocation4 + $0xa8] sm:$0xff]
      %v3676 = vld [vmem:[#allocation4 + $0xb0] sm:$0xff]
      %v3677 = vld [vmem:[#allocation4 + $0xb8] sm:$0xff]
      %v3678 = vld [vmem:[#allocation4 + $0xc0] sm:$0xff]
      %v3679 = vld [vmem:[#allocation4 + $0xc8] sm:$0xff]
      %v3680 = vld [vmem:[#allocation4 + $0xd0] sm:$0xff]
      %v3681 = vld [vmem:[#allocation4 + $0xd8] sm:$0xff]
      %v3682 = vld [vmem:[#allocation4 + $0xe0] sm:$0xff]
      %v3683 = vld [vmem:[#allocation4 + $0xe8] sm:$0xff]
      %v3684 = vld [vmem:[#allocation4 + $0xf0] sm:$0xff]
      %v3685 = vld [vmem:[#allocation4 + $0xf8] sm:$0xff]
      %v3686 = vld [vmem:[#allocation4 + $0x100] sm:$0xff]
      %v3687 = vld [vmem:[#allocation4 + $0x108] sm:$0xff]
      %v3688 = vld [vmem:[#allocation4 + $0x110] sm:$0xff]
      %v3689 = vld [vmem:[#allocation4 + $0x118] sm:$0xff]
      %v3690 = vld [vmem:[#allocation4 + $0x120] sm:$0xff]
      %v3691 = vld [vmem:[#allocation4 + $0x128] sm:$0xff]
      %v3692 = vld [vmem:[#allocation4 + $0x130] sm:$0xff]
      %v3693 = vld [vmem:[#allocation4 + $0x138] sm:$0xff]
      %v3694 = vld [vmem:[#allocation4 + $0x140] sm:$0xff]
      %v3695 = vld [vmem:[#allocation4 + $0x148] sm:$0xff]
      %v3696 = vld [vmem:[#allocation4 + $0x150] sm:$0xff]
      %v3697 = vld [vmem:[#allocation4 + $0x158] sm:$0xff]
      %v3698 = vld [vmem:[#allocation4 + $0x160] sm:$0xff]
      %v3699 = vld [vmem:[#allocation4 + $0x168] sm:$0xff]
      %v3700 = vld [vmem:[#allocation4 + $0x170] sm:$0xff]
      %v3701 = vld [vmem:[#allocation4 + $0x178] sm:$0xff]
      %v3702 = vld [vmem:[#allocation4 + $0x180] sm:$0xff]
      %v3703 = vld [vmem:[#allocation4 + $0x188] sm:$0xff]
      %v3704 = vld [vmem:[#allocation4 + $0x190] sm:$0xff]
      %v3705 = vld [vmem:[#allocation4 + $0x198] sm:$0xff]
      %v3706 = vld [vmem:[#allocation4 + $0x1a0] sm:$0xff]
      %v3707 = vld [vmem:[#allocation4 + $0x1a8] sm:$0xff]
      %v3708 = vld [vmem:[#allocation4 + $0x1b0] sm:$0xff]
      %v3709 = vld [vmem:[#allocation4 + $0x1b8] sm:$0xff]
      %v3710 = vld [vmem:[#allocation4 + $0x1c0] sm:$0xff]
      %v3711 = vld [vmem:[#allocation4 + $0x1c8] sm:$0xff]
      %v3712 = vld [vmem:[#allocation4 + $0x1d0] sm:$0xff]
      %v3713 = vld [vmem:[#allocation4 + $0x1d8] sm:$0xff]
      %v3714 = vld [vmem:[#allocation4 + $0x1e0] sm:$0xff]
      %v3715 = vld [vmem:[#allocation4 + $0x1e8] sm:$0xff]
      %v3716 = vld [vmem:[#allocation4 + $0x1f0] sm:$0xff]
      %v3717 = vld [vmem:[#allocation4 + $0x1f8] sm:$0xff]
      %3719 = vset.pattern.permute.xlu0 0
      %3720 = vperm.xlu0 %3719, %v2177
      %v3721 = vpop.permute.xlu0 %3720
      %3724 = vset.pattern.permute.xlu0 0
      %3725 = vperm.xlu0 %3724, %v2178
      %v3726 = vpop.permute.xlu0 %3725
      %3729 = vset.pattern.permute.xlu0 0
      %3730 = vperm.xlu0 %3729, %v2179
      %v3731 = vpop.permute.xlu0 %3730
      %3734 = vset.pattern.permute.xlu0 0
      %3735 = vperm.xlu0 %3734, %v2180
      %v3736 = vpop.permute.xlu0 %3735
      %3739 = vset.pattern.permute.xlu0 0
      %3740 = vperm.xlu0 %3739, %v2181
      %v3741 = vpop.permute.xlu0 %3740
      %3744 = vset.pattern.permute.xlu0 0
      %3745 = vperm.xlu0 %3744, %v2182
      %v3746 = vpop.permute.xlu0 %3745
      %3749 = vset.pattern.permute.xlu0 0
      %3750 = vperm.xlu0 %3749, %v2183
      %v3751 = vpop.permute.xlu0 %3750
      %3754 = vset.pattern.permute.xlu0 0
      %3755 = vperm.xlu0 %3754, %v2184
      %v3756 = vpop.permute.xlu0 %3755
      %3759 = vset.pattern.permute.xlu0 0
      %3760 = vperm.xlu0 %3759, %v2185
      %v3761 = vpop.permute.xlu0 %3760
      %3764 = vset.pattern.permute.xlu0 0
      %3765 = vperm.xlu0 %3764, %v2186
      %v3766 = vpop.permute.xlu0 %3765
      %3769 = vset.pattern.permute.xlu0 0
      %3770 = vperm.xlu0 %3769, %v2187
      %v3771 = vpop.permute.xlu0 %3770
      %3774 = vset.pattern.permute.xlu0 0
      %3775 = vperm.xlu0 %3774, %v2188
      %v3776 = vpop.permute.xlu0 %3775
      %3779 = vset.pattern.permute.xlu0 0
      %3780 = vperm.xlu0 %3779, %v2189
      %v3781 = vpop.permute.xlu0 %3780
      %3784 = vset.pattern.permute.xlu0 0
      %3785 = vperm.xlu0 %3784, %v2190
      %v3786 = vpop.permute.xlu0 %3785
      %3789 = vset.pattern.permute.xlu0 0
      %3790 = vperm.xlu0 %3789, %v2191
      %v3791 = vpop.permute.xlu0 %3790
      %3794 = vset.pattern.permute.xlu0 0
      %3795 = vperm.xlu0 %3794, %v2192
      %v3796 = vpop.permute.xlu0 %3795
      %3799 = vset.pattern.permute.xlu0 0
      %3800 = vperm.xlu0 %3799, %v2193
      %v3801 = vpop.permute.xlu0 %3800
      %3804 = vset.pattern.permute.xlu0 0
      %3805 = vperm.xlu0 %3804, %v2194
      %v3806 = vpop.permute.xlu0 %3805
      %3809 = vset.pattern.permute.xlu0 0
      %3810 = vperm.xlu0 %3809, %v2195
      %v3811 = vpop.permute.xlu0 %3810
      %3814 = vset.pattern.permute.xlu0 0
      %3815 = vperm.xlu0 %3814, %v2196
      %v3816 = vpop.permute.xlu0 %3815
      %3819 = vset.pattern.permute.xlu0 0
      %3820 = vperm.xlu0 %3819, %v2197
      %v3821 = vpop.permute.xlu0 %3820
      %3824 = vset.pattern.permute.xlu0 0
      %3825 = vperm.xlu0 %3824, %v2198
      %v3826 = vpop.permute.xlu0 %3825
      %3829 = vset.pattern.permute.xlu0 0
      %3830 = vperm.xlu0 %3829, %v2199
      %v3831 = vpop.permute.xlu0 %3830
      %3834 = vset.pattern.permute.xlu0 0
      %3835 = vperm.xlu0 %3834, %v2200
      %v3836 = vpop.permute.xlu0 %3835
      %3839 = vset.pattern.permute.xlu0 0
      %3840 = vperm.xlu0 %3839, %v2201
      %v3841 = vpop.permute.xlu0 %3840
      %3844 = vset.pattern.permute.xlu0 0
      %3845 = vperm.xlu0 %3844, %v2202
      %v3846 = vpop.permute.xlu0 %3845
      %3849 = vset.pattern.permute.xlu0 0
      %3850 = vperm.xlu0 %3849, %v2203
      %v3851 = vpop.permute.xlu0 %3850
      %3854 = vset.pattern.permute.xlu0 0
      %3855 = vperm.xlu0 %3854, %v2204
      %v3856 = vpop.permute.xlu0 %3855
      %3859 = vset.pattern.permute.xlu0 0
      %3860 = vperm.xlu0 %3859, %v2205
      %v3861 = vpop.permute.xlu0 %3860
      %3864 = vset.pattern.permute.xlu0 0
      %3865 = vperm.xlu0 %3864, %v2206
      %v3866 = vpop.permute.xlu0 %3865
      %3869 = vset.pattern.permute.xlu0 0
      %3870 = vperm.xlu0 %3869, %v2207
      %v3871 = vpop.permute.xlu0 %3870
      %3874 = vset.pattern.permute.xlu0 0
      %3875 = vperm.xlu0 %3874, %v2208
      %v3876 = vpop.permute.xlu0 %3875
      %3879 = vset.pattern.permute.xlu0 0
      %3880 = vperm.xlu0 %3879, %v2209
      %v3881 = vpop.permute.xlu0 %3880
      %3884 = vset.pattern.permute.xlu0 0
      %3885 = vperm.xlu0 %3884, %v2210
      %v3886 = vpop.permute.xlu0 %3885
      %3889 = vset.pattern.permute.xlu0 0
      %3890 = vperm.xlu0 %3889, %v2211
      %v3891 = vpop.permute.xlu0 %3890
      %3894 = vset.pattern.permute.xlu0 0
      %3895 = vperm.xlu0 %3894, %v2212
      %v3896 = vpop.permute.xlu0 %3895
      %3899 = vset.pattern.permute.xlu0 0
      %3900 = vperm.xlu0 %3899, %v2213
      %v3901 = vpop.permute.xlu0 %3900
      %3904 = vset.pattern.permute.xlu0 0
      %3905 = vperm.xlu0 %3904, %v2214
      %v3906 = vpop.permute.xlu0 %3905
      %3909 = vset.pattern.permute.xlu0 0
      %3910 = vperm.xlu0 %3909, %v2215
      %v3911 = vpop.permute.xlu0 %3910
      %3914 = vset.pattern.permute.xlu0 0
      %3915 = vperm.xlu0 %3914, %v2216
      %v3916 = vpop.permute.xlu0 %3915
      %3919 = vset.pattern.permute.xlu0 0
      %3920 = vperm.xlu0 %3919, %v2217
      %v3921 = vpop.permute.xlu0 %3920
      %3924 = vset.pattern.permute.xlu0 0
      %3925 = vperm.xlu0 %3924, %v2218
      %v3926 = vpop.permute.xlu0 %3925
      %3929 = vset.pattern.permute.xlu0 0
      %3930 = vperm.xlu0 %3929, %v2219
      %v3931 = vpop.permute.xlu0 %3930
      %3934 = vset.pattern.permute.xlu0 0
      %3935 = vperm.xlu0 %3934, %v2220
      %v3936 = vpop.permute.xlu0 %3935
      %3939 = vset.pattern.permute.xlu0 0
      %3940 = vperm.xlu0 %3939, %v2221
      %v3941 = vpop.permute.xlu0 %3940
      %3944 = vset.pattern.permute.xlu0 0
      %3945 = vperm.xlu0 %3944, %v2222
      %v3946 = vpop.permute.xlu0 %3945
      %3949 = vset.pattern.permute.xlu0 0
      %3950 = vperm.xlu0 %3949, %v2223
      %v3951 = vpop.permute.xlu0 %3950
      %3954 = vset.pattern.permute.xlu0 0
      %3955 = vperm.xlu0 %3954, %v2224
      %v3956 = vpop.permute.xlu0 %3955
      %3959 = vset.pattern.permute.xlu0 0
      %3960 = vperm.xlu0 %3959, %v2225
      %v3961 = vpop.permute.xlu0 %3960
      %3964 = vset.pattern.permute.xlu0 0
      %3965 = vperm.xlu0 %3964, %v2226
      %v3966 = vpop.permute.xlu0 %3965
      %3969 = vset.pattern.permute.xlu0 0
      %3970 = vperm.xlu0 %3969, %v2227
      %v3971 = vpop.permute.xlu0 %3970
      %3974 = vset.pattern.permute.xlu0 0
      %3975 = vperm.xlu0 %3974, %v2228
      %v3976 = vpop.permute.xlu0 %3975
      %3979 = vset.pattern.permute.xlu0 0
      %3980 = vperm.xlu0 %3979, %v2229
      %v3981 = vpop.permute.xlu0 %3980
      %3984 = vset.pattern.permute.xlu0 0
      %3985 = vperm.xlu0 %3984, %v2230
      %v3986 = vpop.permute.xlu0 %3985
      %3989 = vset.pattern.permute.xlu0 0
      %3990 = vperm.xlu0 %3989, %v2231
      %v3991 = vpop.permute.xlu0 %3990
      %3994 = vset.pattern.permute.xlu0 0
      %3995 = vperm.xlu0 %3994, %v2232
      %v3996 = vpop.permute.xlu0 %3995
      %3999 = vset.pattern.permute.xlu0 0
      %4000 = vperm.xlu0 %3999, %v2233
      %v4001 = vpop.permute.xlu0 %4000
      %4004 = vset.pattern.permute.xlu0 0
      %4005 = vperm.xlu0 %4004, %v2234
      %v4006 = vpop.permute.xlu0 %4005
      %4009 = vset.pattern.permute.xlu0 0
      %4010 = vperm.xlu0 %4009, %v2235
      %v4011 = vpop.permute.xlu0 %4010
      %4014 = vset.pattern.permute.xlu0 0
      %4015 = vperm.xlu0 %4014, %v2236
      %v4016 = vpop.permute.xlu0 %4015
      %4019 = vset.pattern.permute.xlu0 0
      %4020 = vperm.xlu0 %4019, %v2237
      %v4021 = vpop.permute.xlu0 %4020
      %4024 = vset.pattern.permute.xlu0 0
      %4025 = vperm.xlu0 %4024, %v2238
      %v4026 = vpop.permute.xlu0 %4025
      %4029 = vset.pattern.permute.xlu0 0
      %4030 = vperm.xlu0 %4029, %v2239
      %v4031 = vpop.permute.xlu0 %4030
      %4034 = vset.pattern.permute.xlu0 0
      %4035 = vperm.xlu0 %4034, %v2240
      %v4036 = vpop.permute.xlu0 %4035
      %v4038 = vmul.f32 %v3721, %v3654
      %v4039 = vmul.f32 %v3726, %v3655
      %v4040 = vmul.f32 %v3731, %v3656
      %v4041 = vmul.f32 %v3736, %v3657
      %v4042 = vmul.f32 %v3741, %v3658
      %v4043 = vmul.f32 %v3746, %v3659
      %v4044 = vmul.f32 %v3751, %v3660
      %v4045 = vmul.f32 %v3756, %v3661
      %v4046 = vmul.f32 %v3761, %v3662
      %v4047 = vmul.f32 %v3766, %v3663
      %v4048 = vmul.f32 %v3771, %v3664
      %v4049 = vmul.f32 %v3776, %v3665
      %v4050 = vmul.f32 %v3781, %v3666
      %v4051 = vmul.f32 %v3786, %v3667
      %v4052 = vmul.f32 %v3791, %v3668
      %v4053 = vmul.f32 %v3796, %v3669
      %v4054 = vmul.f32 %v3801, %v3670
      %v4055 = vmul.f32 %v3806, %v3671
      %v4056 = vmul.f32 %v3811, %v3672
      %v4057 = vmul.f32 %v3816, %v3673
      %v4058 = vmul.f32 %v3821, %v3674
      %v4059 = vmul.f32 %v3826, %v3675
      %v4060 = vmul.f32 %v3831, %v3676
      %v4061 = vmul.f32 %v3836, %v3677
      %v4062 = vmul.f32 %v3841, %v3678
      %v4063 = vmul.f32 %v3846, %v3679
      %v4064 = vmul.f32 %v3851, %v3680
      %v4065 = vmul.f32 %v3856, %v3681
      %v4066 = vmul.f32 %v3861, %v3682
      %v4067 = vmul.f32 %v3866, %v3683
      %v4068 = vmul.f32 %v3871, %v3684
      %v4069 = vmul.f32 %v3876, %v3685
      %v4070 = vmul.f32 %v3881, %v3686
      %v4071 = vmul.f32 %v3886, %v3687
      %v4072 = vmul.f32 %v3891, %v3688
      %v4073 = vmul.f32 %v3896, %v3689
      %v4074 = vmul.f32 %v3901, %v3690
      %v4075 = vmul.f32 %v3906, %v3691
      %v4076 = vmul.f32 %v3911, %v3692
      %v4077 = vmul.f32 %v3916, %v3693
      %v4078 = vmul.f32 %v3921, %v3694
      %v4079 = vmul.f32 %v3926, %v3695
      %v4080 = vmul.f32 %v3931, %v3696
      %v4081 = vmul.f32 %v3936, %v3697
      %v4082 = vmul.f32 %v3941, %v3698
      %v4083 = vmul.f32 %v3946, %v3699
      %v4084 = vmul.f32 %v3951, %v3700
      %v4085 = vmul.f32 %v3956, %v3701
      %v4086 = vmul.f32 %v3961, %v3702
      %v4087 = vmul.f32 %v3966, %v3703
      %v4088 = vmul.f32 %v3971, %v3704
      %v4089 = vmul.f32 %v3976, %v3705
      %v4090 = vmul.f32 %v3981, %v3706
      %v4091 = vmul.f32 %v3986, %v3707
      %v4092 = vmul.f32 %v3991, %v3708
      %v4093 = vmul.f32 %v3996, %v3709
      %v4094 = vmul.f32 %v4001, %v3710
      %v4095 = vmul.f32 %v4006, %v3711
      %v4096 = vmul.f32 %v4011, %v3712
      %v4097 = vmul.f32 %v4016, %v3713
      %v4098 = vmul.f32 %v4021, %v3714
      %v4099 = vmul.f32 %v4026, %v3715
      %v4100 = vmul.f32 %v4031, %v3716
      %v4101 = vmul.f32 %v4036, %v3717
      %v4102 = vadd.f32 %v4038, %v3141
      %v4103 = vadd.f32 %v4039, %v3146
      %v4104 = vadd.f32 %v4040, %v3151
      %v4105 = vadd.f32 %v4041, %v3156
      %v4106 = vadd.f32 %v4042, %v3161
      %v4107 = vadd.f32 %v4043, %v3166
      %v4108 = vadd.f32 %v4044, %v3171
      %v4109 = vadd.f32 %v4045, %v3176
      %v4110 = vadd.f32 %v4046, %v3181
      %v4111 = vadd.f32 %v4047, %v3186
      %v4112 = vadd.f32 %v4048, %v3191
      %v4113 = vadd.f32 %v4049, %v3196
      %v4114 = vadd.f32 %v4050, %v3201
      %v4115 = vadd.f32 %v4051, %v3206
      %v4116 = vadd.f32 %v4052, %v3211
      %v4117 = vadd.f32 %v4053, %v3216
      %v4118 = vadd.f32 %v4054, %v3286
      %v4119 = vadd.f32 %v4055, %v3291
      %v4120 = vadd.f32 %v4056, %v3296
      %v4121 = vadd.f32 %v4057, %v3301
      %v4122 = vadd.f32 %v4058, %v3306
      %v4123 = vadd.f32 %v4059, %v3311
      %v4124 = vadd.f32 %v4060, %v3316
      %v4125 = vadd.f32 %v4061, %v3321
      %v4126 = vadd.f32 %v4062, %v3326
      %v4127 = vadd.f32 %v4063, %v3331
      %v4128 = vadd.f32 %v4064, %v3336
      %v4129 = vadd.f32 %v4065, %v3341
      %v4130 = vadd.f32 %v4066, %v3346
      %v4131 = vadd.f32 %v4067, %v3351
      %v4132 = vadd.f32 %v4068, %v3356
      %v4133 = vadd.f32 %v4069, %v3361
      %v4134 = vadd.f32 %v4070, %v3431
      %v4135 = vadd.f32 %v4071, %v3436
      %v4136 = vadd.f32 %v4072, %v3441
      %v4137 = vadd.f32 %v4073, %v3446
      %v4138 = vadd.f32 %v4074, %v3451
      %v4139 = vadd.f32 %v4075, %v3456
      %v4140 = vadd.f32 %v4076, %v3461
      %v4141 = vadd.f32 %v4077, %v3466
      %v4142 = vadd.f32 %v4078, %v3471
      %v4143 = vadd.f32 %v4079, %v3476
      %v4144 = vadd.f32 %v4080, %v3481
      %v4145 = vadd.f32 %v4081, %v3486
      %v4146 = vadd.f32 %v4082, %v3491
      %v4147 = vadd.f32 %v4083, %v3496
      %v4148 = vadd.f32 %v4084, %v3501
      %v4149 = vadd.f32 %v4085, %v3506
      %v4150 = vadd.f32 %v4086, %v3576
      %v4151 = vadd.f32 %v4087, %v3581
      %v4152 = vadd.f32 %v4088, %v3586
      %v4153 = vadd.f32 %v4089, %v3591
      %v4154 = vadd.f32 %v4090, %v3596
      %v4155 = vadd.f32 %v4091, %v3601
      %v4156 = vadd.f32 %v4092, %v3606
      %v4157 = vadd.f32 %v4093, %v3611
      %v4158 = vadd.f32 %v4094, %v3616
      %v4159 = vadd.f32 %v4095, %v3621
      %v4160 = vadd.f32 %v4096, %v3626
      %v4161 = vadd.f32 %v4097, %v3631
      %v4162 = vadd.f32 %v4098, %v3636
      %v4163 = vadd.f32 %v4099, %v3641
      %v4164 = vadd.f32 %v4100, %v3646
      %v4165 = vadd.f32 %v4101, %v3651
      %4166 = vst.msk [vmem:[#allocation4] sm:$0xff] %vm820, %v4102
      %4167 = vst.msk [vmem:[#allocation4 + $0x8] sm:$0xff] %vm820, %v4103
      %4168 = vst.msk [vmem:[#allocation4 + $0x10] sm:$0xff] %vm820, %v4104
      %4169 = vst.msk [vmem:[#allocation4 + $0x18] sm:$0xff] %vm820, %v4105
      %4170 = vst.msk [vmem:[#allocation4 + $0x20] sm:$0xff] %vm820, %v4106
      %4171 = vst.msk [vmem:[#allocation4 + $0x28] sm:$0xff] %vm820, %v4107
      %4172 = vst.msk [vmem:[#allocation4 + $0x30] sm:$0xff] %vm820, %v4108
      %4173 = vst.msk [vmem:[#allocation4 + $0x38] sm:$0xff] %vm820, %v4109
      %4174 = vst.msk [vmem:[#allocation4 + $0x40] sm:$0xff] %vm820, %v4110
      %4175 = vst.msk [vmem:[#allocation4 + $0x48] sm:$0xff] %vm820, %v4111
      %4176 = vst.msk [vmem:[#allocation4 + $0x50] sm:$0xff] %vm820, %v4112
      %4177 = vst.msk [vmem:[#allocation4 + $0x58] sm:$0xff] %vm820, %v4113
      %4178 = vst.msk [vmem:[#allocation4 + $0x60] sm:$0xff] %vm820, %v4114
      %4179 = vst.msk [vmem:[#allocation4 + $0x68] sm:$0xff] %vm820, %v4115
      %4180 = vst.msk [vmem:[#allocation4 + $0x70] sm:$0xff] %vm820, %v4116
      %4181 = vst.msk [vmem:[#allocation4 + $0x78] sm:$0xff] %vm820, %v4117
      %4182 = vst.msk [vmem:[#allocation4 + $0x80] sm:$0xff] %vm820, %v4118
      %4183 = vst.msk [vmem:[#allocation4 + $0x88] sm:$0xff] %vm820, %v4119
      %4184 = vst.msk [vmem:[#allocation4 + $0x90] sm:$0xff] %vm820, %v4120
      %4185 = vst.msk [vmem:[#allocation4 + $0x98] sm:$0xff] %vm820, %v4121
      %4186 = vst.msk [vmem:[#allocation4 + $0xa0] sm:$0xff] %vm820, %v4122
      %4187 = vst.msk [vmem:[#allocation4 + $0xa8] sm:$0xff] %vm820, %v4123
      %4188 = vst.msk [vmem:[#allocation4 + $0xb0] sm:$0xff] %vm820, %v4124
      %4189 = vst.msk [vmem:[#allocation4 + $0xb8] sm:$0xff] %vm820, %v4125
      %4190 = vst.msk [vmem:[#allocation4 + $0xc0] sm:$0xff] %vm820, %v4126
      %4191 = vst.msk [vmem:[#allocation4 + $0xc8] sm:$0xff] %vm820, %v4127
      %4192 = vst.msk [vmem:[#allocation4 + $0xd0] sm:$0xff] %vm820, %v4128
      %4193 = vst.msk [vmem:[#allocation4 + $0xd8] sm:$0xff] %vm820, %v4129
      %4194 = vst.msk [vmem:[#allocation4 + $0xe0] sm:$0xff] %vm820, %v4130
      %4195 = vst.msk [vmem:[#allocation4 + $0xe8] sm:$0xff] %vm820, %v4131
      %4196 = vst.msk [vmem:[#allocation4 + $0xf0] sm:$0xff] %vm820, %v4132
      %4197 = vst.msk [vmem:[#allocation4 + $0xf8] sm:$0xff] %vm820, %v4133
      %4198 = vst.msk [vmem:[#allocation4 + $0x100] sm:$0xff] %vm820, %v4134
      %4199 = vst.msk [vmem:[#allocation4 + $0x108] sm:$0xff] %vm820, %v4135
      %4200 = vst.msk [vmem:[#allocation4 + $0x110] sm:$0xff] %vm820, %v4136
      %4201 = vst.msk [vmem:[#allocation4 + $0x118] sm:$0xff] %vm820, %v4137
      %4202 = vst.msk [vmem:[#allocation4 + $0x120] sm:$0xff] %vm820, %v4138
      %4203 = vst.msk [vmem:[#allocation4 + $0x128] sm:$0xff] %vm820, %v4139
      %4204 = vst.msk [vmem:[#allocation4 + $0x130] sm:$0xff] %vm820, %v4140
      %4205 = vst.msk [vmem:[#allocation4 + $0x138] sm:$0xff] %vm820, %v4141
      %4206 = vst.msk [vmem:[#allocation4 + $0x140] sm:$0xff] %vm820, %v4142
      %4207 = vst.msk [vmem:[#allocation4 + $0x148] sm:$0xff] %vm820, %v4143
      %4208 = vst.msk [vmem:[#allocation4 + $0x150] sm:$0xff] %vm820, %v4144
      %4209 = vst.msk [vmem:[#allocation4 + $0x158] sm:$0xff] %vm820, %v4145
      %4210 = vst.msk [vmem:[#allocation4 + $0x160] sm:$0xff] %vm820, %v4146
      %4211 = vst.msk [vmem:[#allocation4 + $0x168] sm:$0xff] %vm820, %v4147
      %4212 = vst.msk [vmem:[#allocation4 + $0x170] sm:$0xff] %vm820, %v4148
      %4213 = vst.msk [vmem:[#allocation4 + $0x178] sm:$0xff] %vm820, %v4149
      %4214 = vst.msk [vmem:[#allocation4 + $0x180] sm:$0xff] %vm820, %v4150
      %4215 = vst.msk [vmem:[#allocation4 + $0x188] sm:$0xff] %vm820, %v4151
      %4216 = vst.msk [vmem:[#allocation4 + $0x190] sm:$0xff] %vm820, %v4152
      %4217 = vst.msk [vmem:[#allocation4 + $0x198] sm:$0xff] %vm820, %v4153
      %4218 = vst.msk [vmem:[#allocation4 + $0x1a0] sm:$0xff] %vm820, %v4154
      %4219 = vst.msk [vmem:[#allocation4 + $0x1a8] sm:$0xff] %vm820, %v4155
      %4220 = vst.msk [vmem:[#allocation4 + $0x1b0] sm:$0xff] %vm820, %v4156
      %4221 = vst.msk [vmem:[#allocation4 + $0x1b8] sm:$0xff] %vm820, %v4157
      %4222 = vst.msk [vmem:[#allocation4 + $0x1c0] sm:$0xff] %vm820, %v4158
      %4223 = vst.msk [vmem:[#allocation4 + $0x1c8] sm:$0xff] %vm820, %v4159
      %4224 = vst.msk [vmem:[#allocation4 + $0x1d0] sm:$0xff] %vm820, %v4160
      %4225 = vst.msk [vmem:[#allocation4 + $0x1d8] sm:$0xff] %vm820, %v4161
      %4226 = vst.msk [vmem:[#allocation4 + $0x1e0] sm:$0xff] %vm820, %v4162
      %4227 = vst.msk [vmem:[#allocation4 + $0x1e8] sm:$0xff] %vm820, %v4163
      %4228 = vst.msk [vmem:[#allocation4 + $0x1f0] sm:$0xff] %vm820, %v4164
      %4229 = vst.msk [vmem:[#allocation4 + $0x1f8] sm:$0xff] %vm820, %v4165
      %4230 = vst.msk [vmem:[#allocation2] sm:$0xff] %vm3009, %v2049
      %4231 = vst.msk [vmem:[#allocation2 + $0x8] sm:$0xff] %vm3009, %v2050
      %4232 = vst.msk [vmem:[#allocation2 + $0x10] sm:$0xff] %vm3009, %v2051
      %4233 = vst.msk [vmem:[#allocation2 + $0x18] sm:$0xff] %vm3009, %v2052
      %4234 = vst.msk [vmem:[#allocation2 + $0x20] sm:$0xff] %vm3009, %v2053
      %4235 = vst.msk [vmem:[#allocation2 + $0x28] sm:$0xff] %vm3009, %v2054
      %4236 = vst.msk [vmem:[#allocation2 + $0x30] sm:$0xff] %vm3009, %v2055
      %4237 = vst.msk [vmem:[#allocation2 + $0x38] sm:$0xff] %vm3009, %v2056
      %4238 = vst.msk [vmem:[#allocation2 + $0x40] sm:$0xff] %vm3009, %v2057
      %4239 = vst.msk [vmem:[#allocation2 + $0x48] sm:$0xff] %vm3009, %v2058
      %4240 = vst.msk [vmem:[#allocation2 + $0x50] sm:$0xff] %vm3009, %v2059
      %4241 = vst.msk [vmem:[#allocation2 + $0x58] sm:$0xff] %vm3009, %v2060
      %4242 = vst.msk [vmem:[#allocation2 + $0x60] sm:$0xff] %vm3009, %v2061
      %4243 = vst.msk [vmem:[#allocation2 + $0x68] sm:$0xff] %vm3009, %v2062
      %4244 = vst.msk [vmem:[#allocation2 + $0x70] sm:$0xff] %vm3009, %v2063
      %4245 = vst.msk [vmem:[#allocation2 + $0x78] sm:$0xff] %vm3009, %v2064
      %4246 = vst.msk [vmem:[#allocation2 + $0x80] sm:$0xff] %vm3009, %v2065
      %4247 = vst.msk [vmem:[#allocation2 + $0x88] sm:$0xff] %vm3009, %v2066
      %4248 = vst.msk [vmem:[#allocation2 + $0x90] sm:$0xff] %vm3009, %v2067
      %4249 = vst.msk [vmem:[#allocation2 + $0x98] sm:$0xff] %vm3009, %v2068
      %4250 = vst.msk [vmem:[#allocation2 + $0xa0] sm:$0xff] %vm3009, %v2069
      %4251 = vst.msk [vmem:[#allocation2 + $0xa8] sm:$0xff] %vm3009, %v2070
      %4252 = vst.msk [vmem:[#allocation2 + $0xb0] sm:$0xff] %vm3009, %v2071
      %4253 = vst.msk [vmem:[#allocation2 + $0xb8] sm:$0xff] %vm3009, %v2072
      %4254 = vst.msk [vmem:[#allocation2 + $0xc0] sm:$0xff] %vm3009, %v2073
      %4255 = vst.msk [vmem:[#allocation2 + $0xc8] sm:$0xff] %vm3009, %v2074
      %4256 = vst.msk [vmem:[#allocation2 + $0xd0] sm:$0xff] %vm3009, %v2075
      %4257 = vst.msk [vmem:[#allocation2 + $0xd8] sm:$0xff] %vm3009, %v2076
      %4258 = vst.msk [vmem:[#allocation2 + $0xe0] sm:$0xff] %vm3009, %v2077
      %4259 = vst.msk [vmem:[#allocation2 + $0xe8] sm:$0xff] %vm3009, %v2078
      %4260 = vst.msk [vmem:[#allocation2 + $0xf0] sm:$0xff] %vm3009, %v2079
      %4261 = vst.msk [vmem:[#allocation2 + $0xf8] sm:$0xff] %vm3009, %v2080
      %4262 = vst.msk [vmem:[#allocation2 + $0x100] sm:$0xff] %vm3009, %v2081
      %4263 = vst.msk [vmem:[#allocation2 + $0x108] sm:$0xff] %vm3009, %v2082
      %4264 = vst.msk [vmem:[#allocation2 + $0x110] sm:$0xff] %vm3009, %v2083
      %4265 = vst.msk [vmem:[#allocation2 + $0x118] sm:$0xff] %vm3009, %v2084
      %4266 = vst.msk [vmem:[#allocation2 + $0x120] sm:$0xff] %vm3009, %v2085
      %4267 = vst.msk [vmem:[#allocation2 + $0x128] sm:$0xff] %vm3009, %v2086
      %4268 = vst.msk [vmem:[#allocation2 + $0x130] sm:$0xff] %vm3009, %v2087
      %4269 = vst.msk [vmem:[#allocation2 + $0x138] sm:$0xff] %vm3009, %v2088
      %4270 = vst.msk [vmem:[#allocation2 + $0x140] sm:$0xff] %vm3009, %v2089
      %4271 = vst.msk [vmem:[#allocation2 + $0x148] sm:$0xff] %vm3009, %v2090
      %4272 = vst.msk [vmem:[#allocation2 + $0x150] sm:$0xff] %vm3009, %v2091
      %4273 = vst.msk [vmem:[#allocation2 + $0x158] sm:$0xff] %vm3009, %v2092
      %4274 = vst.msk [vmem:[#allocation2 + $0x160] sm:$0xff] %vm3009, %v2093
      %4275 = vst.msk [vmem:[#allocation2 + $0x168] sm:$0xff] %vm3009, %v2094
      %4276 = vst.msk [vmem:[#allocation2 + $0x170] sm:$0xff] %vm3009, %v2095
      %4277 = vst.msk [vmem:[#allocation2 + $0x178] sm:$0xff] %vm3009, %v2096
      %4278 = vst.msk [vmem:[#allocation2 + $0x180] sm:$0xff] %vm3009, %v2097
      %4279 = vst.msk [vmem:[#allocation2 + $0x188] sm:$0xff] %vm3009, %v2098
      %4280 = vst.msk [vmem:[#allocation2 + $0x190] sm:$0xff] %vm3009, %v2099
      %4281 = vst.msk [vmem:[#allocation2 + $0x198] sm:$0xff] %vm3009, %v2100
      %4282 = vst.msk [vmem:[#allocation2 + $0x1a0] sm:$0xff] %vm3009, %v2101
      %4283 = vst.msk [vmem:[#allocation2 + $0x1a8] sm:$0xff] %vm3009, %v2102
      %4284 = vst.msk [vmem:[#allocation2 + $0x1b0] sm:$0xff] %vm3009, %v2103
      %4285 = vst.msk [vmem:[#allocation2 + $0x1b8] sm:$0xff] %vm3009, %v2104
      %4286 = vst.msk [vmem:[#allocation2 + $0x1c0] sm:$0xff] %vm3009, %v2105
      %4287 = vst.msk [vmem:[#allocation2 + $0x1c8] sm:$0xff] %vm3009, %v2106
      %4288 = vst.msk [vmem:[#allocation2 + $0x1d0] sm:$0xff] %vm3009, %v2107
      %4289 = vst.msk [vmem:[#allocation2 + $0x1d8] sm:$0xff] %vm3009, %v2108
      %4290 = vst.msk [vmem:[#allocation2 + $0x1e0] sm:$0xff] %vm3009, %v2109
      %4291 = vst.msk [vmem:[#allocation2 + $0x1e8] sm:$0xff] %vm3009, %v2110
      %4292 = vst.msk [vmem:[#allocation2 + $0x1f0] sm:$0xff] %vm3009, %v2111
      %4293 = vst.msk [vmem:[#allocation2 + $0x1f8] sm:$0xff] %vm3009, %v2112
      // Predicated region
      $region37: #{tpu_custom_call.1} parent=31 // pred_check
        %p4294 = pneg %p366
      $region38: #{tpu_custom_call.1} parent=31 // pred_check_branch
        %4296 = sbr.rel (%p4294) target = $region40
      $region39: #{tpu_custom_call.1} parent=31 // pred_region
        %v4297 = vld [vmem:[#allocation3] sm:$0xff]
        %v4298 = vld [vmem:[#allocation3 + $0x8] sm:$0xff]
        %v4299 = vld [vmem:[#allocation3 + $0x10] sm:$0xff]
        %v4300 = vld [vmem:[#allocation3 + $0x18] sm:$0xff]
        %v4301 = vld [vmem:[#allocation3 + $0x20] sm:$0xff]
        %v4302 = vld [vmem:[#allocation3 + $0x28] sm:$0xff]
        %v4303 = vld [vmem:[#allocation3 + $0x30] sm:$0xff]
        %v4304 = vld [vmem:[#allocation3 + $0x38] sm:$0xff]
        %v4305 = vld [vmem:[#allocation3 + $0x40] sm:$0xff]
        %v4306 = vld [vmem:[#allocation3 + $0x48] sm:$0xff]
        %v4307 = vld [vmem:[#allocation3 + $0x50] sm:$0xff]
        %v4308 = vld [vmem:[#allocation3 + $0x58] sm:$0xff]
        %v4309 = vld [vmem:[#allocation3 + $0x60] sm:$0xff]
        %v4310 = vld [vmem:[#allocation3 + $0x68] sm:$0xff]
        %v4311 = vld [vmem:[#allocation3 + $0x70] sm:$0xff]
        %v4312 = vld [vmem:[#allocation3 + $0x78] sm:$0xff]
        %v4313 = vld [vmem:[#allocation3 + $0x80] sm:$0xff]
        %v4314 = vld [vmem:[#allocation3 + $0x88] sm:$0xff]
        %v4315 = vld [vmem:[#allocation3 + $0x90] sm:$0xff]
        %v4316 = vld [vmem:[#allocation3 + $0x98] sm:$0xff]
        %v4317 = vld [vmem:[#allocation3 + $0xa0] sm:$0xff]
        %v4318 = vld [vmem:[#allocation3 + $0xa8] sm:$0xff]
        %v4319 = vld [vmem:[#allocation3 + $0xb0] sm:$0xff]
        %v4320 = vld [vmem:[#allocation3 + $0xb8] sm:$0xff]
        %v4321 = vld [vmem:[#allocation3 + $0xc0] sm:$0xff]
        %v4322 = vld [vmem:[#allocation3 + $0xc8] sm:$0xff]
        %v4323 = vld [vmem:[#allocation3 + $0xd0] sm:$0xff]
        %v4324 = vld [vmem:[#allocation3 + $0xd8] sm:$0xff]
        %v4325 = vld [vmem:[#allocation3 + $0xe0] sm:$0xff]
        %v4326 = vld [vmem:[#allocation3 + $0xe8] sm:$0xff]
        %v4327 = vld [vmem:[#allocation3 + $0xf0] sm:$0xff]
        %v4328 = vld [vmem:[#allocation3 + $0xf8] sm:$0xff]
        %v4329 = vld [vmem:[#allocation3 + $0x100] sm:$0xff]
        %v4330 = vld [vmem:[#allocation3 + $0x108] sm:$0xff]
        %v4331 = vld [vmem:[#allocation3 + $0x110] sm:$0xff]
        %v4332 = vld [vmem:[#allocation3 + $0x118] sm:$0xff]
        %v4333 = vld [vmem:[#allocation3 + $0x120] sm:$0xff]
        %v4334 = vld [vmem:[#allocation3 + $0x128] sm:$0xff]
        %v4335 = vld [vmem:[#allocation3 + $0x130] sm:$0xff]
        %v4336 = vld [vmem:[#allocation3 + $0x138] sm:$0xff]
        %v4337 = vld [vmem:[#allocation3 + $0x140] sm:$0xff]
        %v4338 = vld [vmem:[#allocation3 + $0x148] sm:$0xff]
        %v4339 = vld [vmem:[#allocation3 + $0x150] sm:$0xff]
        %v4340 = vld [vmem:[#allocation3 + $0x158] sm:$0xff]
        %v4341 = vld [vmem:[#allocation3 + $0x160] sm:$0xff]
        %v4342 = vld [vmem:[#allocation3 + $0x168] sm:$0xff]
        %v4343 = vld [vmem:[#allocation3 + $0x170] sm:$0xff]
        %v4344 = vld [vmem:[#allocation3 + $0x178] sm:$0xff]
        %v4345 = vld [vmem:[#allocation3 + $0x180] sm:$0xff]
        %v4346 = vld [vmem:[#allocation3 + $0x188] sm:$0xff]
        %v4347 = vld [vmem:[#allocation3 + $0x190] sm:$0xff]
        %v4348 = vld [vmem:[#allocation3 + $0x198] sm:$0xff]
        %v4349 = vld [vmem:[#allocation3 + $0x1a0] sm:$0xff]
        %v4350 = vld [vmem:[#allocation3 + $0x1a8] sm:$0xff]
        %v4351 = vld [vmem:[#allocation3 + $0x1b0] sm:$0xff]
        %v4352 = vld [vmem:[#allocation3 + $0x1b8] sm:$0xff]
        %v4353 = vld [vmem:[#allocation3 + $0x1c0] sm:$0xff]
        %v4354 = vld [vmem:[#allocation3 + $0x1c8] sm:$0xff]
        %v4355 = vld [vmem:[#allocation3 + $0x1d0] sm:$0xff]
        %v4356 = vld [vmem:[#allocation3 + $0x1d8] sm:$0xff]
        %v4357 = vld [vmem:[#allocation3 + $0x1e0] sm:$0xff]
        %v4358 = vld [vmem:[#allocation3 + $0x1e8] sm:$0xff]
        %v4359 = vld [vmem:[#allocation3 + $0x1f0] sm:$0xff]
        %v4360 = vld [vmem:[#allocation3 + $0x1f8] sm:$0xff]
        %v4361 = vrcp.pop %v4297
        %v4362 = vrcp.pop %v4298
        %v4363 = vrcp.pop %v4299
        %v4364 = vrcp.pop %v4300
        %v4365 = vrcp.pop %v4301
        %v4366 = vrcp.pop %v4302
        %v4367 = vrcp.pop %v4303
        %v4368 = vrcp.pop %v4304
        %v4369 = vrcp.pop %v4305
        %v4370 = vrcp.pop %v4306
        %v4371 = vrcp.pop %v4307
        %v4372 = vrcp.pop %v4308
        %v4373 = vrcp.pop %v4309
        %v4374 = vrcp.pop %v4310
        %v4375 = vrcp.pop %v4311
        %v4376 = vrcp.pop %v4312
        %v4377 = vrcp.pop %v4313
        %v4378 = vrcp.pop %v4314
        %v4379 = vrcp.pop %v4315
        %v4380 = vrcp.pop %v4316
        %v4381 = vrcp.pop %v4317
        %v4382 = vrcp.pop %v4318
        %v4383 = vrcp.pop %v4319
        %v4384 = vrcp.pop %v4320
        %v4385 = vrcp.pop %v4321
        %v4386 = vrcp.pop %v4322
        %v4387 = vrcp.pop %v4323
        %v4388 = vrcp.pop %v4324
        %v4389 = vrcp.pop %v4325
        %v4390 = vrcp.pop %v4326
        %v4391 = vrcp.pop %v4327
        %v4392 = vrcp.pop %v4328
        %v4393 = vrcp.pop %v4329
        %v4394 = vrcp.pop %v4330
        %v4395 = vrcp.pop %v4331
        %v4396 = vrcp.pop %v4332
        %v4397 = vrcp.pop %v4333
        %v4398 = vrcp.pop %v4334
        %v4399 = vrcp.pop %v4335
        %v4400 = vrcp.pop %v4336
        %v4401 = vrcp.pop %v4337
        %v4402 = vrcp.pop %v4338
        %v4403 = vrcp.pop %v4339
        %v4404 = vrcp.pop %v4340
        %v4405 = vrcp.pop %v4341
        %v4406 = vrcp.pop %v4342
        %v4407 = vrcp.pop %v4343
        %v4408 = vrcp.pop %v4344
        %v4409 = vrcp.pop %v4345
        %v4410 = vrcp.pop %v4346
        %v4411 = vrcp.pop %v4347
        %v4412 = vrcp.pop %v4348
        %v4413 = vrcp.pop %v4349
        %v4414 = vrcp.pop %v4350
        %v4415 = vrcp.pop %v4351
        %v4416 = vrcp.pop %v4352
        %v4417 = vrcp.pop %v4353
        %v4418 = vrcp.pop %v4354
        %v4419 = vrcp.pop %v4355
        %v4420 = vrcp.pop %v4356
        %v4421 = vrcp.pop %v4357
        %v4422 = vrcp.pop %v4358
        %v4423 = vrcp.pop %v4359
        %v4424 = vrcp.pop %v4360
        %v4425 = vmul.f32 %v4297, %v4361
        %v4426 = vmul.f32 %v4298, %v4362
        %v4427 = vmul.f32 %v4299, %v4363
        %v4428 = vmul.f32 %v4300, %v4364
        %v4429 = vmul.f32 %v4301, %v4365
        %v4430 = vmul.f32 %v4302, %v4366
        %v4431 = vmul.f32 %v4303, %v4367
        %v4432 = vmul.f32 %v4304, %v4368
        %v4433 = vmul.f32 %v4305, %v4369
        %v4434 = vmul.f32 %v4306, %v4370
        %v4435 = vmul.f32 %v4307, %v4371
        %v4436 = vmul.f32 %v4308, %v4372
        %v4437 = vmul.f32 %v4309, %v4373
        %v4438 = vmul.f32 %v4310, %v4374
        %v4439 = vmul.f32 %v4311, %v4375
        %v4440 = vmul.f32 %v4312, %v4376
        %v4441 = vmul.f32 %v4313, %v4377
        %v4442 = vmul.f32 %v4314, %v4378
        %v4443 = vmul.f32 %v4315, %v4379
        %v4444 = vmul.f32 %v4316, %v4380
        %v4445 = vmul.f32 %v4317, %v4381
        %v4446 = vmul.f32 %v4318, %v4382
        %v4447 = vmul.f32 %v4319, %v4383
        %v4448 = vmul.f32 %v4320, %v4384
        %v4449 = vmul.f32 %v4321, %v4385
        %v4450 = vmul.f32 %v4322, %v4386
        %v4451 = vmul.f32 %v4323, %v4387
        %v4452 = vmul.f32 %v4324, %v4388
        %v4453 = vmul.f32 %v4325, %v4389
        %v4454 = vmul.f32 %v4326, %v4390
        %v4455 = vmul.f32 %v4327, %v4391
        %v4456 = vmul.f32 %v4328, %v4392
        %v4457 = vmul.f32 %v4329, %v4393
        %v4458 = vmul.f32 %v4330, %v4394
        %v4459 = vmul.f32 %v4331, %v4395
        %v4460 = vmul.f32 %v4332, %v4396
        %v4461 = vmul.f32 %v4333, %v4397
        %v4462 = vmul.f32 %v4334, %v4398
        %v4463 = vmul.f32 %v4335, %v4399
        %v4464 = vmul.f32 %v4336, %v4400
        %v4465 = vmul.f32 %v4337, %v4401
        %v4466 = vmul.f32 %v4338, %v4402
        %v4467 = vmul.f32 %v4339, %v4403
        %v4468 = vmul.f32 %v4340, %v4404
        %v4469 = vmul.f32 %v4341, %v4405
        %v4470 = vmul.f32 %v4342, %v4406
        %v4471 = vmul.f32 %v4343, %v4407
        %v4472 = vmul.f32 %v4344, %v4408
        %v4473 = vmul.f32 %v4345, %v4409
        %v4474 = vmul.f32 %v4346, %v4410
        %v4475 = vmul.f32 %v4347, %v4411
        %v4476 = vmul.f32 %v4348, %v4412
        %v4477 = vmul.f32 %v4349, %v4413
        %v4478 = vmul.f32 %v4350, %v4414
        %v4479 = vmul.f32 %v4351, %v4415
        %v4480 = vmul.f32 %v4352, %v4416
        %v4481 = vmul.f32 %v4353, %v4417
        %v4482 = vmul.f32 %v4354, %v4418
        %v4483 = vmul.f32 %v4355, %v4419
        %v4484 = vmul.f32 %v4356, %v4420
        %v4485 = vmul.f32 %v4357, %v4421
        %v4486 = vmul.f32 %v4358, %v4422
        %v4487 = vmul.f32 %v4359, %v4423
        %v4488 = vmul.f32 %v4360, %v4424
        %v4489 = vsub.f32 2.0, %v4425
        %v4490 = vsub.f32 2.0, %v4426
        %v4491 = vsub.f32 2.0, %v4427
        %v4492 = vsub.f32 2.0, %v4428
        %v4493 = vsub.f32 2.0, %v4429
        %v4494 = vsub.f32 2.0, %v4430
        %v4495 = vsub.f32 2.0, %v4431
        %v4496 = vsub.f32 2.0, %v4432
        %v4497 = vsub.f32 2.0, %v4433
        %v4498 = vsub.f32 2.0, %v4434
        %v4499 = vsub.f32 2.0, %v4435
        %v4500 = vsub.f32 2.0, %v4436
        %v4501 = vsub.f32 2.0, %v4437
        %v4502 = vsub.f32 2.0, %v4438
        %v4503 = vsub.f32 2.0, %v4439
        %v4504 = vsub.f32 2.0, %v4440
        %v4505 = vsub.f32 2.0, %v4441
        %v4506 = vsub.f32 2.0, %v4442
        %v4507 = vsub.f32 2.0, %v4443
        %v4508 = vsub.f32 2.0, %v4444
        %v4509 = vsub.f32 2.0, %v4445
        %v4510 = vsub.f32 2.0, %v4446
        %v4511 = vsub.f32 2.0, %v4447
        %v4512 = vsub.f32 2.0, %v4448
        %v4513 = vsub.f32 2.0, %v4449
        %v4514 = vsub.f32 2.0, %v4450
        %v4515 = vsub.f32 2.0, %v4451
        %v4516 = vsub.f32 2.0, %v4452
        %v4517 = vsub.f32 2.0, %v4453
        %v4518 = vsub.f32 2.0, %v4454
        %v4519 = vsub.f32 2.0, %v4455
        %v4520 = vsub.f32 2.0, %v4456
        %v4521 = vsub.f32 2.0, %v4457
        %v4522 = vsub.f32 2.0, %v4458
        %v4523 = vsub.f32 2.0, %v4459
        %v4524 = vsub.f32 2.0, %v4460
        %v4525 = vsub.f32 2.0, %v4461
        %v4526 = vsub.f32 2.0, %v4462
        %v4527 = vsub.f32 2.0, %v4463
        %v4528 = vsub.f32 2.0, %v4464
        %v4529 = vsub.f32 2.0, %v4465
        %v4530 = vsub.f32 2.0, %v4466
        %v4531 = vsub.f32 2.0, %v4467
        %v4532 = vsub.f32 2.0, %v4468
        %v4533 = vsub.f32 2.0, %v4469
        %v4534 = vsub.f32 2.0, %v4470
        %v4535 = vsub.f32 2.0, %v4471
        %v4536 = vsub.f32 2.0, %v4472
        %v4537 = vsub.f32 2.0, %v4473
        %v4538 = vsub.f32 2.0, %v4474
        %v4539 = vsub.f32 2.0, %v4475
        %v4540 = vsub.f32 2.0, %v4476
        %v4541 = vsub.f32 2.0, %v4477
        %v4542 = vsub.f32 2.0, %v4478
        %v4543 = vsub.f32 2.0, %v4479
        %v4544 = vsub.f32 2.0, %v4480
        %v4545 = vsub.f32 2.0, %v4481
        %v4546 = vsub.f32 2.0, %v4482
        %v4547 = vsub.f32 2.0, %v4483
        %v4548 = vsub.f32 2.0, %v4484
        %v4549 = vsub.f32 2.0, %v4485
        %v4550 = vsub.f32 2.0, %v4486
        %v4551 = vsub.f32 2.0, %v4487
        %v4552 = vsub.f32 2.0, %v4488
        %v4553 = vmul.f32 %v4361, %v4489
        %v4554 = vmul.f32 %v4362, %v4490
        %v4555 = vmul.f32 %v4363, %v4491
        %v4556 = vmul.f32 %v4364, %v4492
        %v4557 = vmul.f32 %v4365, %v4493
        %v4558 = vmul.f32 %v4366, %v4494
        %v4559 = vmul.f32 %v4367, %v4495
        %v4560 = vmul.f32 %v4368, %v4496
        %v4561 = vmul.f32 %v4369, %v4497
        %v4562 = vmul.f32 %v4370, %v4498
        %v4563 = vmul.f32 %v4371, %v4499
        %v4564 = vmul.f32 %v4372, %v4500
        %v4565 = vmul.f32 %v4373, %v4501
        %v4566 = vmul.f32 %v4374, %v4502
        %v4567 = vmul.f32 %v4375, %v4503
        %v4568 = vmul.f32 %v4376, %v4504
        %v4569 = vmul.f32 %v4377, %v4505
        %v4570 = vmul.f32 %v4378, %v4506
        %v4571 = vmul.f32 %v4379, %v4507
        %v4572 = vmul.f32 %v4380, %v4508
        %v4573 = vmul.f32 %v4381, %v4509
        %v4574 = vmul.f32 %v4382, %v4510
        %v4575 = vmul.f32 %v4383, %v4511
        %v4576 = vmul.f32 %v4384, %v4512
        %v4577 = vmul.f32 %v4385, %v4513
        %v4578 = vmul.f32 %v4386, %v4514
        %v4579 = vmul.f32 %v4387, %v4515
        %v4580 = vmul.f32 %v4388, %v4516
        %v4581 = vmul.f32 %v4389, %v4517
        %v4582 = vmul.f32 %v4390, %v4518
        %v4583 = vmul.f32 %v4391, %v4519
        %v4584 = vmul.f32 %v4392, %v4520
        %v4585 = vmul.f32 %v4393, %v4521
        %v4586 = vmul.f32 %v4394, %v4522
        %v4587 = vmul.f32 %v4395, %v4523
        %v4588 = vmul.f32 %v4396, %v4524
        %v4589 = vmul.f32 %v4397, %v4525
        %v4590 = vmul.f32 %v4398, %v4526
        %v4591 = vmul.f32 %v4399, %v4527
        %v4592 = vmul.f32 %v4400, %v4528
        %v4593 = vmul.f32 %v4401, %v4529
        %v4594 = vmul.f32 %v4402, %v4530
        %v4595 = vmul.f32 %v4403, %v4531
        %v4596 = vmul.f32 %v4404, %v4532
        %v4597 = vmul.f32 %v4405, %v4533
        %v4598 = vmul.f32 %v4406, %v4534
        %v4599 = vmul.f32 %v4407, %v4535
        %v4600 = vmul.f32 %v4408, %v4536
        %v4601 = vmul.f32 %v4409, %v4537
        %v4602 = vmul.f32 %v4410, %v4538
        %v4603 = vmul.f32 %v4411, %v4539
        %v4604 = vmul.f32 %v4412, %v4540
        %v4605 = vmul.f32 %v4413, %v4541
        %v4606 = vmul.f32 %v4414, %v4542
        %v4607 = vmul.f32 %v4415, %v4543
        %v4608 = vmul.f32 %v4416, %v4544
        %v4609 = vmul.f32 %v4417, %v4545
        %v4610 = vmul.f32 %v4418, %v4546
        %v4611 = vmul.f32 %v4419, %v4547
        %v4612 = vmul.f32 %v4420, %v4548
        %v4613 = vmul.f32 %v4421, %v4549
        %v4614 = vmul.f32 %v4422, %v4550
        %v4615 = vmul.f32 %v4423, %v4551
        %v4616 = vmul.f32 %v4424, %v4552
        %v4617 = vld [vmem:[#allocation4] sm:$0xff]
        %v4618 = vld [vmem:[#allocation4 + $0x8] sm:$0xff]
        %v4619 = vld [vmem:[#allocation4 + $0x10] sm:$0xff]
        %v4620 = vld [vmem:[#allocation4 + $0x18] sm:$0xff]
        %v4621 = vld [vmem:[#allocation4 + $0x20] sm:$0xff]
        %v4622 = vld [vmem:[#allocation4 + $0x28] sm:$0xff]
        %v4623 = vld [vmem:[#allocation4 + $0x30] sm:$0xff]
        %v4624 = vld [vmem:[#allocation4 + $0x38] sm:$0xff]
        %v4625 = vld [vmem:[#allocation4 + $0x40] sm:$0xff]
        %v4626 = vld [vmem:[#allocation4 + $0x48] sm:$0xff]
        %v4627 = vld [vmem:[#allocation4 + $0x50] sm:$0xff]
        %v4628 = vld [vmem:[#allocation4 + $0x58] sm:$0xff]
        %v4629 = vld [vmem:[#allocation4 + $0x60] sm:$0xff]
        %v4630 = vld [vmem:[#allocation4 + $0x68] sm:$0xff]
        %v4631 = vld [vmem:[#allocation4 + $0x70] sm:$0xff]
        %v4632 = vld [vmem:[#allocation4 + $0x78] sm:$0xff]
        %v4633 = vld [vmem:[#allocation4 + $0x80] sm:$0xff]
        %v4634 = vld [vmem:[#allocation4 + $0x88] sm:$0xff]
        %v4635 = vld [vmem:[#allocation4 + $0x90] sm:$0xff]
        %v4636 = vld [vmem:[#allocation4 + $0x98] sm:$0xff]
        %v4637 = vld [vmem:[#allocation4 + $0xa0] sm:$0xff]
        %v4638 = vld [vmem:[#allocation4 + $0xa8] sm:$0xff]
        %v4639 = vld [vmem:[#allocation4 + $0xb0] sm:$0xff]
        %v4640 = vld [vmem:[#allocation4 + $0xb8] sm:$0xff]
        %v4641 = vld [vmem:[#allocation4 + $0xc0] sm:$0xff]
        %v4642 = vld [vmem:[#allocation4 + $0xc8] sm:$0xff]
        %v4643 = vld [vmem:[#allocation4 + $0xd0] sm:$0xff]
        %v4644 = vld [vmem:[#allocation4 + $0xd8] sm:$0xff]
        %v4645 = vld [vmem:[#allocation4 + $0xe0] sm:$0xff]
        %v4646 = vld [vmem:[#allocation4 + $0xe8] sm:$0xff]
        %v4647 = vld [vmem:[#allocation4 + $0xf0] sm:$0xff]
        %v4648 = vld [vmem:[#allocation4 + $0xf8] sm:$0xff]
        %v4649 = vld [vmem:[#allocation4 + $0x100] sm:$0xff]
        %v4650 = vld [vmem:[#allocation4 + $0x108] sm:$0xff]
        %v4651 = vld [vmem:[#allocation4 + $0x110] sm:$0xff]
        %v4652 = vld [vmem:[#allocation4 + $0x118] sm:$0xff]
        %v4653 = vld [vmem:[#allocation4 + $0x120] sm:$0xff]
        %v4654 = vld [vmem:[#allocation4 + $0x128] sm:$0xff]
        %v4655 = vld [vmem:[#allocation4 + $0x130] sm:$0xff]
        %v4656 = vld [vmem:[#allocation4 + $0x138] sm:$0xff]
        %v4657 = vld [vmem:[#allocation4 + $0x140] sm:$0xff]
        %v4658 = vld [vmem:[#allocation4 + $0x148] sm:$0xff]
        %v4659 = vld [vmem:[#allocation4 + $0x150] sm:$0xff]
        %v4660 = vld [vmem:[#allocation4 + $0x158] sm:$0xff]
        %v4661 = vld [vmem:[#allocation4 + $0x160] sm:$0xff]
        %v4662 = vld [vmem:[#allocation4 + $0x168] sm:$0xff]
        %v4663 = vld [vmem:[#allocation4 + $0x170] sm:$0xff]
        %v4664 = vld [vmem:[#allocation4 + $0x178] sm:$0xff]
        %v4665 = vld [vmem:[#allocation4 + $0x180] sm:$0xff]
        %v4666 = vld [vmem:[#allocation4 + $0x188] sm:$0xff]
        %v4667 = vld [vmem:[#allocation4 + $0x190] sm:$0xff]
        %v4668 = vld [vmem:[#allocation4 + $0x198] sm:$0xff]
        %v4669 = vld [vmem:[#allocation4 + $0x1a0] sm:$0xff]
        %v4670 = vld [vmem:[#allocation4 + $0x1a8] sm:$0xff]
        %v4671 = vld [vmem:[#allocation4 + $0x1b0] sm:$0xff]
        %v4672 = vld [vmem:[#allocation4 + $0x1b8] sm:$0xff]
        %v4673 = vld [vmem:[#allocation4 + $0x1c0] sm:$0xff]
        %v4674 = vld [vmem:[#allocation4 + $0x1c8] sm:$0xff]
        %v4675 = vld [vmem:[#allocation4 + $0x1d0] sm:$0xff]
        %v4676 = vld [vmem:[#allocation4 + $0x1d8] sm:$0xff]
        %v4677 = vld [vmem:[#allocation4 + $0x1e0] sm:$0xff]
        %v4678 = vld [vmem:[#allocation4 + $0x1e8] sm:$0xff]
        %v4679 = vld [vmem:[#allocation4 + $0x1f0] sm:$0xff]
        %v4680 = vld [vmem:[#allocation4 + $0x1f8] sm:$0xff]
        %4682 = vset.pattern.permute.xlu0 0
        %4683 = vperm.xlu0 %4682, %v4553
        %v4684 = vpop.permute.xlu0 %4683
        %4687 = vset.pattern.permute.xlu0 0
        %4688 = vperm.xlu0 %4687, %v4554
        %v4689 = vpop.permute.xlu0 %4688
        %4692 = vset.pattern.permute.xlu0 0
        %4693 = vperm.xlu0 %4692, %v4555
        %v4694 = vpop.permute.xlu0 %4693
        %4697 = vset.pattern.permute.xlu0 0
        %4698 = vperm.xlu0 %4697, %v4556
        %v4699 = vpop.permute.xlu0 %4698
        %4702 = vset.pattern.permute.xlu0 0
        %4703 = vperm.xlu0 %4702, %v4557
        %v4704 = vpop.permute.xlu0 %4703
        %4707 = vset.pattern.permute.xlu0 0
        %4708 = vperm.xlu0 %4707, %v4558
        %v4709 = vpop.permute.xlu0 %4708
        %4712 = vset.pattern.permute.xlu0 0
        %4713 = vperm.xlu0 %4712, %v4559
        %v4714 = vpop.permute.xlu0 %4713
        %4717 = vset.pattern.permute.xlu0 0
        %4718 = vperm.xlu0 %4717, %v4560
        %v4719 = vpop.permute.xlu0 %4718
        %4722 = vset.pattern.permute.xlu0 0
        %4723 = vperm.xlu0 %4722, %v4561
        %v4724 = vpop.permute.xlu0 %4723
        %4727 = vset.pattern.permute.xlu0 0
        %4728 = vperm.xlu0 %4727, %v4562
        %v4729 = vpop.permute.xlu0 %4728
        %4732 = vset.pattern.permute.xlu0 0
        %4733 = vperm.xlu0 %4732, %v4563
        %v4734 = vpop.permute.xlu0 %4733
        %4737 = vset.pattern.permute.xlu0 0
        %4738 = vperm.xlu0 %4737, %v4564
        %v4739 = vpop.permute.xlu0 %4738
        %4742 = vset.pattern.permute.xlu0 0
        %4743 = vperm.xlu0 %4742, %v4565
        %v4744 = vpop.permute.xlu0 %4743
        %4747 = vset.pattern.permute.xlu0 0
        %4748 = vperm.xlu0 %4747, %v4566
        %v4749 = vpop.permute.xlu0 %4748
        %4752 = vset.pattern.permute.xlu0 0
        %4753 = vperm.xlu0 %4752, %v4567
        %v4754 = vpop.permute.xlu0 %4753
        %4757 = vset.pattern.permute.xlu0 0
        %4758 = vperm.xlu0 %4757, %v4568
        %v4759 = vpop.permute.xlu0 %4758
        %4762 = vset.pattern.permute.xlu0 0
        %4763 = vperm.xlu0 %4762, %v4569
        %v4764 = vpop.permute.xlu0 %4763
        %4767 = vset.pattern.permute.xlu0 0
        %4768 = vperm.xlu0 %4767, %v4570
        %v4769 = vpop.permute.xlu0 %4768
        %4772 = vset.pattern.permute.xlu0 0
        %4773 = vperm.xlu0 %4772, %v4571
        %v4774 = vpop.permute.xlu0 %4773
        %4777 = vset.pattern.permute.xlu0 0
        %4778 = vperm.xlu0 %4777, %v4572
        %v4779 = vpop.permute.xlu0 %4778
        %4782 = vset.pattern.permute.xlu0 0
        %4783 = vperm.xlu0 %4782, %v4573
        %v4784 = vpop.permute.xlu0 %4783
        %4787 = vset.pattern.permute.xlu0 0
        %4788 = vperm.xlu0 %4787, %v4574
        %v4789 = vpop.permute.xlu0 %4788
        %4792 = vset.pattern.permute.xlu0 0
        %4793 = vperm.xlu0 %4792, %v4575
        %v4794 = vpop.permute.xlu0 %4793
        %4797 = vset.pattern.permute.xlu0 0
        %4798 = vperm.xlu0 %4797, %v4576
        %v4799 = vpop.permute.xlu0 %4798
        %4802 = vset.pattern.permute.xlu0 0
        %4803 = vperm.xlu0 %4802, %v4577
        %v4804 = vpop.permute.xlu0 %4803
        %4807 = vset.pattern.permute.xlu0 0
        %4808 = vperm.xlu0 %4807, %v4578
        %v4809 = vpop.permute.xlu0 %4808
        %4812 = vset.pattern.permute.xlu0 0
        %4813 = vperm.xlu0 %4812, %v4579
        %v4814 = vpop.permute.xlu0 %4813
        %4817 = vset.pattern.permute.xlu0 0
        %4818 = vperm.xlu0 %4817, %v4580
        %v4819 = vpop.permute.xlu0 %4818
        %4822 = vset.pattern.permute.xlu0 0
        %4823 = vperm.xlu0 %4822, %v4581
        %v4824 = vpop.permute.xlu0 %4823
        %4827 = vset.pattern.permute.xlu0 0
        %4828 = vperm.xlu0 %4827, %v4582
        %v4829 = vpop.permute.xlu0 %4828
        %4832 = vset.pattern.permute.xlu0 0
        %4833 = vperm.xlu0 %4832, %v4583
        %v4834 = vpop.permute.xlu0 %4833
        %4837 = vset.pattern.permute.xlu0 0
        %4838 = vperm.xlu0 %4837, %v4584
        %v4839 = vpop.permute.xlu0 %4838
        %4842 = vset.pattern.permute.xlu0 0
        %4843 = vperm.xlu0 %4842, %v4585
        %v4844 = vpop.permute.xlu0 %4843
        %4847 = vset.pattern.permute.xlu0 0
        %4848 = vperm.xlu0 %4847, %v4586
        %v4849 = vpop.permute.xlu0 %4848
        %4852 = vset.pattern.permute.xlu0 0
        %4853 = vperm.xlu0 %4852, %v4587
        %v4854 = vpop.permute.xlu0 %4853
        %4857 = vset.pattern.permute.xlu0 0
        %4858 = vperm.xlu0 %4857, %v4588
        %v4859 = vpop.permute.xlu0 %4858
        %4862 = vset.pattern.permute.xlu0 0
        %4863 = vperm.xlu0 %4862, %v4589
        %v4864 = vpop.permute.xlu0 %4863
        %4867 = vset.pattern.permute.xlu0 0
        %4868 = vperm.xlu0 %4867, %v4590
        %v4869 = vpop.permute.xlu0 %4868
        %4872 = vset.pattern.permute.xlu0 0
        %4873 = vperm.xlu0 %4872, %v4591
        %v4874 = vpop.permute.xlu0 %4873
        %4877 = vset.pattern.permute.xlu0 0
        %4878 = vperm.xlu0 %4877, %v4592
        %v4879 = vpop.permute.xlu0 %4878
        %4882 = vset.pattern.permute.xlu0 0
        %4883 = vperm.xlu0 %4882, %v4593
        %v4884 = vpop.permute.xlu0 %4883
        %4887 = vset.pattern.permute.xlu0 0
        %4888 = vperm.xlu0 %4887, %v4594
        %v4889 = vpop.permute.xlu0 %4888
        %4892 = vset.pattern.permute.xlu0 0
        %4893 = vperm.xlu0 %4892, %v4595
        %v4894 = vpop.permute.xlu0 %4893
        %4897 = vset.pattern.permute.xlu0 0
        %4898 = vperm.xlu0 %4897, %v4596
        %v4899 = vpop.permute.xlu0 %4898
        %4902 = vset.pattern.permute.xlu0 0
        %4903 = vperm.xlu0 %4902, %v4597
        %v4904 = vpop.permute.xlu0 %4903
        %4907 = vset.pattern.permute.xlu0 0
        %4908 = vperm.xlu0 %4907, %v4598
        %v4909 = vpop.permute.xlu0 %4908
        %4912 = vset.pattern.permute.xlu0 0
        %4913 = vperm.xlu0 %4912, %v4599
        %v4914 = vpop.permute.xlu0 %4913
        %4917 = vset.pattern.permute.xlu0 0
        %4918 = vperm.xlu0 %4917, %v4600
        %v4919 = vpop.permute.xlu0 %4918
        %4922 = vset.pattern.permute.xlu0 0
        %4923 = vperm.xlu0 %4922, %v4601
        %v4924 = vpop.permute.xlu0 %4923
        %4927 = vset.pattern.permute.xlu0 0
        %4928 = vperm.xlu0 %4927, %v4602
        %v4929 = vpop.permute.xlu0 %4928
        %4932 = vset.pattern.permute.xlu0 0
        %4933 = vperm.xlu0 %4932, %v4603
        %v4934 = vpop.permute.xlu0 %4933
        %4937 = vset.pattern.permute.xlu0 0
        %4938 = vperm.xlu0 %4937, %v4604
        %v4939 = vpop.permute.xlu0 %4938
        %4942 = vset.pattern.permute.xlu0 0
        %4943 = vperm.xlu0 %4942, %v4605
        %v4944 = vpop.permute.xlu0 %4943
        %4947 = vset.pattern.permute.xlu0 0
        %4948 = vperm.xlu0 %4947, %v4606
        %v4949 = vpop.permute.xlu0 %4948
        %4952 = vset.pattern.permute.xlu0 0
        %4953 = vperm.xlu0 %4952, %v4607
        %v4954 = vpop.permute.xlu0 %4953
        %4957 = vset.pattern.permute.xlu0 0
        %4958 = vperm.xlu0 %4957, %v4608
        %v4959 = vpop.permute.xlu0 %4958
        %4962 = vset.pattern.permute.xlu0 0
        %4963 = vperm.xlu0 %4962, %v4609
        %v4964 = vpop.permute.xlu0 %4963
        %4967 = vset.pattern.permute.xlu0 0
        %4968 = vperm.xlu0 %4967, %v4610
        %v4969 = vpop.permute.xlu0 %4968
        %4972 = vset.pattern.permute.xlu0 0
        %4973 = vperm.xlu0 %4972, %v4611
        %v4974 = vpop.permute.xlu0 %4973
        %4977 = vset.pattern.permute.xlu0 0
        %4978 = vperm.xlu0 %4977, %v4612
        %v4979 = vpop.permute.xlu0 %4978
        %4982 = vset.pattern.permute.xlu0 0
        %4983 = vperm.xlu0 %4982, %v4613
        %v4984 = vpop.permute.xlu0 %4983
        %4987 = vset.pattern.permute.xlu0 0
        %4988 = vperm.xlu0 %4987, %v4614
        %v4989 = vpop.permute.xlu0 %4988
        %4992 = vset.pattern.permute.xlu0 0
        %4993 = vperm.xlu0 %4992, %v4615
        %v4994 = vpop.permute.xlu0 %4993
        %4997 = vset.pattern.permute.xlu0 0
        %4998 = vperm.xlu0 %4997, %v4616
        %v4999 = vpop.permute.xlu0 %4998
        %v5001 = vmul.f32 %v4617, %v4684
        %v5002 = vmul.f32 %v4618, %v4689
        %v5003 = vmul.f32 %v4619, %v4694
        %v5004 = vmul.f32 %v4620, %v4699
        %v5005 = vmul.f32 %v4621, %v4704
        %v5006 = vmul.f32 %v4622, %v4709
        %v5007 = vmul.f32 %v4623, %v4714
        %v5008 = vmul.f32 %v4624, %v4719
        %v5009 = vmul.f32 %v4625, %v4724
        %v5010 = vmul.f32 %v4626, %v4729
        %v5011 = vmul.f32 %v4627, %v4734
        %v5012 = vmul.f32 %v4628, %v4739
        %v5013 = vmul.f32 %v4629, %v4744
        %v5014 = vmul.f32 %v4630, %v4749
        %v5015 = vmul.f32 %v4631, %v4754
        %v5016 = vmul.f32 %v4632, %v4759
        %v5017 = vmul.f32 %v4633, %v4764
        %v5018 = vmul.f32 %v4634, %v4769
        %v5019 = vmul.f32 %v4635, %v4774
        %v5020 = vmul.f32 %v4636, %v4779
        %v5021 = vmul.f32 %v4637, %v4784
        %v5022 = vmul.f32 %v4638, %v4789
        %v5023 = vmul.f32 %v4639, %v4794
        %v5024 = vmul.f32 %v4640, %v4799
        %v5025 = vmul.f32 %v4641, %v4804
        %v5026 = vmul.f32 %v4642, %v4809
        %v5027 = vmul.f32 %v4643, %v4814
        %v5028 = vmul.f32 %v4644, %v4819
        %v5029 = vmul.f32 %v4645, %v4824
        %v5030 = vmul.f32 %v4646, %v4829
        %v5031 = vmul.f32 %v4647, %v4834
        %v5032 = vmul.f32 %v4648, %v4839
        %v5033 = vmul.f32 %v4649, %v4844
        %v5034 = vmul.f32 %v4650, %v4849
        %v5035 = vmul.f32 %v4651, %v4854
        %v5036 = vmul.f32 %v4652, %v4859
        %v5037 = vmul.f32 %v4653, %v4864
        %v5038 = vmul.f32 %v4654, %v4869
        %v5039 = vmul.f32 %v4655, %v4874
        %v5040 = vmul.f32 %v4656, %v4879
        %v5041 = vmul.f32 %v4657, %v4884
        %v5042 = vmul.f32 %v4658, %v4889
        %v5043 = vmul.f32 %v4659, %v4894
        %v5044 = vmul.f32 %v4660, %v4899
        %v5045 = vmul.f32 %v4661, %v4904
        %v5046 = vmul.f32 %v4662, %v4909
        %v5047 = vmul.f32 %v4663, %v4914
        %v5048 = vmul.f32 %v4664, %v4919
        %v5049 = vmul.f32 %v4665, %v4924
        %v5050 = vmul.f32 %v4666, %v4929
        %v5051 = vmul.f32 %v4667, %v4934
        %v5052 = vmul.f32 %v4668, %v4939
        %v5053 = vmul.f32 %v4669, %v4944
        %v5054 = vmul.f32 %v4670, %v4949
        %v5055 = vmul.f32 %v4671, %v4954
        %v5056 = vmul.f32 %v4672, %v4959
        %v5057 = vmul.f32 %v4673, %v4964
        %v5058 = vmul.f32 %v4674, %v4969
        %v5059 = vmul.f32 %v4675, %v4974
        %v5060 = vmul.f32 %v4676, %v4979
        %v5061 = vmul.f32 %v4677, %v4984
        %v5062 = vmul.f32 %v4678, %v4989
        %v5063 = vmul.f32 %v4679, %v4994
        %v5064 = vmul.f32 %v4680, %v4999
        %5065 = vst.msk [vmem:[%s363] sm:$0xff] %vm820, %v5001
        %5066 = vst.msk [vmem:[%s363 + $0x8] sm:$0xff] %vm820, %v5002
        %5067 = vst.msk [vmem:[%s363 + $0x10] sm:$0xff] %vm820, %v5003
        %5068 = vst.msk [vmem:[%s363 + $0x18] sm:$0xff] %vm820, %v5004
        %5069 = vst.msk [vmem:[%s363 + $0x20] sm:$0xff] %vm820, %v5005
        %5070 = vst.msk [vmem:[%s363 + $0x28] sm:$0xff] %vm820, %v5006
        %5071 = vst.msk [vmem:[%s363 + $0x30] sm:$0xff] %vm820, %v5007
        %5072 = vst.msk [vmem:[%s363 + $0x38] sm:$0xff] %vm820, %v5008
        %5073 = vst.msk [vmem:[%s363 + $0x40] sm:$0xff] %vm820, %v5009
        %5074 = vst.msk [vmem:[%s363 + $0x48] sm:$0xff] %vm820, %v5010
        %5075 = vst.msk [vmem:[%s363 + $0x50] sm:$0xff] %vm820, %v5011
        %5076 = vst.msk [vmem:[%s363 + $0x58] sm:$0xff] %vm820, %v5012
        %5077 = vst.msk [vmem:[%s363 + $0x60] sm:$0xff] %vm820, %v5013
        %5078 = vst.msk [vmem:[%s363 + $0x68] sm:$0xff] %vm820, %v5014
        %5079 = vst.msk [vmem:[%s363 + $0x70] sm:$0xff] %vm820, %v5015
        %5080 = vst.msk [vmem:[%s363 + $0x78] sm:$0xff] %vm820, %v5016
        %5081 = vst.msk [vmem:[%s363 + $0x80] sm:$0xff] %vm820, %v5017
        %5082 = vst.msk [vmem:[%s363 + $0x88] sm:$0xff] %vm820, %v5018
        %5083 = vst.msk [vmem:[%s363 + $0x90] sm:$0xff] %vm820, %v5019
        %5084 = vst.msk [vmem:[%s363 + $0x98] sm:$0xff] %vm820, %v5020
        %5085 = vst.msk [vmem:[%s363 + $0xa0] sm:$0xff] %vm820, %v5021
        %5086 = vst.msk [vmem:[%s363 + $0xa8] sm:$0xff] %vm820, %v5022
        %5087 = vst.msk [vmem:[%s363 + $0xb0] sm:$0xff] %vm820, %v5023
        %5088 = vst.msk [vmem:[%s363 + $0xb8] sm:$0xff] %vm820, %v5024
        %5089 = vst.msk [vmem:[%s363 + $0xc0] sm:$0xff] %vm820, %v5025
        %5090 = vst.msk [vmem:[%s363 + $0xc8] sm:$0xff] %vm820, %v5026
        %5091 = vst.msk [vmem:[%s363 + $0xd0] sm:$0xff] %vm820, %v5027
        %5092 = vst.msk [vmem:[%s363 + $0xd8] sm:$0xff] %vm820, %v5028
        %5093 = vst.msk [vmem:[%s363 + $0xe0] sm:$0xff] %vm820, %v5029
        %5094 = vst.msk [vmem:[%s363 + $0xe8] sm:$0xff] %vm820, %v5030
        %5095 = vst.msk [vmem:[%s363 + $0xf0] sm:$0xff] %vm820, %v5031
        %5096 = vst.msk [vmem:[%s363 + $0xf8] sm:$0xff] %vm820, %v5032
        %5097 = vst.msk [vmem:[%s363 + $0x100] sm:$0xff] %vm820, %v5033
        %5098 = vst.msk [vmem:[%s363 + $0x108] sm:$0xff] %vm820, %v5034
        %5099 = vst.msk [vmem:[%s363 + $0x110] sm:$0xff] %vm820, %v5035
        %5100 = vst.msk [vmem:[%s363 + $0x118] sm:$0xff] %vm820, %v5036
        %5101 = vst.msk [vmem:[%s363 + $0x120] sm:$0xff] %vm820, %v5037
        %5102 = vst.msk [vmem:[%s363 + $0x128] sm:$0xff] %vm820, %v5038
        %5103 = vst.msk [vmem:[%s363 + $0x130] sm:$0xff] %vm820, %v5039
        %5104 = vst.msk [vmem:[%s363 + $0x138] sm:$0xff] %vm820, %v5040
        %5105 = vst.msk [vmem:[%s363 + $0x140] sm:$0xff] %vm820, %v5041
        %5106 = vst.msk [vmem:[%s363 + $0x148] sm:$0xff] %vm820, %v5042
        %5107 = vst.msk [vmem:[%s363 + $0x150] sm:$0xff] %vm820, %v5043
        %5108 = vst.msk [vmem:[%s363 + $0x158] sm:$0xff] %vm820, %v5044
        %5109 = vst.msk [vmem:[%s363 + $0x160] sm:$0xff] %vm820, %v5045
        %5110 = vst.msk [vmem:[%s363 + $0x168] sm:$0xff] %vm820, %v5046
        %5111 = vst.msk [vmem:[%s363 + $0x170] sm:$0xff] %vm820, %v5047
        %5112 = vst.msk [vmem:[%s363 + $0x178] sm:$0xff] %vm820, %v5048
        %5113 = vst.msk [vmem:[%s363 + $0x180] sm:$0xff] %vm820, %v5049
        %5114 = vst.msk [vmem:[%s363 + $0x188] sm:$0xff] %vm820, %v5050
        %5115 = vst.msk [vmem:[%s363 + $0x190] sm:$0xff] %vm820, %v5051
        %5116 = vst.msk [vmem:[%s363 + $0x198] sm:$0xff] %vm820, %v5052
        %5117 = vst.msk [vmem:[%s363 + $0x1a0] sm:$0xff] %vm820, %v5053
        %5118 = vst.msk [vmem:[%s363 + $0x1a8] sm:$0xff] %vm820, %v5054
        %5119 = vst.msk [vmem:[%s363 + $0x1b0] sm:$0xff] %vm820, %v5055
        %5120 = vst.msk [vmem:[%s363 + $0x1b8] sm:$0xff] %vm820, %v5056
        %5121 = vst.msk [vmem:[%s363 + $0x1c0] sm:$0xff] %vm820, %v5057
        %5122 = vst.msk [vmem:[%s363 + $0x1c8] sm:$0xff] %vm820, %v5058
        %5123 = vst.msk [vmem:[%s363 + $0x1d0] sm:$0xff] %vm820, %v5059
        %5124 = vst.msk [vmem:[%s363 + $0x1d8] sm:$0xff] %vm820, %v5060
        %5125 = vst.msk [vmem:[%s363 + $0x1e0] sm:$0xff] %vm820, %v5061
        %5126 = vst.msk [vmem:[%s363 + $0x1e8] sm:$0xff] %vm820, %v5062
        %5127 = vst.msk [vmem:[%s363 + $0x1f0] sm:$0xff] %vm820, %v5063
        %5128 = vst.msk [vmem:[%s363 + $0x1f8] sm:$0xff] %vm820, %v5064
      $region40: #{tpu_custom_call.1} parent=31 // pred_fallthru
        _
      %s5129 = smul.u32 4, %s21
      %s5130 = smul.u32 16, %s22
      %p5131 = scmp.lt.s32.totalorder %s20, 1
      %s5132 = scalar_select %p5131, %s20, 1
      %p5133 = scmp.lt.s32.totalorder %s5129, 3
      %s5134 = scalar_select %p5133, %s5129, 3
      %p5135 = scmp.lt.s32.totalorder %s5130, 15
      %s5136 = scalar_select %p5135, %s5130, 15
      %s5137 = smul.addr %s5134, 16
      %s5138 = sadd.s32 %s5136, %s5137
      %s5139 = smul.addr %s5132, 64
      %s5140 = sadd.s32 %s5138, %s5139
      %s5141 = smul.addr %s5140, 8
      %s5142 = scalar_lea.vmem %s3, %s5141
      // Predicated region
      $region41: #{tpu_custom_call.1} parent=31 // pred_check
        %p5143 = pneg %p152
      $region42: #{tpu_custom_call.1} parent=31 // pred_check_branch
        %5145 = sbr.rel (%p5143) target = $region44
      $region43: #{tpu_custom_call.1} parent=31 // pred_region
        %s5146 = smul.u32 4, %s21
        %s5147 = smul.u32 16, %s22
      $region44: #{tpu_custom_call.1} parent=31 // pred_fallthru
        _
    $region32: #{tpu_custom_call.1} parent=5 // pred_fallthru
      _
    %p5148 = scmp.le.s32.totalorder 2, %s9
    // Predicated region
    $region45: #{tpu_custom_call.1} parent=5 // pred_check
      %p5149 = pneg %p5148
    $region46: #{tpu_custom_call.1} parent=5 // pred_check_branch
      %5151 = sbr.rel (%p5149) target = $region48
    $region47: #{tpu_custom_call.1} parent=5 // pred_region
      %s5152 = ssub.s32 %s9, 2
      // Predicated region
      $region49: #{tpu_custom_call.1} parent=47 // pred_check
        %p5153 = pneg %p158
      $region50: #{tpu_custom_call.1} parent=47 // pred_check_branch
        %5155 = sbr.rel (%p5153) target = $region52
      $region51: #{tpu_custom_call.1} parent=47 // pred_region
        %s5156 = smul.u32 4, %s25
        %s5157 = smul.u32 16, %s26
        %p5158 = scmp.lt.s32.totalorder %s24, 1
        %s5159 = scalar_select %p5158, %s24, 1
        %p5160 = scmp.lt.s32.totalorder %s5156, 3
        %s5161 = scalar_select %p5160, %s5156, 3
        %p5162 = scmp.lt.s32.totalorder %s5157, 15
        %s5163 = scalar_select %p5162, %s5157, 15
        %s5164 = smul.addr %s5161, 16
        %s5165 = sadd.s32 %s5163, %s5164
        %s5166 = smul.addr %s5159, 64
        %s5167 = sadd.s32 %s5165, %s5166
        %s5168 = smul.addr %s5167, 8
        %s5169 = scalar_lea.vmem %s3, %s5168
      $region52: #{tpu_custom_call.1} parent=47 // pred_fallthru
        _
    $region48: #{tpu_custom_call.1} parent=5 // pred_fallthru
      _
  $region6: #{tpu_custom_call.1} parent=0 // loop_footer
    %s13 = sadd.s32 1, %s9
  $region7: #{tpu_custom_call.1} parent=0 // loop_footer_branch
    %8 = sbr.rel target = $region3
  $region8: #{tpu_custom_call.1} parent=0 // loop_exit
    _

</llo_original>
